<compile_context>
chip_gen: v7x
topology: tpu7x:2x2x1
jax: 0.10.0
libtpu: 0.0.40
codegen_flags: <defaults>
</compile_context>

<pallas_src>
import functools

import jax
import jax.numpy as jnp
from jax.experimental import pallas as pl
from jax.experimental.pallas import tpu as pltpu


def _gather_block_body(words_ref, w_hbm, o_ref, buf, sem, rscale_ref, *,
                       tokens_per_block, const_scale):
    """Gather `tokens_per_block` embedding rows for this grid step (double-buffered)."""
    T = tokens_per_block
    s = pl.program_id(0)
    n = pl.num_programs(0)
    slot = s & 1

    def start_block(block_idx, slot_idx):
        base = block_idx * T
        for t in range(T):                      # static unroll: T row DMAs into one slot
            row = words_ref[base + t]           # SMEM scalar read (issued before any wait)
            pltpu.make_async_copy(
                w_hbm.at[row], buf.at[slot_idx, t], sem.at[slot_idx]
            ).start()

    # Prime the pipeline on the first grid step.
    @pl.when(s == 0)
    def _():
        start_block(0, 0)

    # Prefetch the next block's rows into the other slot *before* waiting on this one.
    @pl.when(s + 1 < n)
    def _():
        start_block(s + 1, 1 - slot)

    # Drain this slot's shared semaphore: T waits of one row's byte count each exactly
    # match the T row copies that signaled it.  (The constant src row only fixes the
    # byte count of the wait descriptor; nothing is read from it.)
    for t in range(T):
        pltpu.make_async_copy(w_hbm.at[0], buf.at[slot, t], sem.at[slot]).wait()

    rows = buf[slot]                            # (T, D)
    if rscale_ref is not None:
        rows = rows * rscale_ref[...]           # per-token row-dropout (and/or scale)
    elif const_scale is not None:
        rows = rows * jnp.asarray(const_scale, rows.dtype)
    o_ref[...] = rows.astype(o_ref.dtype)


def _kernel_plain(words_ref, w_hbm, o_ref, buf, sem, *, tokens_per_block, const_scale):
    _gather_block_body(words_ref, w_hbm, o_ref, buf, sem, None,
                       tokens_per_block=tokens_per_block, const_scale=const_scale)


def _kernel_row_scale(words_ref, w_hbm, rscale_ref, o_ref, buf, sem, *, tokens_per_block):
    _gather_block_body(words_ref, w_hbm, o_ref, buf, sem, rscale_ref,
                       tokens_per_block=tokens_per_block, const_scale=None)


def embedding_dropout_forward(words, weight, *, scale=None, embed_p=0.0,
                              training=False, rng_key=None, tokens_per_block=32):
    """EmbeddingDropout.forward: (optionally row-dropped / scaled) weight[words].

    words  : int array, any shape (bs, seq, ...)
    weight : (vocab, emb_dim) embedding table
    returns: words.shape + (emb_dim,)
    """
    assert tokens_per_block % 8 == 0, "tokens_per_block must be a multiple of 8"
    V, D = weight.shape
    orig_shape = words.shape
    flat = jnp.reshape(words, (-1,)).astype(jnp.int32)
    M = flat.shape[0]

    tpb = tokens_per_block
    num_blocks = pl.cdiv(M, tpb)
    Mp = num_blocks * tpb
    if Mp != M:
        # Pad ids (row 0) so the grid covers whole (tpb, D) blocks; sliced off below.
        flat = jnp.concatenate([flat, jnp.zeros((Mp - M,), jnp.int32)])

    # Training-mode embedding dropout: one bernoulli(1-p)/(1-p) scale per *vocab row*,
    # gathered per token (cheap, O(M) scalars) and applied in-kernel.
    row_scale = None
    if training and embed_p != 0.0:
        if rng_key is None:
            raise ValueError("training-mode embedding dropout requires rng_key")
        keep = jax.random.bernoulli(rng_key, 1.0 - embed_p, (V,))
        vocab_scale = keep.astype(jnp.float32) / (1.0 - embed_p)
        row_scale = vocab_scale[flat].reshape(Mp, 1)
        if scale is not None:
            row_scale = row_scale * jnp.float32(scale)
            scale = None                        # folded into the per-token scale

    if row_scale is not None:
        kernel = functools.partial(_kernel_row_scale, tokens_per_block=tpb)
        in_specs = [
            pl.BlockSpec(memory_space=pl.ANY),                     # table stays in HBM
            pl.BlockSpec((tpb, 1), lambda s, ids: (s, 0)),         # per-token row scale
        ]
        args = (flat, weight, row_scale)
    else:
        kernel = functools.partial(_kernel_plain, tokens_per_block=tpb,
                                   const_scale=scale)
        in_specs = [pl.BlockSpec(memory_space=pl.ANY)]             # table stays in HBM
        args = (flat, weight)

    out = pl.pallas_call(
        kernel,
        out_shape=jax.ShapeDtypeStruct((Mp, D), weight.dtype),
        grid_spec=pltpu.PrefetchScalarGridSpec(
            num_scalar_prefetch=1,                                 # token ids -> SMEM
            grid=(num_blocks,),
            in_specs=in_specs,
            out_specs=pl.BlockSpec((tpb, D), lambda s, ids: (s, 0)),
            scratch_shapes=[
                pltpu.VMEM((2, tpb, D), weight.dtype),             # double-buffered rows
                pltpu.SemaphoreType.DMA((2,)),                     # one DMA sem per slot
            ],
        ),
        compiler_params=pltpu.CompilerParams(
            # Sequential grid: step s prefetches step s+1's rows into the other slot.
            dimension_semantics=("arbitrary",),
        ),
    )(*args)

    return out[:M].reshape(*orig_shape, D)


if __name__ == "__main__":
    key = jax.random.PRNGKey(0)
    k_w, k_words, k_words2, k_drop = jax.random.split(key, 4)

    bs, seq = 2, 8
    vocab, emb_dim = 64, 128        # emb_dim multiple of 128 -> lane-dense stores

    # nn.Embedding-style init: N(0,1), padding row zeroed (as torch would).
    pad_idx = 1
    weight = jax.random.normal(k_w, (vocab, emb_dim), jnp.float32)
    weight = weight.at[pad_idx].set(0.0)

    words = jax.random.randint(k_words, (bs, seq), 0, vocab, jnp.int32)
    expected = weight[words.reshape(-1)].reshape(bs, seq, emb_dim)

    # Eval mode, no scale.
    emb = jax.block_until_ready(embedding_dropout_forward(words, weight))
    assert emb.shape == (bs, seq, emb_dim)
    assert jnp.allclose(emb, expected)

    # Eval mode with scale (masked_embed.mul_(scale) path).
    emb_scaled = jax.block_until_ready(
        embedding_dropout_forward(words, weight, scale=2.5))
    assert jnp.allclose(emb_scaled, 2.5 * expected, atol=1e-6, rtol=1e-6)

    # Smaller block -> grid of 2: exercises the cross-step double-buffer prefetch path.
    emb_mb = jax.block_until_ready(
        embedding_dropout_forward(words, weight, tokens_per_block=8))
    assert jnp.allclose(emb_mb, expected)

    # Ragged token count (exercises the padding / slice-back path).
    words_ragged = jax.random.randint(k_words2, (2, 5), 0, vocab, jnp.int32)
    emb_ragged = jax.block_until_ready(embedding_dropout_forward(words_ragged, weight))
    expected_ragged = weight[words_ragged.reshape(-1)].reshape(2, 5, emb_dim)
    assert jnp.allclose(emb_ragged, expected_ragged)

    # Training mode: per-vocab-row dropout mask (jax RNG stands in for torch RNG).
    embed_p = 0.5
    emb_train = jax.block_until_ready(
        embedding_dropout_forward(words, weight, embed_p=embed_p,
                                  training=True, rng_key=k_drop))
    keep_ref = jax.random.bernoulli(k_drop, 1.0 - embed_p, (vocab,))
    masked_w = weight * (keep_ref.astype(jnp.float32) / (1.0 - embed_p))[:, None]
    expected_train = masked_w[words.reshape(-1)].reshape(bs, seq, emb_dim)
    assert jnp.allclose(emb_train, expected_train, atol=1e-6, rtol=1e-6)

    print("KERNEL_OK")
</pallas_src>

<mosaic_0001>
module attributes {stable_mosaic.version = 11 : i64} {
  func.func @_kernel_plain(%arg0: i32, %arg1: memref<32xi32, #tpu.memory_space<smem>>, %arg2: memref<64x128xf32, #tpu.memory_space<any>>, %arg3: memref<32x128xf32, #tpu.memory_space<vmem>>, %arg4: memref<2x32x128xf32, #tpu.memory_space<vmem>>, %arg5: memref<2x!tpu.dma_semaphore, #tpu.memory_space<semaphore_mem>>) attributes {dimension_semantics = [#tpu.dimension_semantics<arbitrary>], iteration_bounds = array<i64: 1>, scalar_prefetch = 1 : i64, scratch_operands = 2 : i64, tpu.core_type = #tpu.core_type<tc>, window_params = [{}, {transform_indices = @transform_1, window_bounds = array<i64: 32, 128>}]} {
    %c1_i32 = arith.constant 1 : i32
    %0 = arith.andi %arg0, %c1_i32 : i32
    %c0_i32 = arith.constant 0 : i32
    %1 = arith.cmpi eq, %arg0, %c0_i32 : i32
    %2 = arith.extui %1 : i1 to i32
    %c0_i32_0 = arith.constant 0 : i32
    %3 = arith.cmpi ne, %2, %c0_i32_0 : i32
    scf.if %3 {
      %c0_105 = arith.constant 0 : index
      %204 = memref.load %arg1[%c0_105] : memref<32xi32, #tpu.memory_space<smem>>
      %c0_i32_106 = arith.constant 0 : i32
      %c0_i32_107 = arith.constant 0 : i32
      %c0_i32_108 = arith.constant 0 : i32
      %c0_i32_109 = arith.constant 0 : i32
      %205 = tpu.memref_slice %arg2[%204, %c0_i32_109] : memref<64x128xf32, #tpu.memory_space<any>> -> memref<1x128xf32, #tpu.memory_space<any>>
      %206 = tpu.memref_squeeze %205 : memref<1x128xf32, #tpu.memory_space<any>> -> memref<128xf32, #tpu.memory_space<any>>
      %c0_i32_110 = arith.constant 0 : i32
      %207 = tpu.memref_slice %arg4[%c0_i32_106, %c0_i32_107, %c0_i32_110] : memref<2x32x128xf32, #tpu.memory_space<vmem>> -> memref<1x1x128xf32, #tpu.memory_space<vmem>>
      %208 = tpu.memref_squeeze %207 : memref<1x1x128xf32, #tpu.memory_space<vmem>> -> memref<128xf32, #tpu.memory_space<vmem>>
      %209 = tpu.memref_slice %arg5[%c0_i32_108] : memref<2x!tpu.dma_semaphore, #tpu.memory_space<semaphore_mem>> -> memref<1x!tpu.dma_semaphore, #tpu.memory_space<semaphore_mem>>
      %210 = tpu.memref_squeeze %209 : memref<1x!tpu.dma_semaphore, #tpu.memory_space<semaphore_mem>> -> memref<!tpu.dma_semaphore, #tpu.memory_space<semaphore_mem>>
      tpu.enqueue_dma source(%206 : memref<128xf32, #tpu.memory_space<any>>) target(%208 : memref<128xf32, #tpu.memory_space<vmem>>) target_semaphore(%210 : memref<!tpu.dma_semaphore, #tpu.memory_space<semaphore_mem>>)
      %c1 = arith.constant 1 : index
      %211 = memref.load %arg1[%c1] : memref<32xi32, #tpu.memory_space<smem>>
      %c0_i32_111 = arith.constant 0 : i32
      %c1_i32_112 = arith.constant 1 : i32
      %c0_i32_113 = arith.constant 0 : i32
      %c0_i32_114 = arith.constant 0 : i32
      %212 = tpu.memref_slice %arg2[%211, %c0_i32_114] : memref<64x128xf32, #tpu.memory_space<any>> -> memref<1x128xf32, #tpu.memory_space<any>>
      %213 = tpu.memref_squeeze %212 : memref<1x128xf32, #tpu.memory_space<any>> -> memref<128xf32, #tpu.memory_space<any>>
      %c0_i32_115 = arith.constant 0 : i32
      %214 = tpu.memref_slice %arg4[%c0_i32_111, %c1_i32_112, %c0_i32_115] : memref<2x32x128xf32, #tpu.memory_space<vmem>> -> memref<1x1x128xf32, #tpu.memory_space<vmem>>
      %215 = tpu.memref_squeeze %214 : memref<1x1x128xf32, #tpu.memory_space<vmem>> -> memref<128xf32, #tpu.memory_space<vmem>>
      %216 = tpu.memref_slice %arg5[%c0_i32_113] : memref<2x!tpu.dma_semaphore, #tpu.memory_space<semaphore_mem>> -> memref<1x!tpu.dma_semaphore, #tpu.memory_space<semaphore_mem>>
      %217 = tpu.memref_squeeze %216 : memref<1x!tpu.dma_semaphore, #tpu.memory_space<semaphore_mem>> -> memref<!tpu.dma_semaphore, #tpu.memory_space<semaphore_mem>>
      tpu.enqueue_dma source(%213 : memref<128xf32, #tpu.memory_space<any>>) target(%215 : memref<128xf32, #tpu.memory_space<vmem>>) target_semaphore(%217 : memref<!tpu.dma_semaphore, #tpu.memory_space<semaphore_mem>>)
      %c2 = arith.constant 2 : index
      %218 = memref.load %arg1[%c2] : memref<32xi32, #tpu.memory_space<smem>>
      %c0_i32_116 = arith.constant 0 : i32
      %c2_i32_117 = arith.constant 2 : i32
      %c0_i32_118 = arith.constant 0 : i32
      %c0_i32_119 = arith.constant 0 : i32
      %219 = tpu.memref_slice %arg2[%218, %c0_i32_119] : memref<64x128xf32, #tpu.memory_space<any>> -> memref<1x128xf32, #tpu.memory_space<any>>
      %220 = tpu.memref_squeeze %219 : memref<1x128xf32, #tpu.memory_space<any>> -> memref<128xf32, #tpu.memory_space<any>>
      %c0_i32_120 = arith.constant 0 : i32
      %221 = tpu.memref_slice %arg4[%c0_i32_116, %c2_i32_117, %c0_i32_120] : memref<2x32x128xf32, #tpu.memory_space<vmem>> -> memref<1x1x128xf32, #tpu.memory_space<vmem>>
      %222 = tpu.memref_squeeze %221 : memref<1x1x128xf32, #tpu.memory_space<vmem>> -> memref<128xf32, #tpu.memory_space<vmem>>
      %223 = tpu.memref_slice %arg5[%c0_i32_118] : memref<2x!tpu.dma_semaphore, #tpu.memory_space<semaphore_mem>> -> memref<1x!tpu.dma_semaphore, #tpu.memory_space<semaphore_mem>>
      %224 = tpu.memref_squeeze %223 : memref<1x!tpu.dma_semaphore, #tpu.memory_space<semaphore_mem>> -> memref<!tpu.dma_semaphore, #tpu.memory_space<semaphore_mem>>
      tpu.enqueue_dma source(%220 : memref<128xf32, #tpu.memory_space<any>>) target(%222 : memref<128xf32, #tpu.memory_space<vmem>>) target_semaphore(%224 : memref<!tpu.dma_semaphore, #tpu.memory_space<semaphore_mem>>)
      %c3 = arith.constant 3 : index
      %225 = memref.load %arg1[%c3] : memref<32xi32, #tpu.memory_space<smem>>
      %c0_i32_121 = arith.constant 0 : i32
      %c3_i32_122 = arith.constant 3 : i32
      %c0_i32_123 = arith.constant 0 : i32
      %c0_i32_124 = arith.constant 0 : i32
      %226 = tpu.memref_slice %arg2[%225, %c0_i32_124] : memref<64x128xf32, #tpu.memory_space<any>> -> memref<1x128xf32, #tpu.memory_space<any>>
      %227 = tpu.memref_squeeze %226 : memref<1x128xf32, #tpu.memory_space<any>> -> memref<128xf32, #tpu.memory_space<any>>
      %c0_i32_125 = arith.constant 0 : i32
      %228 = tpu.memref_slice %arg4[%c0_i32_121, %c3_i32_122, %c0_i32_125] : memref<2x32x128xf32, #tpu.memory_space<vmem>> -> memref<1x1x128xf32, #tpu.memory_space<vmem>>
      %229 = tpu.memref_squeeze %228 : memref<1x1x128xf32, #tpu.memory_space<vmem>> -> memref<128xf32, #tpu.memory_space<vmem>>
      %230 = tpu.memref_slice %arg5[%c0_i32_123] : memref<2x!tpu.dma_semaphore, #tpu.memory_space<semaphore_mem>> -> memref<1x!tpu.dma_semaphore, #tpu.memory_space<semaphore_mem>>
      %231 = tpu.memref_squeeze %230 : memref<1x!tpu.dma_semaphore, #tpu.memory_space<semaphore_mem>> -> memref<!tpu.dma_semaphore, #tpu.memory_space<semaphore_mem>>
      tpu.enqueue_dma source(%227 : memref<128xf32, #tpu.memory_space<any>>) target(%229 : memref<128xf32, #tpu.memory_space<vmem>>) target_semaphore(%231 : memref<!tpu.dma_semaphore, #tpu.memory_space<semaphore_mem>>)
      %c4 = arith.constant 4 : index
      %232 = memref.load %arg1[%c4] : memref<32xi32, #tpu.memory_space<smem>>
      %c0_i32_126 = arith.constant 0 : i32
      %c4_i32_127 = arith.constant 4 : i32
      %c0_i32_128 = arith.constant 0 : i32
      %c0_i32_129 = arith.constant 0 : i32
      %233 = tpu.memref_slice %arg2[%232, %c0_i32_129] : memref<64x128xf32, #tpu.memory_space<any>> -> memref<1x128xf32, #tpu.memory_space<any>>
      %234 = tpu.memref_squeeze %233 : memref<1x128xf32, #tpu.memory_space<any>> -> memref<128xf32, #tpu.memory_space<any>>
      %c0_i32_130 = arith.constant 0 : i32
      %235 = tpu.memref_slice %arg4[%c0_i32_126, %c4_i32_127, %c0_i32_130] : memref<2x32x128xf32, #tpu.memory_space<vmem>> -> memref<1x1x128xf32, #tpu.memory_space<vmem>>
      %236 = tpu.memref_squeeze %235 : memref<1x1x128xf32, #tpu.memory_space<vmem>> -> memref<128xf32, #tpu.memory_space<vmem>>
      %237 = tpu.memref_slice %arg5[%c0_i32_128] : memref<2x!tpu.dma_semaphore, #tpu.memory_space<semaphore_mem>> -> memref<1x!tpu.dma_semaphore, #tpu.memory_space<semaphore_mem>>
      %238 = tpu.memref_squeeze %237 : memref<1x!tpu.dma_semaphore, #tpu.memory_space<semaphore_mem>> -> memref<!tpu.dma_semaphore, #tpu.memory_space<semaphore_mem>>
      tpu.enqueue_dma source(%234 : memref<128xf32, #tpu.memory_space<any>>) target(%236 : memref<128xf32, #tpu.memory_space<vmem>>) target_semaphore(%238 : memref<!tpu.dma_semaphore, #tpu.memory_space<semaphore_mem>>)
      %c5 = arith.constant 5 : index
      %239 = memref.load %arg1[%c5] : memref<32xi32, #tpu.memory_space<smem>>
      %c0_i32_131 = arith.constant 0 : i32
      %c5_i32_132 = arith.constant 5 : i32
      %c0_i32_133 = arith.constant 0 : i32
      %c0_i32_134 = arith.constant 0 : i32
      %240 = tpu.memref_slice %arg2[%239, %c0_i32_134] : memref<64x128xf32, #tpu.memory_space<any>> -> memref<1x128xf32, #tpu.memory_space<any>>
      %241 = tpu.memref_squeeze %240 : memref<1x128xf32, #tpu.memory_space<any>> -> memref<128xf32, #tpu.memory_space<any>>
      %c0_i32_135 = arith.constant 0 : i32
      %242 = tpu.memref_slice %arg4[%c0_i32_131, %c5_i32_132, %c0_i32_135] : memref<2x32x128xf32, #tpu.memory_space<vmem>> -> memref<1x1x128xf32, #tpu.memory_space<vmem>>
      %243 = tpu.memref_squeeze %242 : memref<1x1x128xf32, #tpu.memory_space<vmem>> -> memref<128xf32, #tpu.memory_space<vmem>>
      %244 = tpu.memref_slice %arg5[%c0_i32_133] : memref<2x!tpu.dma_semaphore, #tpu.memory_space<semaphore_mem>> -> memref<1x!tpu.dma_semaphore, #tpu.memory_space<semaphore_mem>>
      %245 = tpu.memref_squeeze %244 : memref<1x!tpu.dma_semaphore, #tpu.memory_space<semaphore_mem>> -> memref<!tpu.dma_semaphore, #tpu.memory_space<semaphore_mem>>
      tpu.enqueue_dma source(%241 : memref<128xf32, #tpu.memory_space<any>>) target(%243 : memref<128xf32, #tpu.memory_space<vmem>>) target_semaphore(%245 : memref<!tpu.dma_semaphore, #tpu.memory_space<semaphore_mem>>)
      %c6 = arith.constant 6 : index
      %246 = memref.load %arg1[%c6] : memref<32xi32, #tpu.memory_space<smem>>
      %c0_i32_136 = arith.constant 0 : i32
      %c6_i32_137 = arith.constant 6 : i32
      %c0_i32_138 = arith.constant 0 : i32
      %c0_i32_139 = arith.constant 0 : i32
      %247 = tpu.memref_slice %arg2[%246, %c0_i32_139] : memref<64x128xf32, #tpu.memory_space<any>> -> memref<1x128xf32, #tpu.memory_space<any>>
      %248 = tpu.memref_squeeze %247 : memref<1x128xf32, #tpu.memory_space<any>> -> memref<128xf32, #tpu.memory_space<any>>
      %c0_i32_140 = arith.constant 0 : i32
      %249 = tpu.memref_slice %arg4[%c0_i32_136, %c6_i32_137, %c0_i32_140] : memref<2x32x128xf32, #tpu.memory_space<vmem>> -> memref<1x1x128xf32, #tpu.memory_space<vmem>>
      %250 = tpu.memref_squeeze %249 : memref<1x1x128xf32, #tpu.memory_space<vmem>> -> memref<128xf32, #tpu.memory_space<vmem>>
      %251 = tpu.memref_slice %arg5[%c0_i32_138] : memref<2x!tpu.dma_semaphore, #tpu.memory_space<semaphore_mem>> -> memref<1x!tpu.dma_semaphore, #tpu.memory_space<semaphore_mem>>
      %252 = tpu.memref_squeeze %251 : memref<1x!tpu.dma_semaphore, #tpu.memory_space<semaphore_mem>> -> memref<!tpu.dma_semaphore, #tpu.memory_space<semaphore_mem>>
      tpu.enqueue_dma source(%248 : memref<128xf32, #tpu.memory_space<any>>) target(%250 : memref<128xf32, #tpu.memory_space<vmem>>) target_semaphore(%252 : memref<!tpu.dma_semaphore, #tpu.memory_space<semaphore_mem>>)
      %c7 = arith.constant 7 : index
      %253 = memref.load %arg1[%c7] : memref<32xi32, #tpu.memory_space<smem>>
      %c0_i32_141 = arith.constant 0 : i32
      %c7_i32_142 = arith.constant 7 : i32
      %c0_i32_143 = arith.constant 0 : i32
      %c0_i32_144 = arith.constant 0 : i32
      %254 = tpu.memref_slice %arg2[%253, %c0_i32_144] : memref<64x128xf32, #tpu.memory_space<any>> -> memref<1x128xf32, #tpu.memory_space<any>>
      %255 = tpu.memref_squeeze %254 : memref<1x128xf32, #tpu.memory_space<any>> -> memref<128xf32, #tpu.memory_space<any>>
      %c0_i32_145 = arith.constant 0 : i32
      %256 = tpu.memref_slice %arg4[%c0_i32_141, %c7_i32_142, %c0_i32_145] : memref<2x32x128xf32, #tpu.memory_space<vmem>> -> memref<1x1x128xf32, #tpu.memory_space<vmem>>
      %257 = tpu.memref_squeeze %256 : memref<1x1x128xf32, #tpu.memory_space<vmem>> -> memref<128xf32, #tpu.memory_space<vmem>>
      %258 = tpu.memref_slice %arg5[%c0_i32_143] : memref<2x!tpu.dma_semaphore, #tpu.memory_space<semaphore_mem>> -> memref<1x!tpu.dma_semaphore, #tpu.memory_space<semaphore_mem>>
      %259 = tpu.memref_squeeze %258 : memref<1x!tpu.dma_semaphore, #tpu.memory_space<semaphore_mem>> -> memref<!tpu.dma_semaphore, #tpu.memory_space<semaphore_mem>>
      tpu.enqueue_dma source(%255 : memref<128xf32, #tpu.memory_space<any>>) target(%257 : memref<128xf32, #tpu.memory_space<vmem>>) target_semaphore(%259 : memref<!tpu.dma_semaphore, #tpu.memory_space<semaphore_mem>>)
      %c8 = arith.constant 8 : index
      %260 = memref.load %arg1[%c8] : memref<32xi32, #tpu.memory_space<smem>>
      %c0_i32_146 = arith.constant 0 : i32
      %c8_i32_147 = arith.constant 8 : i32
      %c0_i32_148 = arith.constant 0 : i32
      %c0_i32_149 = arith.constant 0 : i32
      %261 = tpu.memref_slice %arg2[%260, %c0_i32_149] : memref<64x128xf32, #tpu.memory_space<any>> -> memref<1x128xf32, #tpu.memory_space<any>>
      %262 = tpu.memref_squeeze %261 : memref<1x128xf32, #tpu.memory_space<any>> -> memref<128xf32, #tpu.memory_space<any>>
      %c0_i32_150 = arith.constant 0 : i32
      %263 = tpu.memref_slice %arg4[%c0_i32_146, %c8_i32_147, %c0_i32_150] : memref<2x32x128xf32, #tpu.memory_space<vmem>> -> memref<1x1x128xf32, #tpu.memory_space<vmem>>
      %264 = tpu.memref_squeeze %263 : memref<1x1x128xf32, #tpu.memory_space<vmem>> -> memref<128xf32, #tpu.memory_space<vmem>>
      %265 = tpu.memref_slice %arg5[%c0_i32_148] : memref<2x!tpu.dma_semaphore, #tpu.memory_space<semaphore_mem>> -> memref<1x!tpu.dma_semaphore, #tpu.memory_space<semaphore_mem>>
      %266 = tpu.memref_squeeze %265 : memref<1x!tpu.dma_semaphore, #tpu.memory_space<semaphore_mem>> -> memref<!tpu.dma_semaphore, #tpu.memory_space<semaphore_mem>>
      tpu.enqueue_dma source(%262 : memref<128xf32, #tpu.memory_space<any>>) target(%264 : memref<128xf32, #tpu.memory_space<vmem>>) target_semaphore(%266 : memref<!tpu.dma_semaphore, #tpu.memory_space<semaphore_mem>>)
      %c9 = arith.constant 9 : index
      %267 = memref.load %arg1[%c9] : memref<32xi32, #tpu.memory_space<smem>>
      %c0_i32_151 = arith.constant 0 : i32
      %c9_i32_152 = arith.constant 9 : i32
      %c0_i32_153 = arith.constant 0 : i32
      %c0_i32_154 = arith.constant 0 : i32
      %268 = tpu.memref_slice %arg2[%267, %c0_i32_154] : memref<64x128xf32, #tpu.memory_space<any>> -> memref<1x128xf32, #tpu.memory_space<any>>
      %269 = tpu.memref_squeeze %268 : memref<1x128xf32, #tpu.memory_space<any>> -> memref<128xf32, #tpu.memory_space<any>>
      %c0_i32_155 = arith.constant 0 : i32
      %270 = tpu.memref_slice %arg4[%c0_i32_151, %c9_i32_152, %c0_i32_155] : memref<2x32x128xf32, #tpu.memory_space<vmem>> -> memref<1x1x128xf32, #tpu.memory_space<vmem>>
      %271 = tpu.memref_squeeze %270 : memref<1x1x128xf32, #tpu.memory_space<vmem>> -> memref<128xf32, #tpu.memory_space<vmem>>
      %272 = tpu.memref_slice %arg5[%c0_i32_153] : memref<2x!tpu.dma_semaphore, #tpu.memory_space<semaphore_mem>> -> memref<1x!tpu.dma_semaphore, #tpu.memory_space<semaphore_mem>>
      %273 = tpu.memref_squeeze %272 : memref<1x!tpu.dma_semaphore, #tpu.memory_space<semaphore_mem>> -> memref<!tpu.dma_semaphore, #tpu.memory_space<semaphore_mem>>
      tpu.enqueue_dma source(%269 : memref<128xf32, #tpu.memory_space<any>>) target(%271 : memref<128xf32, #tpu.memory_space<vmem>>) target_semaphore(%273 : memref<!tpu.dma_semaphore, #tpu.memory_space<semaphore_mem>>)
      %c10 = arith.constant 10 : index
      %274 = memref.load %arg1[%c10] : memref<32xi32, #tpu.memory_space<smem>>
      %c0_i32_156 = arith.constant 0 : i32
      %c10_i32_157 = arith.constant 10 : i32
      %c0_i32_158 = arith.constant 0 : i32
      %c0_i32_159 = arith.constant 0 : i32
      %275 = tpu.memref_slice %arg2[%274, %c0_i32_159] : memref<64x128xf32, #tpu.memory_space<any>> -> memref<1x128xf32, #tpu.memory_space<any>>
      %276 = tpu.memref_squeeze %275 : memref<1x128xf32, #tpu.memory_space<any>> -> memref<128xf32, #tpu.memory_space<any>>
      %c0_i32_160 = arith.constant 0 : i32
      %277 = tpu.memref_slice %arg4[%c0_i32_156, %c10_i32_157, %c0_i32_160] : memref<2x32x128xf32, #tpu.memory_space<vmem>> -> memref<1x1x128xf32, #tpu.memory_space<vmem>>
      %278 = tpu.memref_squeeze %277 : memref<1x1x128xf32, #tpu.memory_space<vmem>> -> memref<128xf32, #tpu.memory_space<vmem>>
      %279 = tpu.memref_slice %arg5[%c0_i32_158] : memref<2x!tpu.dma_semaphore, #tpu.memory_space<semaphore_mem>> -> memref<1x!tpu.dma_semaphore, #tpu.memory_space<semaphore_mem>>
      %280 = tpu.memref_squeeze %279 : memref<1x!tpu.dma_semaphore, #tpu.memory_space<semaphore_mem>> -> memref<!tpu.dma_semaphore, #tpu.memory_space<semaphore_mem>>
      tpu.enqueue_dma source(%276 : memref<128xf32, #tpu.memory_space<any>>) target(%278 : memref<128xf32, #tpu.memory_space<vmem>>) target_semaphore(%280 : memref<!tpu.dma_semaphore, #tpu.memory_space<semaphore_mem>>)
      %c11 = arith.constant 11 : index
      %281 = memref.load %arg1[%c11] : memref<32xi32, #tpu.memory_space<smem>>
      %c0_i32_161 = arith.constant 0 : i32
      %c11_i32_162 = arith.constant 11 : i32
      %c0_i32_163 = arith.constant 0 : i32
      %c0_i32_164 = arith.constant 0 : i32
      %282 = tpu.memref_slice %arg2[%281, %c0_i32_164] : memref<64x128xf32, #tpu.memory_space<any>> -> memref<1x128xf32, #tpu.memory_space<any>>
      %283 = tpu.memref_squeeze %282 : memref<1x128xf32, #tpu.memory_space<any>> -> memref<128xf32, #tpu.memory_space<any>>
      %c0_i32_165 = arith.constant 0 : i32
      %284 = tpu.memref_slice %arg4[%c0_i32_161, %c11_i32_162, %c0_i32_165] : memref<2x32x128xf32, #tpu.memory_space<vmem>> -> memref<1x1x128xf32, #tpu.memory_space<vmem>>
      %285 = tpu.memref_squeeze %284 : memref<1x1x128xf32, #tpu.memory_space<vmem>> -> memref<128xf32, #tpu.memory_space<vmem>>
      %286 = tpu.memref_slice %arg5[%c0_i32_163] : memref<2x!tpu.dma_semaphore, #tpu.memory_space<semaphore_mem>> -> memref<1x!tpu.dma_semaphore, #tpu.memory_space<semaphore_mem>>
      %287 = tpu.memref_squeeze %286 : memref<1x!tpu.dma_semaphore, #tpu.memory_space<semaphore_mem>> -> memref<!tpu.dma_semaphore, #tpu.memory_space<semaphore_mem>>
      tpu.enqueue_dma source(%283 : memref<128xf32, #tpu.memory_space<any>>) target(%285 : memref<128xf32, #tpu.memory_space<vmem>>) target_semaphore(%287 : memref<!tpu.dma_semaphore, #tpu.memory_space<semaphore_mem>>)
      %c12 = arith.constant 12 : index
      %288 = memref.load %arg1[%c12] : memref<32xi32, #tpu.memory_space<smem>>
      %c0_i32_166 = arith.constant 0 : i32
      %c12_i32_167 = arith.constant 12 : i32
      %c0_i32_168 = arith.constant 0 : i32
      %c0_i32_169 = arith.constant 0 : i32
      %289 = tpu.memref_slice %arg2[%288, %c0_i32_169] : memref<64x128xf32, #tpu.memory_space<any>> -> memref<1x128xf32, #tpu.memory_space<any>>
      %290 = tpu.memref_squeeze %289 : memref<1x128xf32, #tpu.memory_space<any>> -> memref<128xf32, #tpu.memory_space<any>>
      %c0_i32_170 = arith.constant 0 : i32
      %291 = tpu.memref_slice %arg4[%c0_i32_166, %c12_i32_167, %c0_i32_170] : memref<2x32x128xf32, #tpu.memory_space<vmem>> -> memref<1x1x128xf32, #tpu.memory_space<vmem>>
      %292 = tpu.memref_squeeze %291 : memref<1x1x128xf32, #tpu.memory_space<vmem>> -> memref<128xf32, #tpu.memory_space<vmem>>
      %293 = tpu.memref_slice %arg5[%c0_i32_168] : memref<2x!tpu.dma_semaphore, #tpu.memory_space<semaphore_mem>> -> memref<1x!tpu.dma_semaphore, #tpu.memory_space<semaphore_mem>>
      %294 = tpu.memref_squeeze %293 : memref<1x!tpu.dma_semaphore, #tpu.memory_space<semaphore_mem>> -> memref<!tpu.dma_semaphore, #tpu.memory_space<semaphore_mem>>
      tpu.enqueue_dma source(%290 : memref<128xf32, #tpu.memory_space<any>>) target(%292 : memref<128xf32, #tpu.memory_space<vmem>>) target_semaphore(%294 : memref<!tpu.dma_semaphore, #tpu.memory_space<semaphore_mem>>)
      %c13 = arith.constant 13 : index
      %295 = memref.load %arg1[%c13] : memref<32xi32, #tpu.memory_space<smem>>
      %c0_i32_171 = arith.constant 0 : i32
      %c13_i32_172 = arith.constant 13 : i32
      %c0_i32_173 = arith.constant 0 : i32
      %c0_i32_174 = arith.constant 0 : i32
      %296 = tpu.memref_slice %arg2[%295, %c0_i32_174] : memref<64x128xf32, #tpu.memory_space<any>> -> memref<1x128xf32, #tpu.memory_space<any>>
      %297 = tpu.memref_squeeze %296 : memref<1x128xf32, #tpu.memory_space<any>> -> memref<128xf32, #tpu.memory_space<any>>
      %c0_i32_175 = arith.constant 0 : i32
      %298 = tpu.memref_slice %arg4[%c0_i32_171, %c13_i32_172, %c0_i32_175] : memref<2x32x128xf32, #tpu.memory_space<vmem>> -> memref<1x1x128xf32, #tpu.memory_space<vmem>>
      %299 = tpu.memref_squeeze %298 : memref<1x1x128xf32, #tpu.memory_space<vmem>> -> memref<128xf32, #tpu.memory_space<vmem>>
      %300 = tpu.memref_slice %arg5[%c0_i32_173] : memref<2x!tpu.dma_semaphore, #tpu.memory_space<semaphore_mem>> -> memref<1x!tpu.dma_semaphore, #tpu.memory_space<semaphore_mem>>
      %301 = tpu.memref_squeeze %300 : memref<1x!tpu.dma_semaphore, #tpu.memory_space<semaphore_mem>> -> memref<!tpu.dma_semaphore, #tpu.memory_space<semaphore_mem>>
      tpu.enqueue_dma source(%297 : memref<128xf32, #tpu.memory_space<any>>) target(%299 : memref<128xf32, #tpu.memory_space<vmem>>) target_semaphore(%301 : memref<!tpu.dma_semaphore, #tpu.memory_space<semaphore_mem>>)
      %c14 = arith.constant 14 : index
      %302 = memref.load %arg1[%c14] : memref<32xi32, #tpu.memory_space<smem>>
      %c0_i32_176 = arith.constant 0 : i32
      %c14_i32_177 = arith.constant 14 : i32
      %c0_i32_178 = arith.constant 0 : i32
      %c0_i32_179 = arith.constant 0 : i32
      %303 = tpu.memref_slice %arg2[%302, %c0_i32_179] : memref<64x128xf32, #tpu.memory_space<any>> -> memref<1x128xf32, #tpu.memory_space<any>>
      %304 = tpu.memref_squeeze %303 : memref<1x128xf32, #tpu.memory_space<any>> -> memref<128xf32, #tpu.memory_space<any>>
      %c0_i32_180 = arith.constant 0 : i32
      %305 = tpu.memref_slice %arg4[%c0_i32_176, %c14_i32_177, %c0_i32_180] : memref<2x32x128xf32, #tpu.memory_space<vmem>> -> memref<1x1x128xf32, #tpu.memory_space<vmem>>
      %306 = tpu.memref_squeeze %305 : memref<1x1x128xf32, #tpu.memory_space<vmem>> -> memref<128xf32, #tpu.memory_space<vmem>>
      %307 = tpu.memref_slice %arg5[%c0_i32_178] : memref<2x!tpu.dma_semaphore, #tpu.memory_space<semaphore_mem>> -> memref<1x!tpu.dma_semaphore, #tpu.memory_space<semaphore_mem>>
      %308 = tpu.memref_squeeze %307 : memref<1x!tpu.dma_semaphore, #tpu.memory_space<semaphore_mem>> -> memref<!tpu.dma_semaphore, #tpu.memory_space<semaphore_mem>>
      tpu.enqueue_dma source(%304 : memref<128xf32, #tpu.memory_space<any>>) target(%306 : memref<128xf32, #tpu.memory_space<vmem>>) target_semaphore(%308 : memref<!tpu.dma_semaphore, #tpu.memory_space<semaphore_mem>>)
      %c15 = arith.constant 15 : index
      %309 = memref.load %arg1[%c15] : memref<32xi32, #tpu.memory_space<smem>>
      %c0_i32_181 = arith.constant 0 : i32
      %c15_i32_182 = arith.constant 15 : i32
      %c0_i32_183 = arith.constant 0 : i32
      %c0_i32_184 = arith.constant 0 : i32
      %310 = tpu.memref_slice %arg2[%309, %c0_i32_184] : memref<64x128xf32, #tpu.memory_space<any>> -> memref<1x128xf32, #tpu.memory_space<any>>
      %311 = tpu.memref_squeeze %310 : memref<1x128xf32, #tpu.memory_space<any>> -> memref<128xf32, #tpu.memory_space<any>>
      %c0_i32_185 = arith.constant 0 : i32
      %312 = tpu.memref_slice %arg4[%c0_i32_181, %c15_i32_182, %c0_i32_185] : memref<2x32x128xf32, #tpu.memory_space<vmem>> -> memref<1x1x128xf32, #tpu.memory_space<vmem>>
      %313 = tpu.memref_squeeze %312 : memref<1x1x128xf32, #tpu.memory_space<vmem>> -> memref<128xf32, #tpu.memory_space<vmem>>
      %314 = tpu.memref_slice %arg5[%c0_i32_183] : memref<2x!tpu.dma_semaphore, #tpu.memory_space<semaphore_mem>> -> memref<1x!tpu.dma_semaphore, #tpu.memory_space<semaphore_mem>>
      %315 = tpu.memref_squeeze %314 : memref<1x!tpu.dma_semaphore, #tpu.memory_space<semaphore_mem>> -> memref<!tpu.dma_semaphore, #tpu.memory_space<semaphore_mem>>
      tpu.enqueue_dma source(%311 : memref<128xf32, #tpu.memory_space<any>>) target(%313 : memref<128xf32, #tpu.memory_space<vmem>>) target_semaphore(%315 : memref<!tpu.dma_semaphore, #tpu.memory_space<semaphore_mem>>)
      %c16 = arith.constant 16 : index
      %316 = memref.load %arg1[%c16] : memref<32xi32, #tpu.memory_space<smem>>
      %c0_i32_186 = arith.constant 0 : i32
      %c16_i32_187 = arith.constant 16 : i32
      %c0_i32_188 = arith.constant 0 : i32
      %c0_i32_189 = arith.constant 0 : i32
      %317 = tpu.memref_slice %arg2[%316, %c0_i32_189] : memref<64x128xf32, #tpu.memory_space<any>> -> memref<1x128xf32, #tpu.memory_space<any>>
      %318 = tpu.memref_squeeze %317 : memref<1x128xf32, #tpu.memory_space<any>> -> memref<128xf32, #tpu.memory_space<any>>
      %c0_i32_190 = arith.constant 0 : i32
      %319 = tpu.memref_slice %arg4[%c0_i32_186, %c16_i32_187, %c0_i32_190] : memref<2x32x128xf32, #tpu.memory_space<vmem>> -> memref<1x1x128xf32, #tpu.memory_space<vmem>>
      %320 = tpu.memref_squeeze %319 : memref<1x1x128xf32, #tpu.memory_space<vmem>> -> memref<128xf32, #tpu.memory_space<vmem>>
      %321 = tpu.memref_slice %arg5[%c0_i32_188] : memref<2x!tpu.dma_semaphore, #tpu.memory_space<semaphore_mem>> -> memref<1x!tpu.dma_semaphore, #tpu.memory_space<semaphore_mem>>
      %322 = tpu.memref_squeeze %321 : memref<1x!tpu.dma_semaphore, #tpu.memory_space<semaphore_mem>> -> memref<!tpu.dma_semaphore, #tpu.memory_space<semaphore_mem>>
      tpu.enqueue_dma source(%318 : memref<128xf32, #tpu.memory_space<any>>) target(%320 : memref<128xf32, #tpu.memory_space<vmem>>) target_semaphore(%322 : memref<!tpu.dma_semaphore, #tpu.memory_space<semaphore_mem>>)
      %c17 = arith.constant 17 : index
      %323 = memref.load %arg1[%c17] : memref<32xi32, #tpu.memory_space<smem>>
      %c0_i32_191 = arith.constant 0 : i32
      %c17_i32_192 = arith.constant 17 : i32
      %c0_i32_193 = arith.constant 0 : i32
      %c0_i32_194 = arith.constant 0 : i32
      %324 = tpu.memref_slice %arg2[%323, %c0_i32_194] : memref<64x128xf32, #tpu.memory_space<any>> -> memref<1x128xf32, #tpu.memory_space<any>>
      %325 = tpu.memref_squeeze %324 : memref<1x128xf32, #tpu.memory_space<any>> -> memref<128xf32, #tpu.memory_space<any>>
      %c0_i32_195 = arith.constant 0 : i32
      %326 = tpu.memref_slice %arg4[%c0_i32_191, %c17_i32_192, %c0_i32_195] : memref<2x32x128xf32, #tpu.memory_space<vmem>> -> memref<1x1x128xf32, #tpu.memory_space<vmem>>
      %327 = tpu.memref_squeeze %326 : memref<1x1x128xf32, #tpu.memory_space<vmem>> -> memref<128xf32, #tpu.memory_space<vmem>>
      %328 = tpu.memref_slice %arg5[%c0_i32_193] : memref<2x!tpu.dma_semaphore, #tpu.memory_space<semaphore_mem>> -> memref<1x!tpu.dma_semaphore, #tpu.memory_space<semaphore_mem>>
      %329 = tpu.memref_squeeze %328 : memref<1x!tpu.dma_semaphore, #tpu.memory_space<semaphore_mem>> -> memref<!tpu.dma_semaphore, #tpu.memory_space<semaphore_mem>>
      tpu.enqueue_dma source(%325 : memref<128xf32, #tpu.memory_space<any>>) target(%327 : memref<128xf32, #tpu.memory_space<vmem>>) target_semaphore(%329 : memref<!tpu.dma_semaphore, #tpu.memory_space<semaphore_mem>>)
      %c18 = arith.constant 18 : index
      %330 = memref.load %arg1[%c18] : memref<32xi32, #tpu.memory_space<smem>>
      %c0_i32_196 = arith.constant 0 : i32
      %c18_i32_197 = arith.constant 18 : i32
      %c0_i32_198 = arith.constant 0 : i32
      %c0_i32_199 = arith.constant 0 : i32
      %331 = tpu.memref_slice %arg2[%330, %c0_i32_199] : memref<64x128xf32, #tpu.memory_space<any>> -> memref<1x128xf32, #tpu.memory_space<any>>
      %332 = tpu.memref_squeeze %331 : memref<1x128xf32, #tpu.memory_space<any>> -> memref<128xf32, #tpu.memory_space<any>>
      %c0_i32_200 = arith.constant 0 : i32
      %333 = tpu.memref_slice %arg4[%c0_i32_196, %c18_i32_197, %c0_i32_200] : memref<2x32x128xf32, #tpu.memory_space<vmem>> -> memref<1x1x128xf32, #tpu.memory_space<vmem>>
      %334 = tpu.memref_squeeze %333 : memref<1x1x128xf32, #tpu.memory_space<vmem>> -> memref<128xf32, #tpu.memory_space<vmem>>
      %335 = tpu.memref_slice %arg5[%c0_i32_198] : memref<2x!tpu.dma_semaphore, #tpu.memory_space<semaphore_mem>> -> memref<1x!tpu.dma_semaphore, #tpu.memory_space<semaphore_mem>>
      %336 = tpu.memref_squeeze %335 : memref<1x!tpu.dma_semaphore, #tpu.memory_space<semaphore_mem>> -> memref<!tpu.dma_semaphore, #tpu.memory_space<semaphore_mem>>
      tpu.enqueue_dma source(%332 : memref<128xf32, #tpu.memory_space<any>>) target(%334 : memref<128xf32, #tpu.memory_space<vmem>>) target_semaphore(%336 : memref<!tpu.dma_semaphore, #tpu.memory_space<semaphore_mem>>)
      %c19 = arith.constant 19 : index
      %337 = memref.load %arg1[%c19] : memref<32xi32, #tpu.memory_space<smem>>
      %c0_i32_201 = arith.constant 0 : i32
      %c19_i32_202 = arith.constant 19 : i32
      %c0_i32_203 = arith.constant 0 : i32
      %c0_i32_204 = arith.constant 0 : i32
      %338 = tpu.memref_slice %arg2[%337, %c0_i32_204] : memref<64x128xf32, #tpu.memory_space<any>> -> memref<1x128xf32, #tpu.memory_space<any>>
      %339 = tpu.memref_squeeze %338 : memref<1x128xf32, #tpu.memory_space<any>> -> memref<128xf32, #tpu.memory_space<any>>
      %c0_i32_205 = arith.constant 0 : i32
      %340 = tpu.memref_slice %arg4[%c0_i32_201, %c19_i32_202, %c0_i32_205] : memref<2x32x128xf32, #tpu.memory_space<vmem>> -> memref<1x1x128xf32, #tpu.memory_space<vmem>>
      %341 = tpu.memref_squeeze %340 : memref<1x1x128xf32, #tpu.memory_space<vmem>> -> memref<128xf32, #tpu.memory_space<vmem>>
      %342 = tpu.memref_slice %arg5[%c0_i32_203] : memref<2x!tpu.dma_semaphore, #tpu.memory_space<semaphore_mem>> -> memref<1x!tpu.dma_semaphore, #tpu.memory_space<semaphore_mem>>
      %343 = tpu.memref_squeeze %342 : memref<1x!tpu.dma_semaphore, #tpu.memory_space<semaphore_mem>> -> memref<!tpu.dma_semaphore, #tpu.memory_space<semaphore_mem>>
      tpu.enqueue_dma source(%339 : memref<128xf32, #tpu.memory_space<any>>) target(%341 : memref<128xf32, #tpu.memory_space<vmem>>) target_semaphore(%343 : memref<!tpu.dma_semaphore, #tpu.memory_space<semaphore_mem>>)
      %c20 = arith.constant 20 : index
      %344 = memref.load %arg1[%c20] : memref<32xi32, #tpu.memory_space<smem>>
      %c0_i32_206 = arith.constant 0 : i32
      %c20_i32_207 = arith.constant 20 : i32
      %c0_i32_208 = arith.constant 0 : i32
      %c0_i32_209 = arith.constant 0 : i32
      %345 = tpu.memref_slice %arg2[%344, %c0_i32_209] : memref<64x128xf32, #tpu.memory_space<any>> -> memref<1x128xf32, #tpu.memory_space<any>>
      %346 = tpu.memref_squeeze %345 : memref<1x128xf32, #tpu.memory_space<any>> -> memref<128xf32, #tpu.memory_space<any>>
      %c0_i32_210 = arith.constant 0 : i32
      %347 = tpu.memref_slice %arg4[%c0_i32_206, %c20_i32_207, %c0_i32_210] : memref<2x32x128xf32, #tpu.memory_space<vmem>> -> memref<1x1x128xf32, #tpu.memory_space<vmem>>
      %348 = tpu.memref_squeeze %347 : memref<1x1x128xf32, #tpu.memory_space<vmem>> -> memref<128xf32, #tpu.memory_space<vmem>>
      %349 = tpu.memref_slice %arg5[%c0_i32_208] : memref<2x!tpu.dma_semaphore, #tpu.memory_space<semaphore_mem>> -> memref<1x!tpu.dma_semaphore, #tpu.memory_space<semaphore_mem>>
      %350 = tpu.memref_squeeze %349 : memref<1x!tpu.dma_semaphore, #tpu.memory_space<semaphore_mem>> -> memref<!tpu.dma_semaphore, #tpu.memory_space<semaphore_mem>>
      tpu.enqueue_dma source(%346 : memref<128xf32, #tpu.memory_space<any>>) target(%348 : memref<128xf32, #tpu.memory_space<vmem>>) target_semaphore(%350 : memref<!tpu.dma_semaphore, #tpu.memory_space<semaphore_mem>>)
      %c21 = arith.constant 21 : index
      %351 = memref.load %arg1[%c21] : memref<32xi32, #tpu.memory_space<smem>>
      %c0_i32_211 = arith.constant 0 : i32
      %c21_i32_212 = arith.constant 21 : i32
      %c0_i32_213 = arith.constant 0 : i32
      %c0_i32_214 = arith.constant 0 : i32
      %352 = tpu.memref_slice %arg2[%351, %c0_i32_214] : memref<64x128xf32, #tpu.memory_space<any>> -> memref<1x128xf32, #tpu.memory_space<any>>
      %353 = tpu.memref_squeeze %352 : memref<1x128xf32, #tpu.memory_space<any>> -> memref<128xf32, #tpu.memory_space<any>>
      %c0_i32_215 = arith.constant 0 : i32
      %354 = tpu.memref_slice %arg4[%c0_i32_211, %c21_i32_212, %c0_i32_215] : memref<2x32x128xf32, #tpu.memory_space<vmem>> -> memref<1x1x128xf32, #tpu.memory_space<vmem>>
      %355 = tpu.memref_squeeze %354 : memref<1x1x128xf32, #tpu.memory_space<vmem>> -> memref<128xf32, #tpu.memory_space<vmem>>
      %356 = tpu.memref_slice %arg5[%c0_i32_213] : memref<2x!tpu.dma_semaphore, #tpu.memory_space<semaphore_mem>> -> memref<1x!tpu.dma_semaphore, #tpu.memory_space<semaphore_mem>>
      %357 = tpu.memref_squeeze %356 : memref<1x!tpu.dma_semaphore, #tpu.memory_space<semaphore_mem>> -> memref<!tpu.dma_semaphore, #tpu.memory_space<semaphore_mem>>
      tpu.enqueue_dma source(%353 : memref<128xf32, #tpu.memory_space<any>>) target(%355 : memref<128xf32, #tpu.memory_space<vmem>>) target_semaphore(%357 : memref<!tpu.dma_semaphore, #tpu.memory_space<semaphore_mem>>)
      %c22 = arith.constant 22 : index
      %358 = memref.load %arg1[%c22] : memref<32xi32, #tpu.memory_space<smem>>
      %c0_i32_216 = arith.constant 0 : i32
      %c22_i32_217 = arith.constant 22 : i32
      %c0_i32_218 = arith.constant 0 : i32
      %c0_i32_219 = arith.constant 0 : i32
      %359 = tpu.memref_slice %arg2[%358, %c0_i32_219] : memref<64x128xf32, #tpu.memory_space<any>> -> memref<1x128xf32, #tpu.memory_space<any>>
      %360 = tpu.memref_squeeze %359 : memref<1x128xf32, #tpu.memory_space<any>> -> memref<128xf32, #tpu.memory_space<any>>
      %c0_i32_220 = arith.constant 0 : i32
      %361 = tpu.memref_slice %arg4[%c0_i32_216, %c22_i32_217, %c0_i32_220] : memref<2x32x128xf32, #tpu.memory_space<vmem>> -> memref<1x1x128xf32, #tpu.memory_space<vmem>>
      %362 = tpu.memref_squeeze %361 : memref<1x1x128xf32, #tpu.memory_space<vmem>> -> memref<128xf32, #tpu.memory_space<vmem>>
      %363 = tpu.memref_slice %arg5[%c0_i32_218] : memref<2x!tpu.dma_semaphore, #tpu.memory_space<semaphore_mem>> -> memref<1x!tpu.dma_semaphore, #tpu.memory_space<semaphore_mem>>
      %364 = tpu.memref_squeeze %363 : memref<1x!tpu.dma_semaphore, #tpu.memory_space<semaphore_mem>> -> memref<!tpu.dma_semaphore, #tpu.memory_space<semaphore_mem>>
      tpu.enqueue_dma source(%360 : memref<128xf32, #tpu.memory_space<any>>) target(%362 : memref<128xf32, #tpu.memory_space<vmem>>) target_semaphore(%364 : memref<!tpu.dma_semaphore, #tpu.memory_space<semaphore_mem>>)
      %c23 = arith.constant 23 : index
      %365 = memref.load %arg1[%c23] : memref<32xi32, #tpu.memory_space<smem>>
      %c0_i32_221 = arith.constant 0 : i32
      %c23_i32_222 = arith.constant 23 : i32
      %c0_i32_223 = arith.constant 0 : i32
      %c0_i32_224 = arith.constant 0 : i32
      %366 = tpu.memref_slice %arg2[%365, %c0_i32_224] : memref<64x128xf32, #tpu.memory_space<any>> -> memref<1x128xf32, #tpu.memory_space<any>>
      %367 = tpu.memref_squeeze %366 : memref<1x128xf32, #tpu.memory_space<any>> -> memref<128xf32, #tpu.memory_space<any>>
      %c0_i32_225 = arith.constant 0 : i32
      %368 = tpu.memref_slice %arg4[%c0_i32_221, %c23_i32_222, %c0_i32_225] : memref<2x32x128xf32, #tpu.memory_space<vmem>> -> memref<1x1x128xf32, #tpu.memory_space<vmem>>
      %369 = tpu.memref_squeeze %368 : memref<1x1x128xf32, #tpu.memory_space<vmem>> -> memref<128xf32, #tpu.memory_space<vmem>>
      %370 = tpu.memref_slice %arg5[%c0_i32_223] : memref<2x!tpu.dma_semaphore, #tpu.memory_space<semaphore_mem>> -> memref<1x!tpu.dma_semaphore, #tpu.memory_space<semaphore_mem>>
      %371 = tpu.memref_squeeze %370 : memref<1x!tpu.dma_semaphore, #tpu.memory_space<semaphore_mem>> -> memref<!tpu.dma_semaphore, #tpu.memory_space<semaphore_mem>>
      tpu.enqueue_dma source(%367 : memref<128xf32, #tpu.memory_space<any>>) target(%369 : memref<128xf32, #tpu.memory_space<vmem>>) target_semaphore(%371 : memref<!tpu.dma_semaphore, #tpu.memory_space<semaphore_mem>>)
      %c24 = arith.constant 24 : index
      %372 = memref.load %arg1[%c24] : memref<32xi32, #tpu.memory_space<smem>>
      %c0_i32_226 = arith.constant 0 : i32
      %c24_i32_227 = arith.constant 24 : i32
      %c0_i32_228 = arith.constant 0 : i32
      %c0_i32_229 = arith.constant 0 : i32
      %373 = tpu.memref_slice %arg2[%372, %c0_i32_229] : memref<64x128xf32, #tpu.memory_space<any>> -> memref<1x128xf32, #tpu.memory_space<any>>
      %374 = tpu.memref_squeeze %373 : memref<1x128xf32, #tpu.memory_space<any>> -> memref<128xf32, #tpu.memory_space<any>>
      %c0_i32_230 = arith.constant 0 : i32
      %375 = tpu.memref_slice %arg4[%c0_i32_226, %c24_i32_227, %c0_i32_230] : memref<2x32x128xf32, #tpu.memory_space<vmem>> -> memref<1x1x128xf32, #tpu.memory_space<vmem>>
      %376 = tpu.memref_squeeze %375 : memref<1x1x128xf32, #tpu.memory_space<vmem>> -> memref<128xf32, #tpu.memory_space<vmem>>
      %377 = tpu.memref_slice %arg5[%c0_i32_228] : memref<2x!tpu.dma_semaphore, #tpu.memory_space<semaphore_mem>> -> memref<1x!tpu.dma_semaphore, #tpu.memory_space<semaphore_mem>>
      %378 = tpu.memref_squeeze %377 : memref<1x!tpu.dma_semaphore, #tpu.memory_space<semaphore_mem>> -> memref<!tpu.dma_semaphore, #tpu.memory_space<semaphore_mem>>
      tpu.enqueue_dma source(%374 : memref<128xf32, #tpu.memory_space<any>>) target(%376 : memref<128xf32, #tpu.memory_space<vmem>>) target_semaphore(%378 : memref<!tpu.dma_semaphore, #tpu.memory_space<semaphore_mem>>)
      %c25 = arith.constant 25 : index
      %379 = memref.load %arg1[%c25] : memref<32xi32, #tpu.memory_space<smem>>
      %c0_i32_231 = arith.constant 0 : i32
      %c25_i32_232 = arith.constant 25 : i32
      %c0_i32_233 = arith.constant 0 : i32
      %c0_i32_234 = arith.constant 0 : i32
      %380 = tpu.memref_slice %arg2[%379, %c0_i32_234] : memref<64x128xf32, #tpu.memory_space<any>> -> memref<1x128xf32, #tpu.memory_space<any>>
      %381 = tpu.memref_squeeze %380 : memref<1x128xf32, #tpu.memory_space<any>> -> memref<128xf32, #tpu.memory_space<any>>
      %c0_i32_235 = arith.constant 0 : i32
      %382 = tpu.memref_slice %arg4[%c0_i32_231, %c25_i32_232, %c0_i32_235] : memref<2x32x128xf32, #tpu.memory_space<vmem>> -> memref<1x1x128xf32, #tpu.memory_space<vmem>>
      %383 = tpu.memref_squeeze %382 : memref<1x1x128xf32, #tpu.memory_space<vmem>> -> memref<128xf32, #tpu.memory_space<vmem>>
      %384 = tpu.memref_slice %arg5[%c0_i32_233] : memref<2x!tpu.dma_semaphore, #tpu.memory_space<semaphore_mem>> -> memref<1x!tpu.dma_semaphore, #tpu.memory_space<semaphore_mem>>
      %385 = tpu.memref_squeeze %384 : memref<1x!tpu.dma_semaphore, #tpu.memory_space<semaphore_mem>> -> memref<!tpu.dma_semaphore, #tpu.memory_space<semaphore_mem>>
      tpu.enqueue_dma source(%381 : memref<128xf32, #tpu.memory_space<any>>) target(%383 : memref<128xf32, #tpu.memory_space<vmem>>) target_semaphore(%385 : memref<!tpu.dma_semaphore, #tpu.memory_space<semaphore_mem>>)
      %c26 = arith.constant 26 : index
      %386 = memref.load %arg1[%c26] : memref<32xi32, #tpu.memory_space<smem>>
      %c0_i32_236 = arith.constant 0 : i32
      %c26_i32_237 = arith.constant 26 : i32
      %c0_i32_238 = arith.constant 0 : i32
      %c0_i32_239 = arith.constant 0 : i32
      %387 = tpu.memref_slice %arg2[%386, %c0_i32_239] : memref<64x128xf32, #tpu.memory_space<any>> -> memref<1x128xf32, #tpu.memory_space<any>>
      %388 = tpu.memref_squeeze %387 : memref<1x128xf32, #tpu.memory_space<any>> -> memref<128xf32, #tpu.memory_space<any>>
      %c0_i32_240 = arith.constant 0 : i32
      %389 = tpu.memref_slice %arg4[%c0_i32_236, %c26_i32_237, %c0_i32_240] : memref<2x32x128xf32, #tpu.memory_space<vmem>> -> memref<1x1x128xf32, #tpu.memory_space<vmem>>
      %390 = tpu.memref_squeeze %389 : memref<1x1x128xf32, #tpu.memory_space<vmem>> -> memref<128xf32, #tpu.memory_space<vmem>>
      %391 = tpu.memref_slice %arg5[%c0_i32_238] : memref<2x!tpu.dma_semaphore, #tpu.memory_space<semaphore_mem>> -> memref<1x!tpu.dma_semaphore, #tpu.memory_space<semaphore_mem>>
      %392 = tpu.memref_squeeze %391 : memref<1x!tpu.dma_semaphore, #tpu.memory_space<semaphore_mem>> -> memref<!tpu.dma_semaphore, #tpu.memory_space<semaphore_mem>>
      tpu.enqueue_dma source(%388 : memref<128xf32, #tpu.memory_space<any>>) target(%390 : memref<128xf32, #tpu.memory_space<vmem>>) target_semaphore(%392 : memref<!tpu.dma_semaphore, #tpu.memory_space<semaphore_mem>>)
      %c27 = arith.constant 27 : index
      %393 = memref.load %arg1[%c27] : memref<32xi32, #tpu.memory_space<smem>>
      %c0_i32_241 = arith.constant 0 : i32
      %c27_i32_242 = arith.constant 27 : i32
      %c0_i32_243 = arith.constant 0 : i32
      %c0_i32_244 = arith.constant 0 : i32
      %394 = tpu.memref_slice %arg2[%393, %c0_i32_244] : memref<64x128xf32, #tpu.memory_space<any>> -> memref<1x128xf32, #tpu.memory_space<any>>
      %395 = tpu.memref_squeeze %394 : memref<1x128xf32, #tpu.memory_space<any>> -> memref<128xf32, #tpu.memory_space<any>>
      %c0_i32_245 = arith.constant 0 : i32
      %396 = tpu.memref_slice %arg4[%c0_i32_241, %c27_i32_242, %c0_i32_245] : memref<2x32x128xf32, #tpu.memory_space<vmem>> -> memref<1x1x128xf32, #tpu.memory_space<vmem>>
      %397 = tpu.memref_squeeze %396 : memref<1x1x128xf32, #tpu.memory_space<vmem>> -> memref<128xf32, #tpu.memory_space<vmem>>
      %398 = tpu.memref_slice %arg5[%c0_i32_243] : memref<2x!tpu.dma_semaphore, #tpu.memory_space<semaphore_mem>> -> memref<1x!tpu.dma_semaphore, #tpu.memory_space<semaphore_mem>>
      %399 = tpu.memref_squeeze %398 : memref<1x!tpu.dma_semaphore, #tpu.memory_space<semaphore_mem>> -> memref<!tpu.dma_semaphore, #tpu.memory_space<semaphore_mem>>
      tpu.enqueue_dma source(%395 : memref<128xf32, #tpu.memory_space<any>>) target(%397 : memref<128xf32, #tpu.memory_space<vmem>>) target_semaphore(%399 : memref<!tpu.dma_semaphore, #tpu.memory_space<semaphore_mem>>)
      %c28 = arith.constant 28 : index
      %400 = memref.load %arg1[%c28] : memref<32xi32, #tpu.memory_space<smem>>
      %c0_i32_246 = arith.constant 0 : i32
      %c28_i32_247 = arith.constant 28 : i32
      %c0_i32_248 = arith.constant 0 : i32
      %c0_i32_249 = arith.constant 0 : i32
      %401 = tpu.memref_slice %arg2[%400, %c0_i32_249] : memref<64x128xf32, #tpu.memory_space<any>> -> memref<1x128xf32, #tpu.memory_space<any>>
      %402 = tpu.memref_squeeze %401 : memref<1x128xf32, #tpu.memory_space<any>> -> memref<128xf32, #tpu.memory_space<any>>
      %c0_i32_250 = arith.constant 0 : i32
      %403 = tpu.memref_slice %arg4[%c0_i32_246, %c28_i32_247, %c0_i32_250] : memref<2x32x128xf32, #tpu.memory_space<vmem>> -> memref<1x1x128xf32, #tpu.memory_space<vmem>>
      %404 = tpu.memref_squeeze %403 : memref<1x1x128xf32, #tpu.memory_space<vmem>> -> memref<128xf32, #tpu.memory_space<vmem>>
      %405 = tpu.memref_slice %arg5[%c0_i32_248] : memref<2x!tpu.dma_semaphore, #tpu.memory_space<semaphore_mem>> -> memref<1x!tpu.dma_semaphore, #tpu.memory_space<semaphore_mem>>
      %406 = tpu.memref_squeeze %405 : memref<1x!tpu.dma_semaphore, #tpu.memory_space<semaphore_mem>> -> memref<!tpu.dma_semaphore, #tpu.memory_space<semaphore_mem>>
      tpu.enqueue_dma source(%402 : memref<128xf32, #tpu.memory_space<any>>) target(%404 : memref<128xf32, #tpu.memory_space<vmem>>) target_semaphore(%406 : memref<!tpu.dma_semaphore, #tpu.memory_space<semaphore_mem>>)
      %c29 = arith.constant 29 : index
      %407 = memref.load %arg1[%c29] : memref<32xi32, #tpu.memory_space<smem>>
      %c0_i32_251 = arith.constant 0 : i32
      %c29_i32_252 = arith.constant 29 : i32
      %c0_i32_253 = arith.constant 0 : i32
      %c0_i32_254 = arith.constant 0 : i32
      %408 = tpu.memref_slice %arg2[%407, %c0_i32_254] : memref<64x128xf32, #tpu.memory_space<any>> -> memref<1x128xf32, #tpu.memory_space<any>>
      %409 = tpu.memref_squeeze %408 : memref<1x128xf32, #tpu.memory_space<any>> -> memref<128xf32, #tpu.memory_space<any>>
      %c0_i32_255 = arith.constant 0 : i32
      %410 = tpu.memref_slice %arg4[%c0_i32_251, %c29_i32_252, %c0_i32_255] : memref<2x32x128xf32, #tpu.memory_space<vmem>> -> memref<1x1x128xf32, #tpu.memory_space<vmem>>
      %411 = tpu.memref_squeeze %410 : memref<1x1x128xf32, #tpu.memory_space<vmem>> -> memref<128xf32, #tpu.memory_space<vmem>>
      %412 = tpu.memref_slice %arg5[%c0_i32_253] : memref<2x!tpu.dma_semaphore, #tpu.memory_space<semaphore_mem>> -> memref<1x!tpu.dma_semaphore, #tpu.memory_space<semaphore_mem>>
      %413 = tpu.memref_squeeze %412 : memref<1x!tpu.dma_semaphore, #tpu.memory_space<semaphore_mem>> -> memref<!tpu.dma_semaphore, #tpu.memory_space<semaphore_mem>>
      tpu.enqueue_dma source(%409 : memref<128xf32, #tpu.memory_space<any>>) target(%411 : memref<128xf32, #tpu.memory_space<vmem>>) target_semaphore(%413 : memref<!tpu.dma_semaphore, #tpu.memory_space<semaphore_mem>>)
      %c30 = arith.constant 30 : index
      %414 = memref.load %arg1[%c30] : memref<32xi32, #tpu.memory_space<smem>>
      %c0_i32_256 = arith.constant 0 : i32
      %c30_i32_257 = arith.constant 30 : i32
      %c0_i32_258 = arith.constant 0 : i32
      %c0_i32_259 = arith.constant 0 : i32
      %415 = tpu.memref_slice %arg2[%414, %c0_i32_259] : memref<64x128xf32, #tpu.memory_space<any>> -> memref<1x128xf32, #tpu.memory_space<any>>
      %416 = tpu.memref_squeeze %415 : memref<1x128xf32, #tpu.memory_space<any>> -> memref<128xf32, #tpu.memory_space<any>>
      %c0_i32_260 = arith.constant 0 : i32
      %417 = tpu.memref_slice %arg4[%c0_i32_256, %c30_i32_257, %c0_i32_260] : memref<2x32x128xf32, #tpu.memory_space<vmem>> -> memref<1x1x128xf32, #tpu.memory_space<vmem>>
      %418 = tpu.memref_squeeze %417 : memref<1x1x128xf32, #tpu.memory_space<vmem>> -> memref<128xf32, #tpu.memory_space<vmem>>
      %419 = tpu.memref_slice %arg5[%c0_i32_258] : memref<2x!tpu.dma_semaphore, #tpu.memory_space<semaphore_mem>> -> memref<1x!tpu.dma_semaphore, #tpu.memory_space<semaphore_mem>>
      %420 = tpu.memref_squeeze %419 : memref<1x!tpu.dma_semaphore, #tpu.memory_space<semaphore_mem>> -> memref<!tpu.dma_semaphore, #tpu.memory_space<semaphore_mem>>
      tpu.enqueue_dma source(%416 : memref<128xf32, #tpu.memory_space<any>>) target(%418 : memref<128xf32, #tpu.memory_space<vmem>>) target_semaphore(%420 : memref<!tpu.dma_semaphore, #tpu.memory_space<semaphore_mem>>)
      %c31 = arith.constant 31 : index
      %421 = memref.load %arg1[%c31] : memref<32xi32, #tpu.memory_space<smem>>
      %c0_i32_261 = arith.constant 0 : i32
      %c31_i32_262 = arith.constant 31 : i32
      %c0_i32_263 = arith.constant 0 : i32
      %c0_i32_264 = arith.constant 0 : i32
      %422 = tpu.memref_slice %arg2[%421, %c0_i32_264] : memref<64x128xf32, #tpu.memory_space<any>> -> memref<1x128xf32, #tpu.memory_space<any>>
      %423 = tpu.memref_squeeze %422 : memref<1x128xf32, #tpu.memory_space<any>> -> memref<128xf32, #tpu.memory_space<any>>
      %c0_i32_265 = arith.constant 0 : i32
      %424 = tpu.memref_slice %arg4[%c0_i32_261, %c31_i32_262, %c0_i32_265] : memref<2x32x128xf32, #tpu.memory_space<vmem>> -> memref<1x1x128xf32, #tpu.memory_space<vmem>>
      %425 = tpu.memref_squeeze %424 : memref<1x1x128xf32, #tpu.memory_space<vmem>> -> memref<128xf32, #tpu.memory_space<vmem>>
      %426 = tpu.memref_slice %arg5[%c0_i32_263] : memref<2x!tpu.dma_semaphore, #tpu.memory_space<semaphore_mem>> -> memref<1x!tpu.dma_semaphore, #tpu.memory_space<semaphore_mem>>
      %427 = tpu.memref_squeeze %426 : memref<1x!tpu.dma_semaphore, #tpu.memory_space<semaphore_mem>> -> memref<!tpu.dma_semaphore, #tpu.memory_space<semaphore_mem>>
      tpu.enqueue_dma source(%423 : memref<128xf32, #tpu.memory_space<any>>) target(%425 : memref<128xf32, #tpu.memory_space<vmem>>) target_semaphore(%427 : memref<!tpu.dma_semaphore, #tpu.memory_space<semaphore_mem>>)
    } else {
    }
    %c1_i32_1 = arith.constant 1 : i32
    %4 = arith.addi %arg0, %c1_i32_1 : i32
    %c1_i32_2 = arith.constant 1 : i32
    %5 = arith.cmpi slt, %4, %c1_i32_2 : i32
    %6 = arith.extui %5 : i1 to i32
    %c0_i32_3 = arith.constant 0 : i32
    %7 = arith.cmpi ne, %6, %c0_i32_3 : i32
    scf.if %7 {
      %c1_i32_105 = arith.constant 1 : i32
      %204 = arith.addi %arg0, %c1_i32_105 : i32
      %c1_i32_106 = arith.constant 1 : i32
      %205 = arith.subi %c1_i32_106, %0 : i32
      %c32_i32 = arith.constant 32 : i32
      %206 = arith.muli %204, %c32_i32 : i32
      %c0_i32_107 = arith.constant 0 : i32
      %207 = arith.addi %206, %c0_i32_107 : i32
      %208 = arith.index_cast %207 : i32 to index
      %209 = memref.load %arg1[%208] : memref<32xi32, #tpu.memory_space<smem>>
      %c0_i32_108 = arith.constant 0 : i32
      %c0_i32_109 = arith.constant 0 : i32
      %210 = tpu.memref_slice %arg2[%209, %c0_i32_109] : memref<64x128xf32, #tpu.memory_space<any>> -> memref<1x128xf32, #tpu.memory_space<any>>
      %211 = tpu.memref_squeeze %210 : memref<1x128xf32, #tpu.memory_space<any>> -> memref<128xf32, #tpu.memory_space<any>>
      %c0_i32_110 = arith.constant 0 : i32
      %212 = tpu.memref_slice %arg4[%205, %c0_i32_108, %c0_i32_110] : memref<2x32x128xf32, #tpu.memory_space<vmem>> -> memref<1x1x128xf32, #tpu.memory_space<vmem>>
      %213 = tpu.memref_squeeze %212 : memref<1x1x128xf32, #tpu.memory_space<vmem>> -> memref<128xf32, #tpu.memory_space<vmem>>
      %214 = tpu.memref_slice %arg5[%205] : memref<2x!tpu.dma_semaphore, #tpu.memory_space<semaphore_mem>> -> memref<1x!tpu.dma_semaphore, #tpu.memory_space<semaphore_mem>>
      %215 = tpu.memref_squeeze %214 : memref<1x!tpu.dma_semaphore, #tpu.memory_space<semaphore_mem>> -> memref<!tpu.dma_semaphore, #tpu.memory_space<semaphore_mem>>
      tpu.enqueue_dma source(%211 : memref<128xf32, #tpu.memory_space<any>>) target(%213 : memref<128xf32, #tpu.memory_space<vmem>>) target_semaphore(%215 : memref<!tpu.dma_semaphore, #tpu.memory_space<semaphore_mem>>)
      %c1_i32_111 = arith.constant 1 : i32
      %216 = arith.addi %206, %c1_i32_111 : i32
      %217 = arith.index_cast %216 : i32 to index
      %218 = memref.load %arg1[%217] : memref<32xi32, #tpu.memory_space<smem>>
      %c1_i32_112 = arith.constant 1 : i32
      %c0_i32_113 = arith.constant 0 : i32
      %219 = tpu.memref_slice %arg2[%218, %c0_i32_113] : memref<64x128xf32, #tpu.memory_space<any>> -> memref<1x128xf32, #tpu.memory_space<any>>
      %220 = tpu.memref_squeeze %219 : memref<1x128xf32, #tpu.memory_space<any>> -> memref<128xf32, #tpu.memory_space<any>>
      %c0_i32_114 = arith.constant 0 : i32
      %221 = tpu.memref_slice %arg4[%205, %c1_i32_112, %c0_i32_114] : memref<2x32x128xf32, #tpu.memory_space<vmem>> -> memref<1x1x128xf32, #tpu.memory_space<vmem>>
      %222 = tpu.memref_squeeze %221 : memref<1x1x128xf32, #tpu.memory_space<vmem>> -> memref<128xf32, #tpu.memory_space<vmem>>
      %223 = tpu.memref_slice %arg5[%205] : memref<2x!tpu.dma_semaphore, #tpu.memory_space<semaphore_mem>> -> memref<1x!tpu.dma_semaphore, #tpu.memory_space<semaphore_mem>>
      %224 = tpu.memref_squeeze %223 : memref<1x!tpu.dma_semaphore, #tpu.memory_space<semaphore_mem>> -> memref<!tpu.dma_semaphore, #tpu.memory_space<semaphore_mem>>
      tpu.enqueue_dma source(%220 : memref<128xf32, #tpu.memory_space<any>>) target(%222 : memref<128xf32, #tpu.memory_space<vmem>>) target_semaphore(%224 : memref<!tpu.dma_semaphore, #tpu.memory_space<semaphore_mem>>)
      %c2_i32_115 = arith.constant 2 : i32
      %225 = arith.addi %206, %c2_i32_115 : i32
      %226 = arith.index_cast %225 : i32 to index
      %227 = memref.load %arg1[%226] : memref<32xi32, #tpu.memory_space<smem>>
      %c2_i32_116 = arith.constant 2 : i32
      %c0_i32_117 = arith.constant 0 : i32
      %228 = tpu.memref_slice %arg2[%227, %c0_i32_117] : memref<64x128xf32, #tpu.memory_space<any>> -> memref<1x128xf32, #tpu.memory_space<any>>
      %229 = tpu.memref_squeeze %228 : memref<1x128xf32, #tpu.memory_space<any>> -> memref<128xf32, #tpu.memory_space<any>>
      %c0_i32_118 = arith.constant 0 : i32
      %230 = tpu.memref_slice %arg4[%205, %c2_i32_116, %c0_i32_118] : memref<2x32x128xf32, #tpu.memory_space<vmem>> -> memref<1x1x128xf32, #tpu.memory_space<vmem>>
      %231 = tpu.memref_squeeze %230 : memref<1x1x128xf32, #tpu.memory_space<vmem>> -> memref<128xf32, #tpu.memory_space<vmem>>
      %232 = tpu.memref_slice %arg5[%205] : memref<2x!tpu.dma_semaphore, #tpu.memory_space<semaphore_mem>> -> memref<1x!tpu.dma_semaphore, #tpu.memory_space<semaphore_mem>>
      %233 = tpu.memref_squeeze %232 : memref<1x!tpu.dma_semaphore, #tpu.memory_space<semaphore_mem>> -> memref<!tpu.dma_semaphore, #tpu.memory_space<semaphore_mem>>
      tpu.enqueue_dma source(%229 : memref<128xf32, #tpu.memory_space<any>>) target(%231 : memref<128xf32, #tpu.memory_space<vmem>>) target_semaphore(%233 : memref<!tpu.dma_semaphore, #tpu.memory_space<semaphore_mem>>)
      %c3_i32_119 = arith.constant 3 : i32
      %234 = arith.addi %206, %c3_i32_119 : i32
      %235 = arith.index_cast %234 : i32 to index
      %236 = memref.load %arg1[%235] : memref<32xi32, #tpu.memory_space<smem>>
      %c3_i32_120 = arith.constant 3 : i32
      %c0_i32_121 = arith.constant 0 : i32
      %237 = tpu.memref_slice %arg2[%236, %c0_i32_121] : memref<64x128xf32, #tpu.memory_space<any>> -> memref<1x128xf32, #tpu.memory_space<any>>
      %238 = tpu.memref_squeeze %237 : memref<1x128xf32, #tpu.memory_space<any>> -> memref<128xf32, #tpu.memory_space<any>>
      %c0_i32_122 = arith.constant 0 : i32
      %239 = tpu.memref_slice %arg4[%205, %c3_i32_120, %c0_i32_122] : memref<2x32x128xf32, #tpu.memory_space<vmem>> -> memref<1x1x128xf32, #tpu.memory_space<vmem>>
      %240 = tpu.memref_squeeze %239 : memref<1x1x128xf32, #tpu.memory_space<vmem>> -> memref<128xf32, #tpu.memory_space<vmem>>
      %241 = tpu.memref_slice %arg5[%205] : memref<2x!tpu.dma_semaphore, #tpu.memory_space<semaphore_mem>> -> memref<1x!tpu.dma_semaphore, #tpu.memory_space<semaphore_mem>>
      %242 = tpu.memref_squeeze %241 : memref<1x!tpu.dma_semaphore, #tpu.memory_space<semaphore_mem>> -> memref<!tpu.dma_semaphore, #tpu.memory_space<semaphore_mem>>
      tpu.enqueue_dma source(%238 : memref<128xf32, #tpu.memory_space<any>>) target(%240 : memref<128xf32, #tpu.memory_space<vmem>>) target_semaphore(%242 : memref<!tpu.dma_semaphore, #tpu.memory_space<semaphore_mem>>)
      %c4_i32_123 = arith.constant 4 : i32
      %243 = arith.addi %206, %c4_i32_123 : i32
      %244 = arith.index_cast %243 : i32 to index
      %245 = memref.load %arg1[%244] : memref<32xi32, #tpu.memory_space<smem>>
      %c4_i32_124 = arith.constant 4 : i32
      %c0_i32_125 = arith.constant 0 : i32
      %246 = tpu.memref_slice %arg2[%245, %c0_i32_125] : memref<64x128xf32, #tpu.memory_space<any>> -> memref<1x128xf32, #tpu.memory_space<any>>
      %247 = tpu.memref_squeeze %246 : memref<1x128xf32, #tpu.memory_space<any>> -> memref<128xf32, #tpu.memory_space<any>>
      %c0_i32_126 = arith.constant 0 : i32
      %248 = tpu.memref_slice %arg4[%205, %c4_i32_124, %c0_i32_126] : memref<2x32x128xf32, #tpu.memory_space<vmem>> -> memref<1x1x128xf32, #tpu.memory_space<vmem>>
      %249 = tpu.memref_squeeze %248 : memref<1x1x128xf32, #tpu.memory_space<vmem>> -> memref<128xf32, #tpu.memory_space<vmem>>
      %250 = tpu.memref_slice %arg5[%205] : memref<2x!tpu.dma_semaphore, #tpu.memory_space<semaphore_mem>> -> memref<1x!tpu.dma_semaphore, #tpu.memory_space<semaphore_mem>>
      %251 = tpu.memref_squeeze %250 : memref<1x!tpu.dma_semaphore, #tpu.memory_space<semaphore_mem>> -> memref<!tpu.dma_semaphore, #tpu.memory_space<semaphore_mem>>
      tpu.enqueue_dma source(%247 : memref<128xf32, #tpu.memory_space<any>>) target(%249 : memref<128xf32, #tpu.memory_space<vmem>>) target_semaphore(%251 : memref<!tpu.dma_semaphore, #tpu.memory_space<semaphore_mem>>)
      %c5_i32_127 = arith.constant 5 : i32
      %252 = arith.addi %206, %c5_i32_127 : i32
      %253 = arith.index_cast %252 : i32 to index
      %254 = memref.load %arg1[%253] : memref<32xi32, #tpu.memory_space<smem>>
      %c5_i32_128 = arith.constant 5 : i32
      %c0_i32_129 = arith.constant 0 : i32
      %255 = tpu.memref_slice %arg2[%254, %c0_i32_129] : memref<64x128xf32, #tpu.memory_space<any>> -> memref<1x128xf32, #tpu.memory_space<any>>
      %256 = tpu.memref_squeeze %255 : memref<1x128xf32, #tpu.memory_space<any>> -> memref<128xf32, #tpu.memory_space<any>>
      %c0_i32_130 = arith.constant 0 : i32
      %257 = tpu.memref_slice %arg4[%205, %c5_i32_128, %c0_i32_130] : memref<2x32x128xf32, #tpu.memory_space<vmem>> -> memref<1x1x128xf32, #tpu.memory_space<vmem>>
      %258 = tpu.memref_squeeze %257 : memref<1x1x128xf32, #tpu.memory_space<vmem>> -> memref<128xf32, #tpu.memory_space<vmem>>
      %259 = tpu.memref_slice %arg5[%205] : memref<2x!tpu.dma_semaphore, #tpu.memory_space<semaphore_mem>> -> memref<1x!tpu.dma_semaphore, #tpu.memory_space<semaphore_mem>>
      %260 = tpu.memref_squeeze %259 : memref<1x!tpu.dma_semaphore, #tpu.memory_space<semaphore_mem>> -> memref<!tpu.dma_semaphore, #tpu.memory_space<semaphore_mem>>
      tpu.enqueue_dma source(%256 : memref<128xf32, #tpu.memory_space<any>>) target(%258 : memref<128xf32, #tpu.memory_space<vmem>>) target_semaphore(%260 : memref<!tpu.dma_semaphore, #tpu.memory_space<semaphore_mem>>)
      %c6_i32_131 = arith.constant 6 : i32
      %261 = arith.addi %206, %c6_i32_131 : i32
      %262 = arith.index_cast %261 : i32 to index
      %263 = memref.load %arg1[%262] : memref<32xi32, #tpu.memory_space<smem>>
      %c6_i32_132 = arith.constant 6 : i32
      %c0_i32_133 = arith.constant 0 : i32
      %264 = tpu.memref_slice %arg2[%263, %c0_i32_133] : memref<64x128xf32, #tpu.memory_space<any>> -> memref<1x128xf32, #tpu.memory_space<any>>
      %265 = tpu.memref_squeeze %264 : memref<1x128xf32, #tpu.memory_space<any>> -> memref<128xf32, #tpu.memory_space<any>>
      %c0_i32_134 = arith.constant 0 : i32
      %266 = tpu.memref_slice %arg4[%205, %c6_i32_132, %c0_i32_134] : memref<2x32x128xf32, #tpu.memory_space<vmem>> -> memref<1x1x128xf32, #tpu.memory_space<vmem>>
      %267 = tpu.memref_squeeze %266 : memref<1x1x128xf32, #tpu.memory_space<vmem>> -> memref<128xf32, #tpu.memory_space<vmem>>
      %268 = tpu.memref_slice %arg5[%205] : memref<2x!tpu.dma_semaphore, #tpu.memory_space<semaphore_mem>> -> memref<1x!tpu.dma_semaphore, #tpu.memory_space<semaphore_mem>>
      %269 = tpu.memref_squeeze %268 : memref<1x!tpu.dma_semaphore, #tpu.memory_space<semaphore_mem>> -> memref<!tpu.dma_semaphore, #tpu.memory_space<semaphore_mem>>
      tpu.enqueue_dma source(%265 : memref<128xf32, #tpu.memory_space<any>>) target(%267 : memref<128xf32, #tpu.memory_space<vmem>>) target_semaphore(%269 : memref<!tpu.dma_semaphore, #tpu.memory_space<semaphore_mem>>)
      %c7_i32_135 = arith.constant 7 : i32
      %270 = arith.addi %206, %c7_i32_135 : i32
      %271 = arith.index_cast %270 : i32 to index
      %272 = memref.load %arg1[%271] : memref<32xi32, #tpu.memory_space<smem>>
      %c7_i32_136 = arith.constant 7 : i32
      %c0_i32_137 = arith.constant 0 : i32
      %273 = tpu.memref_slice %arg2[%272, %c0_i32_137] : memref<64x128xf32, #tpu.memory_space<any>> -> memref<1x128xf32, #tpu.memory_space<any>>
      %274 = tpu.memref_squeeze %273 : memref<1x128xf32, #tpu.memory_space<any>> -> memref<128xf32, #tpu.memory_space<any>>
      %c0_i32_138 = arith.constant 0 : i32
      %275 = tpu.memref_slice %arg4[%205, %c7_i32_136, %c0_i32_138] : memref<2x32x128xf32, #tpu.memory_space<vmem>> -> memref<1x1x128xf32, #tpu.memory_space<vmem>>
      %276 = tpu.memref_squeeze %275 : memref<1x1x128xf32, #tpu.memory_space<vmem>> -> memref<128xf32, #tpu.memory_space<vmem>>
      %277 = tpu.memref_slice %arg5[%205] : memref<2x!tpu.dma_semaphore, #tpu.memory_space<semaphore_mem>> -> memref<1x!tpu.dma_semaphore, #tpu.memory_space<semaphore_mem>>
      %278 = tpu.memref_squeeze %277 : memref<1x!tpu.dma_semaphore, #tpu.memory_space<semaphore_mem>> -> memref<!tpu.dma_semaphore, #tpu.memory_space<semaphore_mem>>
      tpu.enqueue_dma source(%274 : memref<128xf32, #tpu.memory_space<any>>) target(%276 : memref<128xf32, #tpu.memory_space<vmem>>) target_semaphore(%278 : memref<!tpu.dma_semaphore, #tpu.memory_space<semaphore_mem>>)
      %c8_i32_139 = arith.constant 8 : i32
      %279 = arith.addi %206, %c8_i32_139 : i32
      %280 = arith.index_cast %279 : i32 to index
      %281 = memref.load %arg1[%280] : memref<32xi32, #tpu.memory_space<smem>>
      %c8_i32_140 = arith.constant 8 : i32
      %c0_i32_141 = arith.constant 0 : i32
      %282 = tpu.memref_slice %arg2[%281, %c0_i32_141] : memref<64x128xf32, #tpu.memory_space<any>> -> memref<1x128xf32, #tpu.memory_space<any>>
      %283 = tpu.memref_squeeze %282 : memref<1x128xf32, #tpu.memory_space<any>> -> memref<128xf32, #tpu.memory_space<any>>
      %c0_i32_142 = arith.constant 0 : i32
      %284 = tpu.memref_slice %arg4[%205, %c8_i32_140, %c0_i32_142] : memref<2x32x128xf32, #tpu.memory_space<vmem>> -> memref<1x1x128xf32, #tpu.memory_space<vmem>>
      %285 = tpu.memref_squeeze %284 : memref<1x1x128xf32, #tpu.memory_space<vmem>> -> memref<128xf32, #tpu.memory_space<vmem>>
      %286 = tpu.memref_slice %arg5[%205] : memref<2x!tpu.dma_semaphore, #tpu.memory_space<semaphore_mem>> -> memref<1x!tpu.dma_semaphore, #tpu.memory_space<semaphore_mem>>
      %287 = tpu.memref_squeeze %286 : memref<1x!tpu.dma_semaphore, #tpu.memory_space<semaphore_mem>> -> memref<!tpu.dma_semaphore, #tpu.memory_space<semaphore_mem>>
      tpu.enqueue_dma source(%283 : memref<128xf32, #tpu.memory_space<any>>) target(%285 : memref<128xf32, #tpu.memory_space<vmem>>) target_semaphore(%287 : memref<!tpu.dma_semaphore, #tpu.memory_space<semaphore_mem>>)
      %c9_i32_143 = arith.constant 9 : i32
      %288 = arith.addi %206, %c9_i32_143 : i32
      %289 = arith.index_cast %288 : i32 to index
      %290 = memref.load %arg1[%289] : memref<32xi32, #tpu.memory_space<smem>>
      %c9_i32_144 = arith.constant 9 : i32
      %c0_i32_145 = arith.constant 0 : i32
      %291 = tpu.memref_slice %arg2[%290, %c0_i32_145] : memref<64x128xf32, #tpu.memory_space<any>> -> memref<1x128xf32, #tpu.memory_space<any>>
      %292 = tpu.memref_squeeze %291 : memref<1x128xf32, #tpu.memory_space<any>> -> memref<128xf32, #tpu.memory_space<any>>
      %c0_i32_146 = arith.constant 0 : i32
      %293 = tpu.memref_slice %arg4[%205, %c9_i32_144, %c0_i32_146] : memref<2x32x128xf32, #tpu.memory_space<vmem>> -> memref<1x1x128xf32, #tpu.memory_space<vmem>>
      %294 = tpu.memref_squeeze %293 : memref<1x1x128xf32, #tpu.memory_space<vmem>> -> memref<128xf32, #tpu.memory_space<vmem>>
      %295 = tpu.memref_slice %arg5[%205] : memref<2x!tpu.dma_semaphore, #tpu.memory_space<semaphore_mem>> -> memref<1x!tpu.dma_semaphore, #tpu.memory_space<semaphore_mem>>
      %296 = tpu.memref_squeeze %295 : memref<1x!tpu.dma_semaphore, #tpu.memory_space<semaphore_mem>> -> memref<!tpu.dma_semaphore, #tpu.memory_space<semaphore_mem>>
      tpu.enqueue_dma source(%292 : memref<128xf32, #tpu.memory_space<any>>) target(%294 : memref<128xf32, #tpu.memory_space<vmem>>) target_semaphore(%296 : memref<!tpu.dma_semaphore, #tpu.memory_space<semaphore_mem>>)
      %c10_i32_147 = arith.constant 10 : i32
      %297 = arith.addi %206, %c10_i32_147 : i32
      %298 = arith.index_cast %297 : i32 to index
      %299 = memref.load %arg1[%298] : memref<32xi32, #tpu.memory_space<smem>>
      %c10_i32_148 = arith.constant 10 : i32
      %c0_i32_149 = arith.constant 0 : i32
      %300 = tpu.memref_slice %arg2[%299, %c0_i32_149] : memref<64x128xf32, #tpu.memory_space<any>> -> memref<1x128xf32, #tpu.memory_space<any>>
      %301 = tpu.memref_squeeze %300 : memref<1x128xf32, #tpu.memory_space<any>> -> memref<128xf32, #tpu.memory_space<any>>
      %c0_i32_150 = arith.constant 0 : i32
      %302 = tpu.memref_slice %arg4[%205, %c10_i32_148, %c0_i32_150] : memref<2x32x128xf32, #tpu.memory_space<vmem>> -> memref<1x1x128xf32, #tpu.memory_space<vmem>>
      %303 = tpu.memref_squeeze %302 : memref<1x1x128xf32, #tpu.memory_space<vmem>> -> memref<128xf32, #tpu.memory_space<vmem>>
      %304 = tpu.memref_slice %arg5[%205] : memref<2x!tpu.dma_semaphore, #tpu.memory_space<semaphore_mem>> -> memref<1x!tpu.dma_semaphore, #tpu.memory_space<semaphore_mem>>
      %305 = tpu.memref_squeeze %304 : memref<1x!tpu.dma_semaphore, #tpu.memory_space<semaphore_mem>> -> memref<!tpu.dma_semaphore, #tpu.memory_space<semaphore_mem>>
      tpu.enqueue_dma source(%301 : memref<128xf32, #tpu.memory_space<any>>) target(%303 : memref<128xf32, #tpu.memory_space<vmem>>) target_semaphore(%305 : memref<!tpu.dma_semaphore, #tpu.memory_space<semaphore_mem>>)
      %c11_i32_151 = arith.constant 11 : i32
      %306 = arith.addi %206, %c11_i32_151 : i32
      %307 = arith.index_cast %306 : i32 to index
      %308 = memref.load %arg1[%307] : memref<32xi32, #tpu.memory_space<smem>>
      %c11_i32_152 = arith.constant 11 : i32
      %c0_i32_153 = arith.constant 0 : i32
      %309 = tpu.memref_slice %arg2[%308, %c0_i32_153] : memref<64x128xf32, #tpu.memory_space<any>> -> memref<1x128xf32, #tpu.memory_space<any>>
      %310 = tpu.memref_squeeze %309 : memref<1x128xf32, #tpu.memory_space<any>> -> memref<128xf32, #tpu.memory_space<any>>
      %c0_i32_154 = arith.constant 0 : i32
      %311 = tpu.memref_slice %arg4[%205, %c11_i32_152, %c0_i32_154] : memref<2x32x128xf32, #tpu.memory_space<vmem>> -> memref<1x1x128xf32, #tpu.memory_space<vmem>>
      %312 = tpu.memref_squeeze %311 : memref<1x1x128xf32, #tpu.memory_space<vmem>> -> memref<128xf32, #tpu.memory_space<vmem>>
      %313 = tpu.memref_slice %arg5[%205] : memref<2x!tpu.dma_semaphore, #tpu.memory_space<semaphore_mem>> -> memref<1x!tpu.dma_semaphore, #tpu.memory_space<semaphore_mem>>
      %314 = tpu.memref_squeeze %313 : memref<1x!tpu.dma_semaphore, #tpu.memory_space<semaphore_mem>> -> memref<!tpu.dma_semaphore, #tpu.memory_space<semaphore_mem>>
      tpu.enqueue_dma source(%310 : memref<128xf32, #tpu.memory_space<any>>) target(%312 : memref<128xf32, #tpu.memory_space<vmem>>) target_semaphore(%314 : memref<!tpu.dma_semaphore, #tpu.memory_space<semaphore_mem>>)
      %c12_i32_155 = arith.constant 12 : i32
      %315 = arith.addi %206, %c12_i32_155 : i32
      %316 = arith.index_cast %315 : i32 to index
      %317 = memref.load %arg1[%316] : memref<32xi32, #tpu.memory_space<smem>>
      %c12_i32_156 = arith.constant 12 : i32
      %c0_i32_157 = arith.constant 0 : i32
      %318 = tpu.memref_slice %arg2[%317, %c0_i32_157] : memref<64x128xf32, #tpu.memory_space<any>> -> memref<1x128xf32, #tpu.memory_space<any>>
      %319 = tpu.memref_squeeze %318 : memref<1x128xf32, #tpu.memory_space<any>> -> memref<128xf32, #tpu.memory_space<any>>
      %c0_i32_158 = arith.constant 0 : i32
      %320 = tpu.memref_slice %arg4[%205, %c12_i32_156, %c0_i32_158] : memref<2x32x128xf32, #tpu.memory_space<vmem>> -> memref<1x1x128xf32, #tpu.memory_space<vmem>>
      %321 = tpu.memref_squeeze %320 : memref<1x1x128xf32, #tpu.memory_space<vmem>> -> memref<128xf32, #tpu.memory_space<vmem>>
      %322 = tpu.memref_slice %arg5[%205] : memref<2x!tpu.dma_semaphore, #tpu.memory_space<semaphore_mem>> -> memref<1x!tpu.dma_semaphore, #tpu.memory_space<semaphore_mem>>
      %323 = tpu.memref_squeeze %322 : memref<1x!tpu.dma_semaphore, #tpu.memory_space<semaphore_mem>> -> memref<!tpu.dma_semaphore, #tpu.memory_space<semaphore_mem>>
      tpu.enqueue_dma source(%319 : memref<128xf32, #tpu.memory_space<any>>) target(%321 : memref<128xf32, #tpu.memory_space<vmem>>) target_semaphore(%323 : memref<!tpu.dma_semaphore, #tpu.memory_space<semaphore_mem>>)
      %c13_i32_159 = arith.constant 13 : i32
      %324 = arith.addi %206, %c13_i32_159 : i32
      %325 = arith.index_cast %324 : i32 to index
      %326 = memref.load %arg1[%325] : memref<32xi32, #tpu.memory_space<smem>>
      %c13_i32_160 = arith.constant 13 : i32
      %c0_i32_161 = arith.constant 0 : i32
      %327 = tpu.memref_slice %arg2[%326, %c0_i32_161] : memref<64x128xf32, #tpu.memory_space<any>> -> memref<1x128xf32, #tpu.memory_space<any>>
      %328 = tpu.memref_squeeze %327 : memref<1x128xf32, #tpu.memory_space<any>> -> memref<128xf32, #tpu.memory_space<any>>
      %c0_i32_162 = arith.constant 0 : i32
      %329 = tpu.memref_slice %arg4[%205, %c13_i32_160, %c0_i32_162] : memref<2x32x128xf32, #tpu.memory_space<vmem>> -> memref<1x1x128xf32, #tpu.memory_space<vmem>>
      %330 = tpu.memref_squeeze %329 : memref<1x1x128xf32, #tpu.memory_space<vmem>> -> memref<128xf32, #tpu.memory_space<vmem>>
      %331 = tpu.memref_slice %arg5[%205] : memref<2x!tpu.dma_semaphore, #tpu.memory_space<semaphore_mem>> -> memref<1x!tpu.dma_semaphore, #tpu.memory_space<semaphore_mem>>
      %332 = tpu.memref_squeeze %331 : memref<1x!tpu.dma_semaphore, #tpu.memory_space<semaphore_mem>> -> memref<!tpu.dma_semaphore, #tpu.memory_space<semaphore_mem>>
      tpu.enqueue_dma source(%328 : memref<128xf32, #tpu.memory_space<any>>) target(%330 : memref<128xf32, #tpu.memory_space<vmem>>) target_semaphore(%332 : memref<!tpu.dma_semaphore, #tpu.memory_space<semaphore_mem>>)
      %c14_i32_163 = arith.constant 14 : i32
      %333 = arith.addi %206, %c14_i32_163 : i32
      %334 = arith.index_cast %333 : i32 to index
      %335 = memref.load %arg1[%334] : memref<32xi32, #tpu.memory_space<smem>>
      %c14_i32_164 = arith.constant 14 : i32
      %c0_i32_165 = arith.constant 0 : i32
      %336 = tpu.memref_slice %arg2[%335, %c0_i32_165] : memref<64x128xf32, #tpu.memory_space<any>> -> memref<1x128xf32, #tpu.memory_space<any>>
      %337 = tpu.memref_squeeze %336 : memref<1x128xf32, #tpu.memory_space<any>> -> memref<128xf32, #tpu.memory_space<any>>
      %c0_i32_166 = arith.constant 0 : i32
      %338 = tpu.memref_slice %arg4[%205, %c14_i32_164, %c0_i32_166] : memref<2x32x128xf32, #tpu.memory_space<vmem>> -> memref<1x1x128xf32, #tpu.memory_space<vmem>>
      %339 = tpu.memref_squeeze %338 : memref<1x1x128xf32, #tpu.memory_space<vmem>> -> memref<128xf32, #tpu.memory_space<vmem>>
      %340 = tpu.memref_slice %arg5[%205] : memref<2x!tpu.dma_semaphore, #tpu.memory_space<semaphore_mem>> -> memref<1x!tpu.dma_semaphore, #tpu.memory_space<semaphore_mem>>
      %341 = tpu.memref_squeeze %340 : memref<1x!tpu.dma_semaphore, #tpu.memory_space<semaphore_mem>> -> memref<!tpu.dma_semaphore, #tpu.memory_space<semaphore_mem>>
      tpu.enqueue_dma source(%337 : memref<128xf32, #tpu.memory_space<any>>) target(%339 : memref<128xf32, #tpu.memory_space<vmem>>) target_semaphore(%341 : memref<!tpu.dma_semaphore, #tpu.memory_space<semaphore_mem>>)
      %c15_i32_167 = arith.constant 15 : i32
      %342 = arith.addi %206, %c15_i32_167 : i32
      %343 = arith.index_cast %342 : i32 to index
      %344 = memref.load %arg1[%343] : memref<32xi32, #tpu.memory_space<smem>>
      %c15_i32_168 = arith.constant 15 : i32
      %c0_i32_169 = arith.constant 0 : i32
      %345 = tpu.memref_slice %arg2[%344, %c0_i32_169] : memref<64x128xf32, #tpu.memory_space<any>> -> memref<1x128xf32, #tpu.memory_space<any>>
      %346 = tpu.memref_squeeze %345 : memref<1x128xf32, #tpu.memory_space<any>> -> memref<128xf32, #tpu.memory_space<any>>
      %c0_i32_170 = arith.constant 0 : i32
      %347 = tpu.memref_slice %arg4[%205, %c15_i32_168, %c0_i32_170] : memref<2x32x128xf32, #tpu.memory_space<vmem>> -> memref<1x1x128xf32, #tpu.memory_space<vmem>>
      %348 = tpu.memref_squeeze %347 : memref<1x1x128xf32, #tpu.memory_space<vmem>> -> memref<128xf32, #tpu.memory_space<vmem>>
      %349 = tpu.memref_slice %arg5[%205] : memref<2x!tpu.dma_semaphore, #tpu.memory_space<semaphore_mem>> -> memref<1x!tpu.dma_semaphore, #tpu.memory_space<semaphore_mem>>
      %350 = tpu.memref_squeeze %349 : memref<1x!tpu.dma_semaphore, #tpu.memory_space<semaphore_mem>> -> memref<!tpu.dma_semaphore, #tpu.memory_space<semaphore_mem>>
      tpu.enqueue_dma source(%346 : memref<128xf32, #tpu.memory_space<any>>) target(%348 : memref<128xf32, #tpu.memory_space<vmem>>) target_semaphore(%350 : memref<!tpu.dma_semaphore, #tpu.memory_space<semaphore_mem>>)
      %c16_i32_171 = arith.constant 16 : i32
      %351 = arith.addi %206, %c16_i32_171 : i32
      %352 = arith.index_cast %351 : i32 to index
      %353 = memref.load %arg1[%352] : memref<32xi32, #tpu.memory_space<smem>>
      %c16_i32_172 = arith.constant 16 : i32
      %c0_i32_173 = arith.constant 0 : i32
      %354 = tpu.memref_slice %arg2[%353, %c0_i32_173] : memref<64x128xf32, #tpu.memory_space<any>> -> memref<1x128xf32, #tpu.memory_space<any>>
      %355 = tpu.memref_squeeze %354 : memref<1x128xf32, #tpu.memory_space<any>> -> memref<128xf32, #tpu.memory_space<any>>
      %c0_i32_174 = arith.constant 0 : i32
      %356 = tpu.memref_slice %arg4[%205, %c16_i32_172, %c0_i32_174] : memref<2x32x128xf32, #tpu.memory_space<vmem>> -> memref<1x1x128xf32, #tpu.memory_space<vmem>>
      %357 = tpu.memref_squeeze %356 : memref<1x1x128xf32, #tpu.memory_space<vmem>> -> memref<128xf32, #tpu.memory_space<vmem>>
      %358 = tpu.memref_slice %arg5[%205] : memref<2x!tpu.dma_semaphore, #tpu.memory_space<semaphore_mem>> -> memref<1x!tpu.dma_semaphore, #tpu.memory_space<semaphore_mem>>
      %359 = tpu.memref_squeeze %358 : memref<1x!tpu.dma_semaphore, #tpu.memory_space<semaphore_mem>> -> memref<!tpu.dma_semaphore, #tpu.memory_space<semaphore_mem>>
      tpu.enqueue_dma source(%355 : memref<128xf32, #tpu.memory_space<any>>) target(%357 : memref<128xf32, #tpu.memory_space<vmem>>) target_semaphore(%359 : memref<!tpu.dma_semaphore, #tpu.memory_space<semaphore_mem>>)
      %c17_i32_175 = arith.constant 17 : i32
      %360 = arith.addi %206, %c17_i32_175 : i32
      %361 = arith.index_cast %360 : i32 to index
      %362 = memref.load %arg1[%361] : memref<32xi32, #tpu.memory_space<smem>>
      %c17_i32_176 = arith.constant 17 : i32
      %c0_i32_177 = arith.constant 0 : i32
      %363 = tpu.memref_slice %arg2[%362, %c0_i32_177] : memref<64x128xf32, #tpu.memory_space<any>> -> memref<1x128xf32, #tpu.memory_space<any>>
      %364 = tpu.memref_squeeze %363 : memref<1x128xf32, #tpu.memory_space<any>> -> memref<128xf32, #tpu.memory_space<any>>
      %c0_i32_178 = arith.constant 0 : i32
      %365 = tpu.memref_slice %arg4[%205, %c17_i32_176, %c0_i32_178] : memref<2x32x128xf32, #tpu.memory_space<vmem>> -> memref<1x1x128xf32, #tpu.memory_space<vmem>>
      %366 = tpu.memref_squeeze %365 : memref<1x1x128xf32, #tpu.memory_space<vmem>> -> memref<128xf32, #tpu.memory_space<vmem>>
      %367 = tpu.memref_slice %arg5[%205] : memref<2x!tpu.dma_semaphore, #tpu.memory_space<semaphore_mem>> -> memref<1x!tpu.dma_semaphore, #tpu.memory_space<semaphore_mem>>
      %368 = tpu.memref_squeeze %367 : memref<1x!tpu.dma_semaphore, #tpu.memory_space<semaphore_mem>> -> memref<!tpu.dma_semaphore, #tpu.memory_space<semaphore_mem>>
      tpu.enqueue_dma source(%364 : memref<128xf32, #tpu.memory_space<any>>) target(%366 : memref<128xf32, #tpu.memory_space<vmem>>) target_semaphore(%368 : memref<!tpu.dma_semaphore, #tpu.memory_space<semaphore_mem>>)
      %c18_i32_179 = arith.constant 18 : i32
      %369 = arith.addi %206, %c18_i32_179 : i32
      %370 = arith.index_cast %369 : i32 to index
      %371 = memref.load %arg1[%370] : memref<32xi32, #tpu.memory_space<smem>>
      %c18_i32_180 = arith.constant 18 : i32
      %c0_i32_181 = arith.constant 0 : i32
      %372 = tpu.memref_slice %arg2[%371, %c0_i32_181] : memref<64x128xf32, #tpu.memory_space<any>> -> memref<1x128xf32, #tpu.memory_space<any>>
      %373 = tpu.memref_squeeze %372 : memref<1x128xf32, #tpu.memory_space<any>> -> memref<128xf32, #tpu.memory_space<any>>
      %c0_i32_182 = arith.constant 0 : i32
      %374 = tpu.memref_slice %arg4[%205, %c18_i32_180, %c0_i32_182] : memref<2x32x128xf32, #tpu.memory_space<vmem>> -> memref<1x1x128xf32, #tpu.memory_space<vmem>>
      %375 = tpu.memref_squeeze %374 : memref<1x1x128xf32, #tpu.memory_space<vmem>> -> memref<128xf32, #tpu.memory_space<vmem>>
      %376 = tpu.memref_slice %arg5[%205] : memref<2x!tpu.dma_semaphore, #tpu.memory_space<semaphore_mem>> -> memref<1x!tpu.dma_semaphore, #tpu.memory_space<semaphore_mem>>
      %377 = tpu.memref_squeeze %376 : memref<1x!tpu.dma_semaphore, #tpu.memory_space<semaphore_mem>> -> memref<!tpu.dma_semaphore, #tpu.memory_space<semaphore_mem>>
      tpu.enqueue_dma source(%373 : memref<128xf32, #tpu.memory_space<any>>) target(%375 : memref<128xf32, #tpu.memory_space<vmem>>) target_semaphore(%377 : memref<!tpu.dma_semaphore, #tpu.memory_space<semaphore_mem>>)
      %c19_i32_183 = arith.constant 19 : i32
      %378 = arith.addi %206, %c19_i32_183 : i32
      %379 = arith.index_cast %378 : i32 to index
      %380 = memref.load %arg1[%379] : memref<32xi32, #tpu.memory_space<smem>>
      %c19_i32_184 = arith.constant 19 : i32
      %c0_i32_185 = arith.constant 0 : i32
      %381 = tpu.memref_slice %arg2[%380, %c0_i32_185] : memref<64x128xf32, #tpu.memory_space<any>> -> memref<1x128xf32, #tpu.memory_space<any>>
      %382 = tpu.memref_squeeze %381 : memref<1x128xf32, #tpu.memory_space<any>> -> memref<128xf32, #tpu.memory_space<any>>
      %c0_i32_186 = arith.constant 0 : i32
      %383 = tpu.memref_slice %arg4[%205, %c19_i32_184, %c0_i32_186] : memref<2x32x128xf32, #tpu.memory_space<vmem>> -> memref<1x1x128xf32, #tpu.memory_space<vmem>>
      %384 = tpu.memref_squeeze %383 : memref<1x1x128xf32, #tpu.memory_space<vmem>> -> memref<128xf32, #tpu.memory_space<vmem>>
      %385 = tpu.memref_slice %arg5[%205] : memref<2x!tpu.dma_semaphore, #tpu.memory_space<semaphore_mem>> -> memref<1x!tpu.dma_semaphore, #tpu.memory_space<semaphore_mem>>
      %386 = tpu.memref_squeeze %385 : memref<1x!tpu.dma_semaphore, #tpu.memory_space<semaphore_mem>> -> memref<!tpu.dma_semaphore, #tpu.memory_space<semaphore_mem>>
      tpu.enqueue_dma source(%382 : memref<128xf32, #tpu.memory_space<any>>) target(%384 : memref<128xf32, #tpu.memory_space<vmem>>) target_semaphore(%386 : memref<!tpu.dma_semaphore, #tpu.memory_space<semaphore_mem>>)
      %c20_i32_187 = arith.constant 20 : i32
      %387 = arith.addi %206, %c20_i32_187 : i32
      %388 = arith.index_cast %387 : i32 to index
      %389 = memref.load %arg1[%388] : memref<32xi32, #tpu.memory_space<smem>>
      %c20_i32_188 = arith.constant 20 : i32
      %c0_i32_189 = arith.constant 0 : i32
      %390 = tpu.memref_slice %arg2[%389, %c0_i32_189] : memref<64x128xf32, #tpu.memory_space<any>> -> memref<1x128xf32, #tpu.memory_space<any>>
      %391 = tpu.memref_squeeze %390 : memref<1x128xf32, #tpu.memory_space<any>> -> memref<128xf32, #tpu.memory_space<any>>
      %c0_i32_190 = arith.constant 0 : i32
      %392 = tpu.memref_slice %arg4[%205, %c20_i32_188, %c0_i32_190] : memref<2x32x128xf32, #tpu.memory_space<vmem>> -> memref<1x1x128xf32, #tpu.memory_space<vmem>>
      %393 = tpu.memref_squeeze %392 : memref<1x1x128xf32, #tpu.memory_space<vmem>> -> memref<128xf32, #tpu.memory_space<vmem>>
      %394 = tpu.memref_slice %arg5[%205] : memref<2x!tpu.dma_semaphore, #tpu.memory_space<semaphore_mem>> -> memref<1x!tpu.dma_semaphore, #tpu.memory_space<semaphore_mem>>
      %395 = tpu.memref_squeeze %394 : memref<1x!tpu.dma_semaphore, #tpu.memory_space<semaphore_mem>> -> memref<!tpu.dma_semaphore, #tpu.memory_space<semaphore_mem>>
      tpu.enqueue_dma source(%391 : memref<128xf32, #tpu.memory_space<any>>) target(%393 : memref<128xf32, #tpu.memory_space<vmem>>) target_semaphore(%395 : memref<!tpu.dma_semaphore, #tpu.memory_space<semaphore_mem>>)
      %c21_i32_191 = arith.constant 21 : i32
      %396 = arith.addi %206, %c21_i32_191 : i32
      %397 = arith.index_cast %396 : i32 to index
      %398 = memref.load %arg1[%397] : memref<32xi32, #tpu.memory_space<smem>>
      %c21_i32_192 = arith.constant 21 : i32
      %c0_i32_193 = arith.constant 0 : i32
      %399 = tpu.memref_slice %arg2[%398, %c0_i32_193] : memref<64x128xf32, #tpu.memory_space<any>> -> memref<1x128xf32, #tpu.memory_space<any>>
      %400 = tpu.memref_squeeze %399 : memref<1x128xf32, #tpu.memory_space<any>> -> memref<128xf32, #tpu.memory_space<any>>
      %c0_i32_194 = arith.constant 0 : i32
      %401 = tpu.memref_slice %arg4[%205, %c21_i32_192, %c0_i32_194] : memref<2x32x128xf32, #tpu.memory_space<vmem>> -> memref<1x1x128xf32, #tpu.memory_space<vmem>>
      %402 = tpu.memref_squeeze %401 : memref<1x1x128xf32, #tpu.memory_space<vmem>> -> memref<128xf32, #tpu.memory_space<vmem>>
      %403 = tpu.memref_slice %arg5[%205] : memref<2x!tpu.dma_semaphore, #tpu.memory_space<semaphore_mem>> -> memref<1x!tpu.dma_semaphore, #tpu.memory_space<semaphore_mem>>
      %404 = tpu.memref_squeeze %403 : memref<1x!tpu.dma_semaphore, #tpu.memory_space<semaphore_mem>> -> memref<!tpu.dma_semaphore, #tpu.memory_space<semaphore_mem>>
      tpu.enqueue_dma source(%400 : memref<128xf32, #tpu.memory_space<any>>) target(%402 : memref<128xf32, #tpu.memory_space<vmem>>) target_semaphore(%404 : memref<!tpu.dma_semaphore, #tpu.memory_space<semaphore_mem>>)
      %c22_i32_195 = arith.constant 22 : i32
      %405 = arith.addi %206, %c22_i32_195 : i32
      %406 = arith.index_cast %405 : i32 to index
      %407 = memref.load %arg1[%406] : memref<32xi32, #tpu.memory_space<smem>>
      %c22_i32_196 = arith.constant 22 : i32
      %c0_i32_197 = arith.constant 0 : i32
      %408 = tpu.memref_slice %arg2[%407, %c0_i32_197] : memref<64x128xf32, #tpu.memory_space<any>> -> memref<1x128xf32, #tpu.memory_space<any>>
      %409 = tpu.memref_squeeze %408 : memref<1x128xf32, #tpu.memory_space<any>> -> memref<128xf32, #tpu.memory_space<any>>
      %c0_i32_198 = arith.constant 0 : i32
      %410 = tpu.memref_slice %arg4[%205, %c22_i32_196, %c0_i32_198] : memref<2x32x128xf32, #tpu.memory_space<vmem>> -> memref<1x1x128xf32, #tpu.memory_space<vmem>>
      %411 = tpu.memref_squeeze %410 : memref<1x1x128xf32, #tpu.memory_space<vmem>> -> memref<128xf32, #tpu.memory_space<vmem>>
      %412 = tpu.memref_slice %arg5[%205] : memref<2x!tpu.dma_semaphore, #tpu.memory_space<semaphore_mem>> -> memref<1x!tpu.dma_semaphore, #tpu.memory_space<semaphore_mem>>
      %413 = tpu.memref_squeeze %412 : memref<1x!tpu.dma_semaphore, #tpu.memory_space<semaphore_mem>> -> memref<!tpu.dma_semaphore, #tpu.memory_space<semaphore_mem>>
      tpu.enqueue_dma source(%409 : memref<128xf32, #tpu.memory_space<any>>) target(%411 : memref<128xf32, #tpu.memory_space<vmem>>) target_semaphore(%413 : memref<!tpu.dma_semaphore, #tpu.memory_space<semaphore_mem>>)
      %c23_i32_199 = arith.constant 23 : i32
      %414 = arith.addi %206, %c23_i32_199 : i32
      %415 = arith.index_cast %414 : i32 to index
      %416 = memref.load %arg1[%415] : memref<32xi32, #tpu.memory_space<smem>>
      %c23_i32_200 = arith.constant 23 : i32
      %c0_i32_201 = arith.constant 0 : i32
      %417 = tpu.memref_slice %arg2[%416, %c0_i32_201] : memref<64x128xf32, #tpu.memory_space<any>> -> memref<1x128xf32, #tpu.memory_space<any>>
      %418 = tpu.memref_squeeze %417 : memref<1x128xf32, #tpu.memory_space<any>> -> memref<128xf32, #tpu.memory_space<any>>
      %c0_i32_202 = arith.constant 0 : i32
      %419 = tpu.memref_slice %arg4[%205, %c23_i32_200, %c0_i32_202] : memref<2x32x128xf32, #tpu.memory_space<vmem>> -> memref<1x1x128xf32, #tpu.memory_space<vmem>>
      %420 = tpu.memref_squeeze %419 : memref<1x1x128xf32, #tpu.memory_space<vmem>> -> memref<128xf32, #tpu.memory_space<vmem>>
      %421 = tpu.memref_slice %arg5[%205] : memref<2x!tpu.dma_semaphore, #tpu.memory_space<semaphore_mem>> -> memref<1x!tpu.dma_semaphore, #tpu.memory_space<semaphore_mem>>
      %422 = tpu.memref_squeeze %421 : memref<1x!tpu.dma_semaphore, #tpu.memory_space<semaphore_mem>> -> memref<!tpu.dma_semaphore, #tpu.memory_space<semaphore_mem>>
      tpu.enqueue_dma source(%418 : memref<128xf32, #tpu.memory_space<any>>) target(%420 : memref<128xf32, #tpu.memory_space<vmem>>) target_semaphore(%422 : memref<!tpu.dma_semaphore, #tpu.memory_space<semaphore_mem>>)
      %c24_i32_203 = arith.constant 24 : i32
      %423 = arith.addi %206, %c24_i32_203 : i32
      %424 = arith.index_cast %423 : i32 to index
      %425 = memref.load %arg1[%424] : memref<32xi32, #tpu.memory_space<smem>>
      %c24_i32_204 = arith.constant 24 : i32
      %c0_i32_205 = arith.constant 0 : i32
      %426 = tpu.memref_slice %arg2[%425, %c0_i32_205] : memref<64x128xf32, #tpu.memory_space<any>> -> memref<1x128xf32, #tpu.memory_space<any>>
      %427 = tpu.memref_squeeze %426 : memref<1x128xf32, #tpu.memory_space<any>> -> memref<128xf32, #tpu.memory_space<any>>
      %c0_i32_206 = arith.constant 0 : i32
      %428 = tpu.memref_slice %arg4[%205, %c24_i32_204, %c0_i32_206] : memref<2x32x128xf32, #tpu.memory_space<vmem>> -> memref<1x1x128xf32, #tpu.memory_space<vmem>>
      %429 = tpu.memref_squeeze %428 : memref<1x1x128xf32, #tpu.memory_space<vmem>> -> memref<128xf32, #tpu.memory_space<vmem>>
      %430 = tpu.memref_slice %arg5[%205] : memref<2x!tpu.dma_semaphore, #tpu.memory_space<semaphore_mem>> -> memref<1x!tpu.dma_semaphore, #tpu.memory_space<semaphore_mem>>
      %431 = tpu.memref_squeeze %430 : memref<1x!tpu.dma_semaphore, #tpu.memory_space<semaphore_mem>> -> memref<!tpu.dma_semaphore, #tpu.memory_space<semaphore_mem>>
      tpu.enqueue_dma source(%427 : memref<128xf32, #tpu.memory_space<any>>) target(%429 : memref<128xf32, #tpu.memory_space<vmem>>) target_semaphore(%431 : memref<!tpu.dma_semaphore, #tpu.memory_space<semaphore_mem>>)
      %c25_i32_207 = arith.constant 25 : i32
      %432 = arith.addi %206, %c25_i32_207 : i32
      %433 = arith.index_cast %432 : i32 to index
      %434 = memref.load %arg1[%433] : memref<32xi32, #tpu.memory_space<smem>>
      %c25_i32_208 = arith.constant 25 : i32
      %c0_i32_209 = arith.constant 0 : i32
      %435 = tpu.memref_slice %arg2[%434, %c0_i32_209] : memref<64x128xf32, #tpu.memory_space<any>> -> memref<1x128xf32, #tpu.memory_space<any>>
      %436 = tpu.memref_squeeze %435 : memref<1x128xf32, #tpu.memory_space<any>> -> memref<128xf32, #tpu.memory_space<any>>
      %c0_i32_210 = arith.constant 0 : i32
      %437 = tpu.memref_slice %arg4[%205, %c25_i32_208, %c0_i32_210] : memref<2x32x128xf32, #tpu.memory_space<vmem>> -> memref<1x1x128xf32, #tpu.memory_space<vmem>>
      %438 = tpu.memref_squeeze %437 : memref<1x1x128xf32, #tpu.memory_space<vmem>> -> memref<128xf32, #tpu.memory_space<vmem>>
      %439 = tpu.memref_slice %arg5[%205] : memref<2x!tpu.dma_semaphore, #tpu.memory_space<semaphore_mem>> -> memref<1x!tpu.dma_semaphore, #tpu.memory_space<semaphore_mem>>
      %440 = tpu.memref_squeeze %439 : memref<1x!tpu.dma_semaphore, #tpu.memory_space<semaphore_mem>> -> memref<!tpu.dma_semaphore, #tpu.memory_space<semaphore_mem>>
      tpu.enqueue_dma source(%436 : memref<128xf32, #tpu.memory_space<any>>) target(%438 : memref<128xf32, #tpu.memory_space<vmem>>) target_semaphore(%440 : memref<!tpu.dma_semaphore, #tpu.memory_space<semaphore_mem>>)
      %c26_i32_211 = arith.constant 26 : i32
      %441 = arith.addi %206, %c26_i32_211 : i32
      %442 = arith.index_cast %441 : i32 to index
      %443 = memref.load %arg1[%442] : memref<32xi32, #tpu.memory_space<smem>>
      %c26_i32_212 = arith.constant 26 : i32
      %c0_i32_213 = arith.constant 0 : i32
      %444 = tpu.memref_slice %arg2[%443, %c0_i32_213] : memref<64x128xf32, #tpu.memory_space<any>> -> memref<1x128xf32, #tpu.memory_space<any>>
      %445 = tpu.memref_squeeze %444 : memref<1x128xf32, #tpu.memory_space<any>> -> memref<128xf32, #tpu.memory_space<any>>
      %c0_i32_214 = arith.constant 0 : i32
      %446 = tpu.memref_slice %arg4[%205, %c26_i32_212, %c0_i32_214] : memref<2x32x128xf32, #tpu.memory_space<vmem>> -> memref<1x1x128xf32, #tpu.memory_space<vmem>>
      %447 = tpu.memref_squeeze %446 : memref<1x1x128xf32, #tpu.memory_space<vmem>> -> memref<128xf32, #tpu.memory_space<vmem>>
      %448 = tpu.memref_slice %arg5[%205] : memref<2x!tpu.dma_semaphore, #tpu.memory_space<semaphore_mem>> -> memref<1x!tpu.dma_semaphore, #tpu.memory_space<semaphore_mem>>
      %449 = tpu.memref_squeeze %448 : memref<1x!tpu.dma_semaphore, #tpu.memory_space<semaphore_mem>> -> memref<!tpu.dma_semaphore, #tpu.memory_space<semaphore_mem>>
      tpu.enqueue_dma source(%445 : memref<128xf32, #tpu.memory_space<any>>) target(%447 : memref<128xf32, #tpu.memory_space<vmem>>) target_semaphore(%449 : memref<!tpu.dma_semaphore, #tpu.memory_space<semaphore_mem>>)
      %c27_i32_215 = arith.constant 27 : i32
      %450 = arith.addi %206, %c27_i32_215 : i32
      %451 = arith.index_cast %450 : i32 to index
      %452 = memref.load %arg1[%451] : memref<32xi32, #tpu.memory_space<smem>>
      %c27_i32_216 = arith.constant 27 : i32
      %c0_i32_217 = arith.constant 0 : i32
      %453 = tpu.memref_slice %arg2[%452, %c0_i32_217] : memref<64x128xf32, #tpu.memory_space<any>> -> memref<1x128xf32, #tpu.memory_space<any>>
      %454 = tpu.memref_squeeze %453 : memref<1x128xf32, #tpu.memory_space<any>> -> memref<128xf32, #tpu.memory_space<any>>
      %c0_i32_218 = arith.constant 0 : i32
      %455 = tpu.memref_slice %arg4[%205, %c27_i32_216, %c0_i32_218] : memref<2x32x128xf32, #tpu.memory_space<vmem>> -> memref<1x1x128xf32, #tpu.memory_space<vmem>>
      %456 = tpu.memref_squeeze %455 : memref<1x1x128xf32, #tpu.memory_space<vmem>> -> memref<128xf32, #tpu.memory_space<vmem>>
      %457 = tpu.memref_slice %arg5[%205] : memref<2x!tpu.dma_semaphore, #tpu.memory_space<semaphore_mem>> -> memref<1x!tpu.dma_semaphore, #tpu.memory_space<semaphore_mem>>
      %458 = tpu.memref_squeeze %457 : memref<1x!tpu.dma_semaphore, #tpu.memory_space<semaphore_mem>> -> memref<!tpu.dma_semaphore, #tpu.memory_space<semaphore_mem>>
      tpu.enqueue_dma source(%454 : memref<128xf32, #tpu.memory_space<any>>) target(%456 : memref<128xf32, #tpu.memory_space<vmem>>) target_semaphore(%458 : memref<!tpu.dma_semaphore, #tpu.memory_space<semaphore_mem>>)
      %c28_i32_219 = arith.constant 28 : i32
      %459 = arith.addi %206, %c28_i32_219 : i32
      %460 = arith.index_cast %459 : i32 to index
      %461 = memref.load %arg1[%460] : memref<32xi32, #tpu.memory_space<smem>>
      %c28_i32_220 = arith.constant 28 : i32
      %c0_i32_221 = arith.constant 0 : i32
      %462 = tpu.memref_slice %arg2[%461, %c0_i32_221] : memref<64x128xf32, #tpu.memory_space<any>> -> memref<1x128xf32, #tpu.memory_space<any>>
      %463 = tpu.memref_squeeze %462 : memref<1x128xf32, #tpu.memory_space<any>> -> memref<128xf32, #tpu.memory_space<any>>
      %c0_i32_222 = arith.constant 0 : i32
      %464 = tpu.memref_slice %arg4[%205, %c28_i32_220, %c0_i32_222] : memref<2x32x128xf32, #tpu.memory_space<vmem>> -> memref<1x1x128xf32, #tpu.memory_space<vmem>>
      %465 = tpu.memref_squeeze %464 : memref<1x1x128xf32, #tpu.memory_space<vmem>> -> memref<128xf32, #tpu.memory_space<vmem>>
      %466 = tpu.memref_slice %arg5[%205] : memref<2x!tpu.dma_semaphore, #tpu.memory_space<semaphore_mem>> -> memref<1x!tpu.dma_semaphore, #tpu.memory_space<semaphore_mem>>
      %467 = tpu.memref_squeeze %466 : memref<1x!tpu.dma_semaphore, #tpu.memory_space<semaphore_mem>> -> memref<!tpu.dma_semaphore, #tpu.memory_space<semaphore_mem>>
      tpu.enqueue_dma source(%463 : memref<128xf32, #tpu.memory_space<any>>) target(%465 : memref<128xf32, #tpu.memory_space<vmem>>) target_semaphore(%467 : memref<!tpu.dma_semaphore, #tpu.memory_space<semaphore_mem>>)
      %c29_i32_223 = arith.constant 29 : i32
      %468 = arith.addi %206, %c29_i32_223 : i32
      %469 = arith.index_cast %468 : i32 to index
      %470 = memref.load %arg1[%469] : memref<32xi32, #tpu.memory_space<smem>>
      %c29_i32_224 = arith.constant 29 : i32
      %c0_i32_225 = arith.constant 0 : i32
      %471 = tpu.memref_slice %arg2[%470, %c0_i32_225] : memref<64x128xf32, #tpu.memory_space<any>> -> memref<1x128xf32, #tpu.memory_space<any>>
      %472 = tpu.memref_squeeze %471 : memref<1x128xf32, #tpu.memory_space<any>> -> memref<128xf32, #tpu.memory_space<any>>
      %c0_i32_226 = arith.constant 0 : i32
      %473 = tpu.memref_slice %arg4[%205, %c29_i32_224, %c0_i32_226] : memref<2x32x128xf32, #tpu.memory_space<vmem>> -> memref<1x1x128xf32, #tpu.memory_space<vmem>>
      %474 = tpu.memref_squeeze %473 : memref<1x1x128xf32, #tpu.memory_space<vmem>> -> memref<128xf32, #tpu.memory_space<vmem>>
      %475 = tpu.memref_slice %arg5[%205] : memref<2x!tpu.dma_semaphore, #tpu.memory_space<semaphore_mem>> -> memref<1x!tpu.dma_semaphore, #tpu.memory_space<semaphore_mem>>
      %476 = tpu.memref_squeeze %475 : memref<1x!tpu.dma_semaphore, #tpu.memory_space<semaphore_mem>> -> memref<!tpu.dma_semaphore, #tpu.memory_space<semaphore_mem>>
      tpu.enqueue_dma source(%472 : memref<128xf32, #tpu.memory_space<any>>) target(%474 : memref<128xf32, #tpu.memory_space<vmem>>) target_semaphore(%476 : memref<!tpu.dma_semaphore, #tpu.memory_space<semaphore_mem>>)
      %c30_i32_227 = arith.constant 30 : i32
      %477 = arith.addi %206, %c30_i32_227 : i32
      %478 = arith.index_cast %477 : i32 to index
      %479 = memref.load %arg1[%478] : memref<32xi32, #tpu.memory_space<smem>>
      %c30_i32_228 = arith.constant 30 : i32
      %c0_i32_229 = arith.constant 0 : i32
      %480 = tpu.memref_slice %arg2[%479, %c0_i32_229] : memref<64x128xf32, #tpu.memory_space<any>> -> memref<1x128xf32, #tpu.memory_space<any>>
      %481 = tpu.memref_squeeze %480 : memref<1x128xf32, #tpu.memory_space<any>> -> memref<128xf32, #tpu.memory_space<any>>
      %c0_i32_230 = arith.constant 0 : i32
      %482 = tpu.memref_slice %arg4[%205, %c30_i32_228, %c0_i32_230] : memref<2x32x128xf32, #tpu.memory_space<vmem>> -> memref<1x1x128xf32, #tpu.memory_space<vmem>>
      %483 = tpu.memref_squeeze %482 : memref<1x1x128xf32, #tpu.memory_space<vmem>> -> memref<128xf32, #tpu.memory_space<vmem>>
      %484 = tpu.memref_slice %arg5[%205] : memref<2x!tpu.dma_semaphore, #tpu.memory_space<semaphore_mem>> -> memref<1x!tpu.dma_semaphore, #tpu.memory_space<semaphore_mem>>
      %485 = tpu.memref_squeeze %484 : memref<1x!tpu.dma_semaphore, #tpu.memory_space<semaphore_mem>> -> memref<!tpu.dma_semaphore, #tpu.memory_space<semaphore_mem>>
      tpu.enqueue_dma source(%481 : memref<128xf32, #tpu.memory_space<any>>) target(%483 : memref<128xf32, #tpu.memory_space<vmem>>) target_semaphore(%485 : memref<!tpu.dma_semaphore, #tpu.memory_space<semaphore_mem>>)
      %c31_i32_231 = arith.constant 31 : i32
      %486 = arith.addi %206, %c31_i32_231 : i32
      %487 = arith.index_cast %486 : i32 to index
      %488 = memref.load %arg1[%487] : memref<32xi32, #tpu.memory_space<smem>>
      %c31_i32_232 = arith.constant 31 : i32
      %c0_i32_233 = arith.constant 0 : i32
      %489 = tpu.memref_slice %arg2[%488, %c0_i32_233] : memref<64x128xf32, #tpu.memory_space<any>> -> memref<1x128xf32, #tpu.memory_space<any>>
      %490 = tpu.memref_squeeze %489 : memref<1x128xf32, #tpu.memory_space<any>> -> memref<128xf32, #tpu.memory_space<any>>
      %c0_i32_234 = arith.constant 0 : i32
      %491 = tpu.memref_slice %arg4[%205, %c31_i32_232, %c0_i32_234] : memref<2x32x128xf32, #tpu.memory_space<vmem>> -> memref<1x1x128xf32, #tpu.memory_space<vmem>>
      %492 = tpu.memref_squeeze %491 : memref<1x1x128xf32, #tpu.memory_space<vmem>> -> memref<128xf32, #tpu.memory_space<vmem>>
      %493 = tpu.memref_slice %arg5[%205] : memref<2x!tpu.dma_semaphore, #tpu.memory_space<semaphore_mem>> -> memref<1x!tpu.dma_semaphore, #tpu.memory_space<semaphore_mem>>
      %494 = tpu.memref_squeeze %493 : memref<1x!tpu.dma_semaphore, #tpu.memory_space<semaphore_mem>> -> memref<!tpu.dma_semaphore, #tpu.memory_space<semaphore_mem>>
      tpu.enqueue_dma source(%490 : memref<128xf32, #tpu.memory_space<any>>) target(%492 : memref<128xf32, #tpu.memory_space<vmem>>) target_semaphore(%494 : memref<!tpu.dma_semaphore, #tpu.memory_space<semaphore_mem>>)
    } else {
    }
    %c0_i32_4 = arith.constant 0 : i32
    %c0_i32_5 = arith.constant 0 : i32
    %c0_i32_6 = arith.constant 0 : i32
    %8 = tpu.memref_slice %arg2[%c0_i32_4, %c0_i32_6] : memref<64x128xf32, #tpu.memory_space<any>> -> memref<1x128xf32, #tpu.memory_space<any>>
    %9 = tpu.memref_squeeze %8 : memref<1x128xf32, #tpu.memory_space<any>> -> memref<128xf32, #tpu.memory_space<any>>
    %c0_i32_7 = arith.constant 0 : i32
    %10 = tpu.memref_slice %arg4[%0, %c0_i32_5, %c0_i32_7] : memref<2x32x128xf32, #tpu.memory_space<vmem>> -> memref<1x1x128xf32, #tpu.memory_space<vmem>>
    %11 = tpu.memref_squeeze %10 : memref<1x1x128xf32, #tpu.memory_space<vmem>> -> memref<128xf32, #tpu.memory_space<vmem>>
    %12 = tpu.memref_slice %arg5[%0] : memref<2x!tpu.dma_semaphore, #tpu.memory_space<semaphore_mem>> -> memref<1x!tpu.dma_semaphore, #tpu.memory_space<semaphore_mem>>
    %13 = tpu.memref_squeeze %12 : memref<1x!tpu.dma_semaphore, #tpu.memory_space<semaphore_mem>> -> memref<!tpu.dma_semaphore, #tpu.memory_space<semaphore_mem>>
    tpu.wait_dma2 semaphore(%13 : memref<!tpu.dma_semaphore, #tpu.memory_space<semaphore_mem>>) src(%9 : memref<128xf32, #tpu.memory_space<any>>) dst(%11 : memref<128xf32, #tpu.memory_space<vmem>>)
    %c0_i32_8 = arith.constant 0 : i32
    %c1_i32_9 = arith.constant 1 : i32
    %c0_i32_10 = arith.constant 0 : i32
    %14 = tpu.memref_slice %arg2[%c0_i32_8, %c0_i32_10] : memref<64x128xf32, #tpu.memory_space<any>> -> memref<1x128xf32, #tpu.memory_space<any>>
    %15 = tpu.memref_squeeze %14 : memref<1x128xf32, #tpu.memory_space<any>> -> memref<128xf32, #tpu.memory_space<any>>
    %c0_i32_11 = arith.constant 0 : i32
    %16 = tpu.memref_slice %arg4[%0, %c1_i32_9, %c0_i32_11] : memref<2x32x128xf32, #tpu.memory_space<vmem>> -> memref<1x1x128xf32, #tpu.memory_space<vmem>>
    %17 = tpu.memref_squeeze %16 : memref<1x1x128xf32, #tpu.memory_space<vmem>> -> memref<128xf32, #tpu.memory_space<vmem>>
    %18 = tpu.memref_slice %arg5[%0] : memref<2x!tpu.dma_semaphore, #tpu.memory_space<semaphore_mem>> -> memref<1x!tpu.dma_semaphore, #tpu.memory_space<semaphore_mem>>
    %19 = tpu.memref_squeeze %18 : memref<1x!tpu.dma_semaphore, #tpu.memory_space<semaphore_mem>> -> memref<!tpu.dma_semaphore, #tpu.memory_space<semaphore_mem>>
    tpu.wait_dma2 semaphore(%19 : memref<!tpu.dma_semaphore, #tpu.memory_space<semaphore_mem>>) src(%15 : memref<128xf32, #tpu.memory_space<any>>) dst(%17 : memref<128xf32, #tpu.memory_space<vmem>>)
    %c0_i32_12 = arith.constant 0 : i32
    %c2_i32 = arith.constant 2 : i32
    %c0_i32_13 = arith.constant 0 : i32
    %20 = tpu.memref_slice %arg2[%c0_i32_12, %c0_i32_13] : memref<64x128xf32, #tpu.memory_space<any>> -> memref<1x128xf32, #tpu.memory_space<any>>
    %21 = tpu.memref_squeeze %20 : memref<1x128xf32, #tpu.memory_space<any>> -> memref<128xf32, #tpu.memory_space<any>>
    %c0_i32_14 = arith.constant 0 : i32
    %22 = tpu.memref_slice %arg4[%0, %c2_i32, %c0_i32_14] : memref<2x32x128xf32, #tpu.memory_space<vmem>> -> memref<1x1x128xf32, #tpu.memory_space<vmem>>
    %23 = tpu.memref_squeeze %22 : memref<1x1x128xf32, #tpu.memory_space<vmem>> -> memref<128xf32, #tpu.memory_space<vmem>>
    %24 = tpu.memref_slice %arg5[%0] : memref<2x!tpu.dma_semaphore, #tpu.memory_space<semaphore_mem>> -> memref<1x!tpu.dma_semaphore, #tpu.memory_space<semaphore_mem>>
    %25 = tpu.memref_squeeze %24 : memref<1x!tpu.dma_semaphore, #tpu.memory_space<semaphore_mem>> -> memref<!tpu.dma_semaphore, #tpu.memory_space<semaphore_mem>>
    tpu.wait_dma2 semaphore(%25 : memref<!tpu.dma_semaphore, #tpu.memory_space<semaphore_mem>>) src(%21 : memref<128xf32, #tpu.memory_space<any>>) dst(%23 : memref<128xf32, #tpu.memory_space<vmem>>)
    %c0_i32_15 = arith.constant 0 : i32
    %c3_i32 = arith.constant 3 : i32
    %c0_i32_16 = arith.constant 0 : i32
    %26 = tpu.memref_slice %arg2[%c0_i32_15, %c0_i32_16] : memref<64x128xf32, #tpu.memory_space<any>> -> memref<1x128xf32, #tpu.memory_space<any>>
    %27 = tpu.memref_squeeze %26 : memref<1x128xf32, #tpu.memory_space<any>> -> memref<128xf32, #tpu.memory_space<any>>
    %c0_i32_17 = arith.constant 0 : i32
    %28 = tpu.memref_slice %arg4[%0, %c3_i32, %c0_i32_17] : memref<2x32x128xf32, #tpu.memory_space<vmem>> -> memref<1x1x128xf32, #tpu.memory_space<vmem>>
    %29 = tpu.memref_squeeze %28 : memref<1x1x128xf32, #tpu.memory_space<vmem>> -> memref<128xf32, #tpu.memory_space<vmem>>
    %30 = tpu.memref_slice %arg5[%0] : memref<2x!tpu.dma_semaphore, #tpu.memory_space<semaphore_mem>> -> memref<1x!tpu.dma_semaphore, #tpu.memory_space<semaphore_mem>>
    %31 = tpu.memref_squeeze %30 : memref<1x!tpu.dma_semaphore, #tpu.memory_space<semaphore_mem>> -> memref<!tpu.dma_semaphore, #tpu.memory_space<semaphore_mem>>
    tpu.wait_dma2 semaphore(%31 : memref<!tpu.dma_semaphore, #tpu.memory_space<semaphore_mem>>) src(%27 : memref<128xf32, #tpu.memory_space<any>>) dst(%29 : memref<128xf32, #tpu.memory_space<vmem>>)
    %c0_i32_18 = arith.constant 0 : i32
    %c4_i32 = arith.constant 4 : i32
    %c0_i32_19 = arith.constant 0 : i32
    %32 = tpu.memref_slice %arg2[%c0_i32_18, %c0_i32_19] : memref<64x128xf32, #tpu.memory_space<any>> -> memref<1x128xf32, #tpu.memory_space<any>>
    %33 = tpu.memref_squeeze %32 : memref<1x128xf32, #tpu.memory_space<any>> -> memref<128xf32, #tpu.memory_space<any>>
    %c0_i32_20 = arith.constant 0 : i32
    %34 = tpu.memref_slice %arg4[%0, %c4_i32, %c0_i32_20] : memref<2x32x128xf32, #tpu.memory_space<vmem>> -> memref<1x1x128xf32, #tpu.memory_space<vmem>>
    %35 = tpu.memref_squeeze %34 : memref<1x1x128xf32, #tpu.memory_space<vmem>> -> memref<128xf32, #tpu.memory_space<vmem>>
    %36 = tpu.memref_slice %arg5[%0] : memref<2x!tpu.dma_semaphore, #tpu.memory_space<semaphore_mem>> -> memref<1x!tpu.dma_semaphore, #tpu.memory_space<semaphore_mem>>
    %37 = tpu.memref_squeeze %36 : memref<1x!tpu.dma_semaphore, #tpu.memory_space<semaphore_mem>> -> memref<!tpu.dma_semaphore, #tpu.memory_space<semaphore_mem>>
    tpu.wait_dma2 semaphore(%37 : memref<!tpu.dma_semaphore, #tpu.memory_space<semaphore_mem>>) src(%33 : memref<128xf32, #tpu.memory_space<any>>) dst(%35 : memref<128xf32, #tpu.memory_space<vmem>>)
    %c0_i32_21 = arith.constant 0 : i32
    %c5_i32 = arith.constant 5 : i32
    %c0_i32_22 = arith.constant 0 : i32
    %38 = tpu.memref_slice %arg2[%c0_i32_21, %c0_i32_22] : memref<64x128xf32, #tpu.memory_space<any>> -> memref<1x128xf32, #tpu.memory_space<any>>
    %39 = tpu.memref_squeeze %38 : memref<1x128xf32, #tpu.memory_space<any>> -> memref<128xf32, #tpu.memory_space<any>>
    %c0_i32_23 = arith.constant 0 : i32
    %40 = tpu.memref_slice %arg4[%0, %c5_i32, %c0_i32_23] : memref<2x32x128xf32, #tpu.memory_space<vmem>> -> memref<1x1x128xf32, #tpu.memory_space<vmem>>
    %41 = tpu.memref_squeeze %40 : memref<1x1x128xf32, #tpu.memory_space<vmem>> -> memref<128xf32, #tpu.memory_space<vmem>>
    %42 = tpu.memref_slice %arg5[%0] : memref<2x!tpu.dma_semaphore, #tpu.memory_space<semaphore_mem>> -> memref<1x!tpu.dma_semaphore, #tpu.memory_space<semaphore_mem>>
    %43 = tpu.memref_squeeze %42 : memref<1x!tpu.dma_semaphore, #tpu.memory_space<semaphore_mem>> -> memref<!tpu.dma_semaphore, #tpu.memory_space<semaphore_mem>>
    tpu.wait_dma2 semaphore(%43 : memref<!tpu.dma_semaphore, #tpu.memory_space<semaphore_mem>>) src(%39 : memref<128xf32, #tpu.memory_space<any>>) dst(%41 : memref<128xf32, #tpu.memory_space<vmem>>)
    %c0_i32_24 = arith.constant 0 : i32
    %c6_i32 = arith.constant 6 : i32
    %c0_i32_25 = arith.constant 0 : i32
    %44 = tpu.memref_slice %arg2[%c0_i32_24, %c0_i32_25] : memref<64x128xf32, #tpu.memory_space<any>> -> memref<1x128xf32, #tpu.memory_space<any>>
    %45 = tpu.memref_squeeze %44 : memref<1x128xf32, #tpu.memory_space<any>> -> memref<128xf32, #tpu.memory_space<any>>
    %c0_i32_26 = arith.constant 0 : i32
    %46 = tpu.memref_slice %arg4[%0, %c6_i32, %c0_i32_26] : memref<2x32x128xf32, #tpu.memory_space<vmem>> -> memref<1x1x128xf32, #tpu.memory_space<vmem>>
    %47 = tpu.memref_squeeze %46 : memref<1x1x128xf32, #tpu.memory_space<vmem>> -> memref<128xf32, #tpu.memory_space<vmem>>
    %48 = tpu.memref_slice %arg5[%0] : memref<2x!tpu.dma_semaphore, #tpu.memory_space<semaphore_mem>> -> memref<1x!tpu.dma_semaphore, #tpu.memory_space<semaphore_mem>>
    %49 = tpu.memref_squeeze %48 : memref<1x!tpu.dma_semaphore, #tpu.memory_space<semaphore_mem>> -> memref<!tpu.dma_semaphore, #tpu.memory_space<semaphore_mem>>
    tpu.wait_dma2 semaphore(%49 : memref<!tpu.dma_semaphore, #tpu.memory_space<semaphore_mem>>) src(%45 : memref<128xf32, #tpu.memory_space<any>>) dst(%47 : memref<128xf32, #tpu.memory_space<vmem>>)
    %c0_i32_27 = arith.constant 0 : i32
    %c7_i32 = arith.constant 7 : i32
    %c0_i32_28 = arith.constant 0 : i32
    %50 = tpu.memref_slice %arg2[%c0_i32_27, %c0_i32_28] : memref<64x128xf32, #tpu.memory_space<any>> -> memref<1x128xf32, #tpu.memory_space<any>>
    %51 = tpu.memref_squeeze %50 : memref<1x128xf32, #tpu.memory_space<any>> -> memref<128xf32, #tpu.memory_space<any>>
    %c0_i32_29 = arith.constant 0 : i32
    %52 = tpu.memref_slice %arg4[%0, %c7_i32, %c0_i32_29] : memref<2x32x128xf32, #tpu.memory_space<vmem>> -> memref<1x1x128xf32, #tpu.memory_space<vmem>>
    %53 = tpu.memref_squeeze %52 : memref<1x1x128xf32, #tpu.memory_space<vmem>> -> memref<128xf32, #tpu.memory_space<vmem>>
    %54 = tpu.memref_slice %arg5[%0] : memref<2x!tpu.dma_semaphore, #tpu.memory_space<semaphore_mem>> -> memref<1x!tpu.dma_semaphore, #tpu.memory_space<semaphore_mem>>
    %55 = tpu.memref_squeeze %54 : memref<1x!tpu.dma_semaphore, #tpu.memory_space<semaphore_mem>> -> memref<!tpu.dma_semaphore, #tpu.memory_space<semaphore_mem>>
    tpu.wait_dma2 semaphore(%55 : memref<!tpu.dma_semaphore, #tpu.memory_space<semaphore_mem>>) src(%51 : memref<128xf32, #tpu.memory_space<any>>) dst(%53 : memref<128xf32, #tpu.memory_space<vmem>>)
    %c0_i32_30 = arith.constant 0 : i32
    %c8_i32 = arith.constant 8 : i32
    %c0_i32_31 = arith.constant 0 : i32
    %56 = tpu.memref_slice %arg2[%c0_i32_30, %c0_i32_31] : memref<64x128xf32, #tpu.memory_space<any>> -> memref<1x128xf32, #tpu.memory_space<any>>
    %57 = tpu.memref_squeeze %56 : memref<1x128xf32, #tpu.memory_space<any>> -> memref<128xf32, #tpu.memory_space<any>>
    %c0_i32_32 = arith.constant 0 : i32
    %58 = tpu.memref_slice %arg4[%0, %c8_i32, %c0_i32_32] : memref<2x32x128xf32, #tpu.memory_space<vmem>> -> memref<1x1x128xf32, #tpu.memory_space<vmem>>
    %59 = tpu.memref_squeeze %58 : memref<1x1x128xf32, #tpu.memory_space<vmem>> -> memref<128xf32, #tpu.memory_space<vmem>>
    %60 = tpu.memref_slice %arg5[%0] : memref<2x!tpu.dma_semaphore, #tpu.memory_space<semaphore_mem>> -> memref<1x!tpu.dma_semaphore, #tpu.memory_space<semaphore_mem>>
    %61 = tpu.memref_squeeze %60 : memref<1x!tpu.dma_semaphore, #tpu.memory_space<semaphore_mem>> -> memref<!tpu.dma_semaphore, #tpu.memory_space<semaphore_mem>>
    tpu.wait_dma2 semaphore(%61 : memref<!tpu.dma_semaphore, #tpu.memory_space<semaphore_mem>>) src(%57 : memref<128xf32, #tpu.memory_space<any>>) dst(%59 : memref<128xf32, #tpu.memory_space<vmem>>)
    %c0_i32_33 = arith.constant 0 : i32
    %c9_i32 = arith.constant 9 : i32
    %c0_i32_34 = arith.constant 0 : i32
    %62 = tpu.memref_slice %arg2[%c0_i32_33, %c0_i32_34] : memref<64x128xf32, #tpu.memory_space<any>> -> memref<1x128xf32, #tpu.memory_space<any>>
    %63 = tpu.memref_squeeze %62 : memref<1x128xf32, #tpu.memory_space<any>> -> memref<128xf32, #tpu.memory_space<any>>
    %c0_i32_35 = arith.constant 0 : i32
    %64 = tpu.memref_slice %arg4[%0, %c9_i32, %c0_i32_35] : memref<2x32x128xf32, #tpu.memory_space<vmem>> -> memref<1x1x128xf32, #tpu.memory_space<vmem>>
    %65 = tpu.memref_squeeze %64 : memref<1x1x128xf32, #tpu.memory_space<vmem>> -> memref<128xf32, #tpu.memory_space<vmem>>
    %66 = tpu.memref_slice %arg5[%0] : memref<2x!tpu.dma_semaphore, #tpu.memory_space<semaphore_mem>> -> memref<1x!tpu.dma_semaphore, #tpu.memory_space<semaphore_mem>>
    %67 = tpu.memref_squeeze %66 : memref<1x!tpu.dma_semaphore, #tpu.memory_space<semaphore_mem>> -> memref<!tpu.dma_semaphore, #tpu.memory_space<semaphore_mem>>
    tpu.wait_dma2 semaphore(%67 : memref<!tpu.dma_semaphore, #tpu.memory_space<semaphore_mem>>) src(%63 : memref<128xf32, #tpu.memory_space<any>>) dst(%65 : memref<128xf32, #tpu.memory_space<vmem>>)
    %c0_i32_36 = arith.constant 0 : i32
    %c10_i32 = arith.constant 10 : i32
    %c0_i32_37 = arith.constant 0 : i32
    %68 = tpu.memref_slice %arg2[%c0_i32_36, %c0_i32_37] : memref<64x128xf32, #tpu.memory_space<any>> -> memref<1x128xf32, #tpu.memory_space<any>>
    %69 = tpu.memref_squeeze %68 : memref<1x128xf32, #tpu.memory_space<any>> -> memref<128xf32, #tpu.memory_space<any>>
    %c0_i32_38 = arith.constant 0 : i32
    %70 = tpu.memref_slice %arg4[%0, %c10_i32, %c0_i32_38] : memref<2x32x128xf32, #tpu.memory_space<vmem>> -> memref<1x1x128xf32, #tpu.memory_space<vmem>>
    %71 = tpu.memref_squeeze %70 : memref<1x1x128xf32, #tpu.memory_space<vmem>> -> memref<128xf32, #tpu.memory_space<vmem>>
    %72 = tpu.memref_slice %arg5[%0] : memref<2x!tpu.dma_semaphore, #tpu.memory_space<semaphore_mem>> -> memref<1x!tpu.dma_semaphore, #tpu.memory_space<semaphore_mem>>
    %73 = tpu.memref_squeeze %72 : memref<1x!tpu.dma_semaphore, #tpu.memory_space<semaphore_mem>> -> memref<!tpu.dma_semaphore, #tpu.memory_space<semaphore_mem>>
    tpu.wait_dma2 semaphore(%73 : memref<!tpu.dma_semaphore, #tpu.memory_space<semaphore_mem>>) src(%69 : memref<128xf32, #tpu.memory_space<any>>) dst(%71 : memref<128xf32, #tpu.memory_space<vmem>>)
    %c0_i32_39 = arith.constant 0 : i32
    %c11_i32 = arith.constant 11 : i32
    %c0_i32_40 = arith.constant 0 : i32
    %74 = tpu.memref_slice %arg2[%c0_i32_39, %c0_i32_40] : memref<64x128xf32, #tpu.memory_space<any>> -> memref<1x128xf32, #tpu.memory_space<any>>
    %75 = tpu.memref_squeeze %74 : memref<1x128xf32, #tpu.memory_space<any>> -> memref<128xf32, #tpu.memory_space<any>>
    %c0_i32_41 = arith.constant 0 : i32
    %76 = tpu.memref_slice %arg4[%0, %c11_i32, %c0_i32_41] : memref<2x32x128xf32, #tpu.memory_space<vmem>> -> memref<1x1x128xf32, #tpu.memory_space<vmem>>
    %77 = tpu.memref_squeeze %76 : memref<1x1x128xf32, #tpu.memory_space<vmem>> -> memref<128xf32, #tpu.memory_space<vmem>>
    %78 = tpu.memref_slice %arg5[%0] : memref<2x!tpu.dma_semaphore, #tpu.memory_space<semaphore_mem>> -> memref<1x!tpu.dma_semaphore, #tpu.memory_space<semaphore_mem>>
    %79 = tpu.memref_squeeze %78 : memref<1x!tpu.dma_semaphore, #tpu.memory_space<semaphore_mem>> -> memref<!tpu.dma_semaphore, #tpu.memory_space<semaphore_mem>>
    tpu.wait_dma2 semaphore(%79 : memref<!tpu.dma_semaphore, #tpu.memory_space<semaphore_mem>>) src(%75 : memref<128xf32, #tpu.memory_space<any>>) dst(%77 : memref<128xf32, #tpu.memory_space<vmem>>)
    %c0_i32_42 = arith.constant 0 : i32
    %c12_i32 = arith.constant 12 : i32
    %c0_i32_43 = arith.constant 0 : i32
    %80 = tpu.memref_slice %arg2[%c0_i32_42, %c0_i32_43] : memref<64x128xf32, #tpu.memory_space<any>> -> memref<1x128xf32, #tpu.memory_space<any>>
    %81 = tpu.memref_squeeze %80 : memref<1x128xf32, #tpu.memory_space<any>> -> memref<128xf32, #tpu.memory_space<any>>
    %c0_i32_44 = arith.constant 0 : i32
    %82 = tpu.memref_slice %arg4[%0, %c12_i32, %c0_i32_44] : memref<2x32x128xf32, #tpu.memory_space<vmem>> -> memref<1x1x128xf32, #tpu.memory_space<vmem>>
    %83 = tpu.memref_squeeze %82 : memref<1x1x128xf32, #tpu.memory_space<vmem>> -> memref<128xf32, #tpu.memory_space<vmem>>
    %84 = tpu.memref_slice %arg5[%0] : memref<2x!tpu.dma_semaphore, #tpu.memory_space<semaphore_mem>> -> memref<1x!tpu.dma_semaphore, #tpu.memory_space<semaphore_mem>>
    %85 = tpu.memref_squeeze %84 : memref<1x!tpu.dma_semaphore, #tpu.memory_space<semaphore_mem>> -> memref<!tpu.dma_semaphore, #tpu.memory_space<semaphore_mem>>
    tpu.wait_dma2 semaphore(%85 : memref<!tpu.dma_semaphore, #tpu.memory_space<semaphore_mem>>) src(%81 : memref<128xf32, #tpu.memory_space<any>>) dst(%83 : memref<128xf32, #tpu.memory_space<vmem>>)
    %c0_i32_45 = arith.constant 0 : i32
    %c13_i32 = arith.constant 13 : i32
    %c0_i32_46 = arith.constant 0 : i32
    %86 = tpu.memref_slice %arg2[%c0_i32_45, %c0_i32_46] : memref<64x128xf32, #tpu.memory_space<any>> -> memref<1x128xf32, #tpu.memory_space<any>>
    %87 = tpu.memref_squeeze %86 : memref<1x128xf32, #tpu.memory_space<any>> -> memref<128xf32, #tpu.memory_space<any>>
    %c0_i32_47 = arith.constant 0 : i32
    %88 = tpu.memref_slice %arg4[%0, %c13_i32, %c0_i32_47] : memref<2x32x128xf32, #tpu.memory_space<vmem>> -> memref<1x1x128xf32, #tpu.memory_space<vmem>>
    %89 = tpu.memref_squeeze %88 : memref<1x1x128xf32, #tpu.memory_space<vmem>> -> memref<128xf32, #tpu.memory_space<vmem>>
    %90 = tpu.memref_slice %arg5[%0] : memref<2x!tpu.dma_semaphore, #tpu.memory_space<semaphore_mem>> -> memref<1x!tpu.dma_semaphore, #tpu.memory_space<semaphore_mem>>
    %91 = tpu.memref_squeeze %90 : memref<1x!tpu.dma_semaphore, #tpu.memory_space<semaphore_mem>> -> memref<!tpu.dma_semaphore, #tpu.memory_space<semaphore_mem>>
    tpu.wait_dma2 semaphore(%91 : memref<!tpu.dma_semaphore, #tpu.memory_space<semaphore_mem>>) src(%87 : memref<128xf32, #tpu.memory_space<any>>) dst(%89 : memref<128xf32, #tpu.memory_space<vmem>>)
    %c0_i32_48 = arith.constant 0 : i32
    %c14_i32 = arith.constant 14 : i32
    %c0_i32_49 = arith.constant 0 : i32
    %92 = tpu.memref_slice %arg2[%c0_i32_48, %c0_i32_49] : memref<64x128xf32, #tpu.memory_space<any>> -> memref<1x128xf32, #tpu.memory_space<any>>
    %93 = tpu.memref_squeeze %92 : memref<1x128xf32, #tpu.memory_space<any>> -> memref<128xf32, #tpu.memory_space<any>>
    %c0_i32_50 = arith.constant 0 : i32
    %94 = tpu.memref_slice %arg4[%0, %c14_i32, %c0_i32_50] : memref<2x32x128xf32, #tpu.memory_space<vmem>> -> memref<1x1x128xf32, #tpu.memory_space<vmem>>
    %95 = tpu.memref_squeeze %94 : memref<1x1x128xf32, #tpu.memory_space<vmem>> -> memref<128xf32, #tpu.memory_space<vmem>>
    %96 = tpu.memref_slice %arg5[%0] : memref<2x!tpu.dma_semaphore, #tpu.memory_space<semaphore_mem>> -> memref<1x!tpu.dma_semaphore, #tpu.memory_space<semaphore_mem>>
    %97 = tpu.memref_squeeze %96 : memref<1x!tpu.dma_semaphore, #tpu.memory_space<semaphore_mem>> -> memref<!tpu.dma_semaphore, #tpu.memory_space<semaphore_mem>>
    tpu.wait_dma2 semaphore(%97 : memref<!tpu.dma_semaphore, #tpu.memory_space<semaphore_mem>>) src(%93 : memref<128xf32, #tpu.memory_space<any>>) dst(%95 : memref<128xf32, #tpu.memory_space<vmem>>)
    %c0_i32_51 = arith.constant 0 : i32
    %c15_i32 = arith.constant 15 : i32
    %c0_i32_52 = arith.constant 0 : i32
    %98 = tpu.memref_slice %arg2[%c0_i32_51, %c0_i32_52] : memref<64x128xf32, #tpu.memory_space<any>> -> memref<1x128xf32, #tpu.memory_space<any>>
    %99 = tpu.memref_squeeze %98 : memref<1x128xf32, #tpu.memory_space<any>> -> memref<128xf32, #tpu.memory_space<any>>
    %c0_i32_53 = arith.constant 0 : i32
    %100 = tpu.memref_slice %arg4[%0, %c15_i32, %c0_i32_53] : memref<2x32x128xf32, #tpu.memory_space<vmem>> -> memref<1x1x128xf32, #tpu.memory_space<vmem>>
    %101 = tpu.memref_squeeze %100 : memref<1x1x128xf32, #tpu.memory_space<vmem>> -> memref<128xf32, #tpu.memory_space<vmem>>
    %102 = tpu.memref_slice %arg5[%0] : memref<2x!tpu.dma_semaphore, #tpu.memory_space<semaphore_mem>> -> memref<1x!tpu.dma_semaphore, #tpu.memory_space<semaphore_mem>>
    %103 = tpu.memref_squeeze %102 : memref<1x!tpu.dma_semaphore, #tpu.memory_space<semaphore_mem>> -> memref<!tpu.dma_semaphore, #tpu.memory_space<semaphore_mem>>
    tpu.wait_dma2 semaphore(%103 : memref<!tpu.dma_semaphore, #tpu.memory_space<semaphore_mem>>) src(%99 : memref<128xf32, #tpu.memory_space<any>>) dst(%101 : memref<128xf32, #tpu.memory_space<vmem>>)
    %c0_i32_54 = arith.constant 0 : i32
    %c16_i32 = arith.constant 16 : i32
    %c0_i32_55 = arith.constant 0 : i32
    %104 = tpu.memref_slice %arg2[%c0_i32_54, %c0_i32_55] : memref<64x128xf32, #tpu.memory_space<any>> -> memref<1x128xf32, #tpu.memory_space<any>>
    %105 = tpu.memref_squeeze %104 : memref<1x128xf32, #tpu.memory_space<any>> -> memref<128xf32, #tpu.memory_space<any>>
    %c0_i32_56 = arith.constant 0 : i32
    %106 = tpu.memref_slice %arg4[%0, %c16_i32, %c0_i32_56] : memref<2x32x128xf32, #tpu.memory_space<vmem>> -> memref<1x1x128xf32, #tpu.memory_space<vmem>>
    %107 = tpu.memref_squeeze %106 : memref<1x1x128xf32, #tpu.memory_space<vmem>> -> memref<128xf32, #tpu.memory_space<vmem>>
    %108 = tpu.memref_slice %arg5[%0] : memref<2x!tpu.dma_semaphore, #tpu.memory_space<semaphore_mem>> -> memref<1x!tpu.dma_semaphore, #tpu.memory_space<semaphore_mem>>
    %109 = tpu.memref_squeeze %108 : memref<1x!tpu.dma_semaphore, #tpu.memory_space<semaphore_mem>> -> memref<!tpu.dma_semaphore, #tpu.memory_space<semaphore_mem>>
    tpu.wait_dma2 semaphore(%109 : memref<!tpu.dma_semaphore, #tpu.memory_space<semaphore_mem>>) src(%105 : memref<128xf32, #tpu.memory_space<any>>) dst(%107 : memref<128xf32, #tpu.memory_space<vmem>>)
    %c0_i32_57 = arith.constant 0 : i32
    %c17_i32 = arith.constant 17 : i32
    %c0_i32_58 = arith.constant 0 : i32
    %110 = tpu.memref_slice %arg2[%c0_i32_57, %c0_i32_58] : memref<64x128xf32, #tpu.memory_space<any>> -> memref<1x128xf32, #tpu.memory_space<any>>
    %111 = tpu.memref_squeeze %110 : memref<1x128xf32, #tpu.memory_space<any>> -> memref<128xf32, #tpu.memory_space<any>>
    %c0_i32_59 = arith.constant 0 : i32
    %112 = tpu.memref_slice %arg4[%0, %c17_i32, %c0_i32_59] : memref<2x32x128xf32, #tpu.memory_space<vmem>> -> memref<1x1x128xf32, #tpu.memory_space<vmem>>
    %113 = tpu.memref_squeeze %112 : memref<1x1x128xf32, #tpu.memory_space<vmem>> -> memref<128xf32, #tpu.memory_space<vmem>>
    %114 = tpu.memref_slice %arg5[%0] : memref<2x!tpu.dma_semaphore, #tpu.memory_space<semaphore_mem>> -> memref<1x!tpu.dma_semaphore, #tpu.memory_space<semaphore_mem>>
    %115 = tpu.memref_squeeze %114 : memref<1x!tpu.dma_semaphore, #tpu.memory_space<semaphore_mem>> -> memref<!tpu.dma_semaphore, #tpu.memory_space<semaphore_mem>>
    tpu.wait_dma2 semaphore(%115 : memref<!tpu.dma_semaphore, #tpu.memory_space<semaphore_mem>>) src(%111 : memref<128xf32, #tpu.memory_space<any>>) dst(%113 : memref<128xf32, #tpu.memory_space<vmem>>)
    %c0_i32_60 = arith.constant 0 : i32
    %c18_i32 = arith.constant 18 : i32
    %c0_i32_61 = arith.constant 0 : i32
    %116 = tpu.memref_slice %arg2[%c0_i32_60, %c0_i32_61] : memref<64x128xf32, #tpu.memory_space<any>> -> memref<1x128xf32, #tpu.memory_space<any>>
    %117 = tpu.memref_squeeze %116 : memref<1x128xf32, #tpu.memory_space<any>> -> memref<128xf32, #tpu.memory_space<any>>
    %c0_i32_62 = arith.constant 0 : i32
    %118 = tpu.memref_slice %arg4[%0, %c18_i32, %c0_i32_62] : memref<2x32x128xf32, #tpu.memory_space<vmem>> -> memref<1x1x128xf32, #tpu.memory_space<vmem>>
    %119 = tpu.memref_squeeze %118 : memref<1x1x128xf32, #tpu.memory_space<vmem>> -> memref<128xf32, #tpu.memory_space<vmem>>
    %120 = tpu.memref_slice %arg5[%0] : memref<2x!tpu.dma_semaphore, #tpu.memory_space<semaphore_mem>> -> memref<1x!tpu.dma_semaphore, #tpu.memory_space<semaphore_mem>>
    %121 = tpu.memref_squeeze %120 : memref<1x!tpu.dma_semaphore, #tpu.memory_space<semaphore_mem>> -> memref<!tpu.dma_semaphore, #tpu.memory_space<semaphore_mem>>
    tpu.wait_dma2 semaphore(%121 : memref<!tpu.dma_semaphore, #tpu.memory_space<semaphore_mem>>) src(%117 : memref<128xf32, #tpu.memory_space<any>>) dst(%119 : memref<128xf32, #tpu.memory_space<vmem>>)
    %c0_i32_63 = arith.constant 0 : i32
    %c19_i32 = arith.constant 19 : i32
    %c0_i32_64 = arith.constant 0 : i32
    %122 = tpu.memref_slice %arg2[%c0_i32_63, %c0_i32_64] : memref<64x128xf32, #tpu.memory_space<any>> -> memref<1x128xf32, #tpu.memory_space<any>>
    %123 = tpu.memref_squeeze %122 : memref<1x128xf32, #tpu.memory_space<any>> -> memref<128xf32, #tpu.memory_space<any>>
    %c0_i32_65 = arith.constant 0 : i32
    %124 = tpu.memref_slice %arg4[%0, %c19_i32, %c0_i32_65] : memref<2x32x128xf32, #tpu.memory_space<vmem>> -> memref<1x1x128xf32, #tpu.memory_space<vmem>>
    %125 = tpu.memref_squeeze %124 : memref<1x1x128xf32, #tpu.memory_space<vmem>> -> memref<128xf32, #tpu.memory_space<vmem>>
    %126 = tpu.memref_slice %arg5[%0] : memref<2x!tpu.dma_semaphore, #tpu.memory_space<semaphore_mem>> -> memref<1x!tpu.dma_semaphore, #tpu.memory_space<semaphore_mem>>
    %127 = tpu.memref_squeeze %126 : memref<1x!tpu.dma_semaphore, #tpu.memory_space<semaphore_mem>> -> memref<!tpu.dma_semaphore, #tpu.memory_space<semaphore_mem>>
    tpu.wait_dma2 semaphore(%127 : memref<!tpu.dma_semaphore, #tpu.memory_space<semaphore_mem>>) src(%123 : memref<128xf32, #tpu.memory_space<any>>) dst(%125 : memref<128xf32, #tpu.memory_space<vmem>>)
    %c0_i32_66 = arith.constant 0 : i32
    %c20_i32 = arith.constant 20 : i32
    %c0_i32_67 = arith.constant 0 : i32
    %128 = tpu.memref_slice %arg2[%c0_i32_66, %c0_i32_67] : memref<64x128xf32, #tpu.memory_space<any>> -> memref<1x128xf32, #tpu.memory_space<any>>
    %129 = tpu.memref_squeeze %128 : memref<1x128xf32, #tpu.memory_space<any>> -> memref<128xf32, #tpu.memory_space<any>>
    %c0_i32_68 = arith.constant 0 : i32
    %130 = tpu.memref_slice %arg4[%0, %c20_i32, %c0_i32_68] : memref<2x32x128xf32, #tpu.memory_space<vmem>> -> memref<1x1x128xf32, #tpu.memory_space<vmem>>
    %131 = tpu.memref_squeeze %130 : memref<1x1x128xf32, #tpu.memory_space<vmem>> -> memref<128xf32, #tpu.memory_space<vmem>>
    %132 = tpu.memref_slice %arg5[%0] : memref<2x!tpu.dma_semaphore, #tpu.memory_space<semaphore_mem>> -> memref<1x!tpu.dma_semaphore, #tpu.memory_space<semaphore_mem>>
    %133 = tpu.memref_squeeze %132 : memref<1x!tpu.dma_semaphore, #tpu.memory_space<semaphore_mem>> -> memref<!tpu.dma_semaphore, #tpu.memory_space<semaphore_mem>>
    tpu.wait_dma2 semaphore(%133 : memref<!tpu.dma_semaphore, #tpu.memory_space<semaphore_mem>>) src(%129 : memref<128xf32, #tpu.memory_space<any>>) dst(%131 : memref<128xf32, #tpu.memory_space<vmem>>)
    %c0_i32_69 = arith.constant 0 : i32
    %c21_i32 = arith.constant 21 : i32
    %c0_i32_70 = arith.constant 0 : i32
    %134 = tpu.memref_slice %arg2[%c0_i32_69, %c0_i32_70] : memref<64x128xf32, #tpu.memory_space<any>> -> memref<1x128xf32, #tpu.memory_space<any>>
    %135 = tpu.memref_squeeze %134 : memref<1x128xf32, #tpu.memory_space<any>> -> memref<128xf32, #tpu.memory_space<any>>
    %c0_i32_71 = arith.constant 0 : i32
    %136 = tpu.memref_slice %arg4[%0, %c21_i32, %c0_i32_71] : memref<2x32x128xf32, #tpu.memory_space<vmem>> -> memref<1x1x128xf32, #tpu.memory_space<vmem>>
    %137 = tpu.memref_squeeze %136 : memref<1x1x128xf32, #tpu.memory_space<vmem>> -> memref<128xf32, #tpu.memory_space<vmem>>
    %138 = tpu.memref_slice %arg5[%0] : memref<2x!tpu.dma_semaphore, #tpu.memory_space<semaphore_mem>> -> memref<1x!tpu.dma_semaphore, #tpu.memory_space<semaphore_mem>>
    %139 = tpu.memref_squeeze %138 : memref<1x!tpu.dma_semaphore, #tpu.memory_space<semaphore_mem>> -> memref<!tpu.dma_semaphore, #tpu.memory_space<semaphore_mem>>
    tpu.wait_dma2 semaphore(%139 : memref<!tpu.dma_semaphore, #tpu.memory_space<semaphore_mem>>) src(%135 : memref<128xf32, #tpu.memory_space<any>>) dst(%137 : memref<128xf32, #tpu.memory_space<vmem>>)
    %c0_i32_72 = arith.constant 0 : i32
    %c22_i32 = arith.constant 22 : i32
    %c0_i32_73 = arith.constant 0 : i32
    %140 = tpu.memref_slice %arg2[%c0_i32_72, %c0_i32_73] : memref<64x128xf32, #tpu.memory_space<any>> -> memref<1x128xf32, #tpu.memory_space<any>>
    %141 = tpu.memref_squeeze %140 : memref<1x128xf32, #tpu.memory_space<any>> -> memref<128xf32, #tpu.memory_space<any>>
    %c0_i32_74 = arith.constant 0 : i32
    %142 = tpu.memref_slice %arg4[%0, %c22_i32, %c0_i32_74] : memref<2x32x128xf32, #tpu.memory_space<vmem>> -> memref<1x1x128xf32, #tpu.memory_space<vmem>>
    %143 = tpu.memref_squeeze %142 : memref<1x1x128xf32, #tpu.memory_space<vmem>> -> memref<128xf32, #tpu.memory_space<vmem>>
    %144 = tpu.memref_slice %arg5[%0] : memref<2x!tpu.dma_semaphore, #tpu.memory_space<semaphore_mem>> -> memref<1x!tpu.dma_semaphore, #tpu.memory_space<semaphore_mem>>
    %145 = tpu.memref_squeeze %144 : memref<1x!tpu.dma_semaphore, #tpu.memory_space<semaphore_mem>> -> memref<!tpu.dma_semaphore, #tpu.memory_space<semaphore_mem>>
    tpu.wait_dma2 semaphore(%145 : memref<!tpu.dma_semaphore, #tpu.memory_space<semaphore_mem>>) src(%141 : memref<128xf32, #tpu.memory_space<any>>) dst(%143 : memref<128xf32, #tpu.memory_space<vmem>>)
    %c0_i32_75 = arith.constant 0 : i32
    %c23_i32 = arith.constant 23 : i32
    %c0_i32_76 = arith.constant 0 : i32
    %146 = tpu.memref_slice %arg2[%c0_i32_75, %c0_i32_76] : memref<64x128xf32, #tpu.memory_space<any>> -> memref<1x128xf32, #tpu.memory_space<any>>
    %147 = tpu.memref_squeeze %146 : memref<1x128xf32, #tpu.memory_space<any>> -> memref<128xf32, #tpu.memory_space<any>>
    %c0_i32_77 = arith.constant 0 : i32
    %148 = tpu.memref_slice %arg4[%0, %c23_i32, %c0_i32_77] : memref<2x32x128xf32, #tpu.memory_space<vmem>> -> memref<1x1x128xf32, #tpu.memory_space<vmem>>
    %149 = tpu.memref_squeeze %148 : memref<1x1x128xf32, #tpu.memory_space<vmem>> -> memref<128xf32, #tpu.memory_space<vmem>>
    %150 = tpu.memref_slice %arg5[%0] : memref<2x!tpu.dma_semaphore, #tpu.memory_space<semaphore_mem>> -> memref<1x!tpu.dma_semaphore, #tpu.memory_space<semaphore_mem>>
    %151 = tpu.memref_squeeze %150 : memref<1x!tpu.dma_semaphore, #tpu.memory_space<semaphore_mem>> -> memref<!tpu.dma_semaphore, #tpu.memory_space<semaphore_mem>>
    tpu.wait_dma2 semaphore(%151 : memref<!tpu.dma_semaphore, #tpu.memory_space<semaphore_mem>>) src(%147 : memref<128xf32, #tpu.memory_space<any>>) dst(%149 : memref<128xf32, #tpu.memory_space<vmem>>)
    %c0_i32_78 = arith.constant 0 : i32
    %c24_i32 = arith.constant 24 : i32
    %c0_i32_79 = arith.constant 0 : i32
    %152 = tpu.memref_slice %arg2[%c0_i32_78, %c0_i32_79] : memref<64x128xf32, #tpu.memory_space<any>> -> memref<1x128xf32, #tpu.memory_space<any>>
    %153 = tpu.memref_squeeze %152 : memref<1x128xf32, #tpu.memory_space<any>> -> memref<128xf32, #tpu.memory_space<any>>
    %c0_i32_80 = arith.constant 0 : i32
    %154 = tpu.memref_slice %arg4[%0, %c24_i32, %c0_i32_80] : memref<2x32x128xf32, #tpu.memory_space<vmem>> -> memref<1x1x128xf32, #tpu.memory_space<vmem>>
    %155 = tpu.memref_squeeze %154 : memref<1x1x128xf32, #tpu.memory_space<vmem>> -> memref<128xf32, #tpu.memory_space<vmem>>
    %156 = tpu.memref_slice %arg5[%0] : memref<2x!tpu.dma_semaphore, #tpu.memory_space<semaphore_mem>> -> memref<1x!tpu.dma_semaphore, #tpu.memory_space<semaphore_mem>>
    %157 = tpu.memref_squeeze %156 : memref<1x!tpu.dma_semaphore, #tpu.memory_space<semaphore_mem>> -> memref<!tpu.dma_semaphore, #tpu.memory_space<semaphore_mem>>
    tpu.wait_dma2 semaphore(%157 : memref<!tpu.dma_semaphore, #tpu.memory_space<semaphore_mem>>) src(%153 : memref<128xf32, #tpu.memory_space<any>>) dst(%155 : memref<128xf32, #tpu.memory_space<vmem>>)
    %c0_i32_81 = arith.constant 0 : i32
    %c25_i32 = arith.constant 25 : i32
    %c0_i32_82 = arith.constant 0 : i32
    %158 = tpu.memref_slice %arg2[%c0_i32_81, %c0_i32_82] : memref<64x128xf32, #tpu.memory_space<any>> -> memref<1x128xf32, #tpu.memory_space<any>>
    %159 = tpu.memref_squeeze %158 : memref<1x128xf32, #tpu.memory_space<any>> -> memref<128xf32, #tpu.memory_space<any>>
    %c0_i32_83 = arith.constant 0 : i32
    %160 = tpu.memref_slice %arg4[%0, %c25_i32, %c0_i32_83] : memref<2x32x128xf32, #tpu.memory_space<vmem>> -> memref<1x1x128xf32, #tpu.memory_space<vmem>>
    %161 = tpu.memref_squeeze %160 : memref<1x1x128xf32, #tpu.memory_space<vmem>> -> memref<128xf32, #tpu.memory_space<vmem>>
    %162 = tpu.memref_slice %arg5[%0] : memref<2x!tpu.dma_semaphore, #tpu.memory_space<semaphore_mem>> -> memref<1x!tpu.dma_semaphore, #tpu.memory_space<semaphore_mem>>
    %163 = tpu.memref_squeeze %162 : memref<1x!tpu.dma_semaphore, #tpu.memory_space<semaphore_mem>> -> memref<!tpu.dma_semaphore, #tpu.memory_space<semaphore_mem>>
    tpu.wait_dma2 semaphore(%163 : memref<!tpu.dma_semaphore, #tpu.memory_space<semaphore_mem>>) src(%159 : memref<128xf32, #tpu.memory_space<any>>) dst(%161 : memref<128xf32, #tpu.memory_space<vmem>>)
    %c0_i32_84 = arith.constant 0 : i32
    %c26_i32 = arith.constant 26 : i32
    %c0_i32_85 = arith.constant 0 : i32
    %164 = tpu.memref_slice %arg2[%c0_i32_84, %c0_i32_85] : memref<64x128xf32, #tpu.memory_space<any>> -> memref<1x128xf32, #tpu.memory_space<any>>
    %165 = tpu.memref_squeeze %164 : memref<1x128xf32, #tpu.memory_space<any>> -> memref<128xf32, #tpu.memory_space<any>>
    %c0_i32_86 = arith.constant 0 : i32
    %166 = tpu.memref_slice %arg4[%0, %c26_i32, %c0_i32_86] : memref<2x32x128xf32, #tpu.memory_space<vmem>> -> memref<1x1x128xf32, #tpu.memory_space<vmem>>
    %167 = tpu.memref_squeeze %166 : memref<1x1x128xf32, #tpu.memory_space<vmem>> -> memref<128xf32, #tpu.memory_space<vmem>>
    %168 = tpu.memref_slice %arg5[%0] : memref<2x!tpu.dma_semaphore, #tpu.memory_space<semaphore_mem>> -> memref<1x!tpu.dma_semaphore, #tpu.memory_space<semaphore_mem>>
    %169 = tpu.memref_squeeze %168 : memref<1x!tpu.dma_semaphore, #tpu.memory_space<semaphore_mem>> -> memref<!tpu.dma_semaphore, #tpu.memory_space<semaphore_mem>>
    tpu.wait_dma2 semaphore(%169 : memref<!tpu.dma_semaphore, #tpu.memory_space<semaphore_mem>>) src(%165 : memref<128xf32, #tpu.memory_space<any>>) dst(%167 : memref<128xf32, #tpu.memory_space<vmem>>)
    %c0_i32_87 = arith.constant 0 : i32
    %c27_i32 = arith.constant 27 : i32
    %c0_i32_88 = arith.constant 0 : i32
    %170 = tpu.memref_slice %arg2[%c0_i32_87, %c0_i32_88] : memref<64x128xf32, #tpu.memory_space<any>> -> memref<1x128xf32, #tpu.memory_space<any>>
    %171 = tpu.memref_squeeze %170 : memref<1x128xf32, #tpu.memory_space<any>> -> memref<128xf32, #tpu.memory_space<any>>
    %c0_i32_89 = arith.constant 0 : i32
    %172 = tpu.memref_slice %arg4[%0, %c27_i32, %c0_i32_89] : memref<2x32x128xf32, #tpu.memory_space<vmem>> -> memref<1x1x128xf32, #tpu.memory_space<vmem>>
    %173 = tpu.memref_squeeze %172 : memref<1x1x128xf32, #tpu.memory_space<vmem>> -> memref<128xf32, #tpu.memory_space<vmem>>
    %174 = tpu.memref_slice %arg5[%0] : memref<2x!tpu.dma_semaphore, #tpu.memory_space<semaphore_mem>> -> memref<1x!tpu.dma_semaphore, #tpu.memory_space<semaphore_mem>>
    %175 = tpu.memref_squeeze %174 : memref<1x!tpu.dma_semaphore, #tpu.memory_space<semaphore_mem>> -> memref<!tpu.dma_semaphore, #tpu.memory_space<semaphore_mem>>
    tpu.wait_dma2 semaphore(%175 : memref<!tpu.dma_semaphore, #tpu.memory_space<semaphore_mem>>) src(%171 : memref<128xf32, #tpu.memory_space<any>>) dst(%173 : memref<128xf32, #tpu.memory_space<vmem>>)
    %c0_i32_90 = arith.constant 0 : i32
    %c28_i32 = arith.constant 28 : i32
    %c0_i32_91 = arith.constant 0 : i32
    %176 = tpu.memref_slice %arg2[%c0_i32_90, %c0_i32_91] : memref<64x128xf32, #tpu.memory_space<any>> -> memref<1x128xf32, #tpu.memory_space<any>>
    %177 = tpu.memref_squeeze %176 : memref<1x128xf32, #tpu.memory_space<any>> -> memref<128xf32, #tpu.memory_space<any>>
    %c0_i32_92 = arith.constant 0 : i32
    %178 = tpu.memref_slice %arg4[%0, %c28_i32, %c0_i32_92] : memref<2x32x128xf32, #tpu.memory_space<vmem>> -> memref<1x1x128xf32, #tpu.memory_space<vmem>>
    %179 = tpu.memref_squeeze %178 : memref<1x1x128xf32, #tpu.memory_space<vmem>> -> memref<128xf32, #tpu.memory_space<vmem>>
    %180 = tpu.memref_slice %arg5[%0] : memref<2x!tpu.dma_semaphore, #tpu.memory_space<semaphore_mem>> -> memref<1x!tpu.dma_semaphore, #tpu.memory_space<semaphore_mem>>
    %181 = tpu.memref_squeeze %180 : memref<1x!tpu.dma_semaphore, #tpu.memory_space<semaphore_mem>> -> memref<!tpu.dma_semaphore, #tpu.memory_space<semaphore_mem>>
    tpu.wait_dma2 semaphore(%181 : memref<!tpu.dma_semaphore, #tpu.memory_space<semaphore_mem>>) src(%177 : memref<128xf32, #tpu.memory_space<any>>) dst(%179 : memref<128xf32, #tpu.memory_space<vmem>>)
    %c0_i32_93 = arith.constant 0 : i32
    %c29_i32 = arith.constant 29 : i32
    %c0_i32_94 = arith.constant 0 : i32
    %182 = tpu.memref_slice %arg2[%c0_i32_93, %c0_i32_94] : memref<64x128xf32, #tpu.memory_space<any>> -> memref<1x128xf32, #tpu.memory_space<any>>
    %183 = tpu.memref_squeeze %182 : memref<1x128xf32, #tpu.memory_space<any>> -> memref<128xf32, #tpu.memory_space<any>>
    %c0_i32_95 = arith.constant 0 : i32
    %184 = tpu.memref_slice %arg4[%0, %c29_i32, %c0_i32_95] : memref<2x32x128xf32, #tpu.memory_space<vmem>> -> memref<1x1x128xf32, #tpu.memory_space<vmem>>
    %185 = tpu.memref_squeeze %184 : memref<1x1x128xf32, #tpu.memory_space<vmem>> -> memref<128xf32, #tpu.memory_space<vmem>>
    %186 = tpu.memref_slice %arg5[%0] : memref<2x!tpu.dma_semaphore, #tpu.memory_space<semaphore_mem>> -> memref<1x!tpu.dma_semaphore, #tpu.memory_space<semaphore_mem>>
    %187 = tpu.memref_squeeze %186 : memref<1x!tpu.dma_semaphore, #tpu.memory_space<semaphore_mem>> -> memref<!tpu.dma_semaphore, #tpu.memory_space<semaphore_mem>>
    tpu.wait_dma2 semaphore(%187 : memref<!tpu.dma_semaphore, #tpu.memory_space<semaphore_mem>>) src(%183 : memref<128xf32, #tpu.memory_space<any>>) dst(%185 : memref<128xf32, #tpu.memory_space<vmem>>)
    %c0_i32_96 = arith.constant 0 : i32
    %c30_i32 = arith.constant 30 : i32
    %c0_i32_97 = arith.constant 0 : i32
    %188 = tpu.memref_slice %arg2[%c0_i32_96, %c0_i32_97] : memref<64x128xf32, #tpu.memory_space<any>> -> memref<1x128xf32, #tpu.memory_space<any>>
    %189 = tpu.memref_squeeze %188 : memref<1x128xf32, #tpu.memory_space<any>> -> memref<128xf32, #tpu.memory_space<any>>
    %c0_i32_98 = arith.constant 0 : i32
    %190 = tpu.memref_slice %arg4[%0, %c30_i32, %c0_i32_98] : memref<2x32x128xf32, #tpu.memory_space<vmem>> -> memref<1x1x128xf32, #tpu.memory_space<vmem>>
    %191 = tpu.memref_squeeze %190 : memref<1x1x128xf32, #tpu.memory_space<vmem>> -> memref<128xf32, #tpu.memory_space<vmem>>
    %192 = tpu.memref_slice %arg5[%0] : memref<2x!tpu.dma_semaphore, #tpu.memory_space<semaphore_mem>> -> memref<1x!tpu.dma_semaphore, #tpu.memory_space<semaphore_mem>>
    %193 = tpu.memref_squeeze %192 : memref<1x!tpu.dma_semaphore, #tpu.memory_space<semaphore_mem>> -> memref<!tpu.dma_semaphore, #tpu.memory_space<semaphore_mem>>
    tpu.wait_dma2 semaphore(%193 : memref<!tpu.dma_semaphore, #tpu.memory_space<semaphore_mem>>) src(%189 : memref<128xf32, #tpu.memory_space<any>>) dst(%191 : memref<128xf32, #tpu.memory_space<vmem>>)
    %c0_i32_99 = arith.constant 0 : i32
    %c31_i32 = arith.constant 31 : i32
    %c0_i32_100 = arith.constant 0 : i32
    %194 = tpu.memref_slice %arg2[%c0_i32_99, %c0_i32_100] : memref<64x128xf32, #tpu.memory_space<any>> -> memref<1x128xf32, #tpu.memory_space<any>>
    %195 = tpu.memref_squeeze %194 : memref<1x128xf32, #tpu.memory_space<any>> -> memref<128xf32, #tpu.memory_space<any>>
    %c0_i32_101 = arith.constant 0 : i32
    %196 = tpu.memref_slice %arg4[%0, %c31_i32, %c0_i32_101] : memref<2x32x128xf32, #tpu.memory_space<vmem>> -> memref<1x1x128xf32, #tpu.memory_space<vmem>>
    %197 = tpu.memref_squeeze %196 : memref<1x1x128xf32, #tpu.memory_space<vmem>> -> memref<128xf32, #tpu.memory_space<vmem>>
    %198 = tpu.memref_slice %arg5[%0] : memref<2x!tpu.dma_semaphore, #tpu.memory_space<semaphore_mem>> -> memref<1x!tpu.dma_semaphore, #tpu.memory_space<semaphore_mem>>
    %199 = tpu.memref_squeeze %198 : memref<1x!tpu.dma_semaphore, #tpu.memory_space<semaphore_mem>> -> memref<!tpu.dma_semaphore, #tpu.memory_space<semaphore_mem>>
    tpu.wait_dma2 semaphore(%199 : memref<!tpu.dma_semaphore, #tpu.memory_space<semaphore_mem>>) src(%195 : memref<128xf32, #tpu.memory_space<any>>) dst(%197 : memref<128xf32, #tpu.memory_space<vmem>>)
    %200 = arith.index_cast %0 : i32 to index
    %c0 = arith.constant 0 : index
    %c0_102 = arith.constant 0 : index
    %201 = vector.load %arg4[%200, %c0, %c0_102] : memref<2x32x128xf32, #tpu.memory_space<vmem>>, vector<1x32x128xf32>
    %202 = vector.shape_cast %201 : vector<1x32x128xf32> to vector<32x128xf32>
    %c0_103 = arith.constant 0 : index
    %c0_104 = arith.constant 0 : index
    %203 = vector.load %arg3[%c0_103, %c0_104] : memref<32x128xf32, #tpu.memory_space<vmem>>, vector<32x128xf32>
    tpu.vector_store %arg3[%c0_103, %c0_104], %202 {strides = array<i32>} : memref<32x128xf32, #tpu.memory_space<vmem>>, vector<32x128xf32>,
    return
  }
  func.func @transform_1(%arg0: i32, %arg1: memref<32xi32, #tpu.memory_space<smem>>) -> (i32, i32) {
    %c0_i32 = arith.constant 0 : i32
    %c0_i32_0 = arith.constant 0 : i32
    return %arg0, %c0_i32 : i32, i32
  }
}

</mosaic_0001>

<llo_original>
// kernel: tpu_custom_call.1
$region0: #{tpu_custom_call.1}
  #allocation0 [shape = 'u32[]', space=smem, size = 0x4, offset = 0x4, fixed_abs, tag = 'smem constant byte address 0x4 - core index']
  #allocation1 [shape = 'u32[144,128]{1,0:T(1,128)}', space=vmem, size = 0x12000, scoped, tag = 'internal scratch']
  #allocation2 [shape = 'f32[2,32,128]{2,1,0:T(8,128)}', space=vmem, size = 0x8000, scoped, tag = 'scratch operand']
  #allocation3 [shape = 's32[2]{0}', space=sflag, size = 0x8, scoped, tag = 'scratch operand']
  #allocation4 [shape = 's32[1]{0}', space=sflag, size = 0x4, scoped, tag = 'scoped memory for tpu_custom_call.1']
  #allocation5 [shape = 'u8[512]{0}', space=smem, size = 0x200, scoped, tag = 'prefetched SMEM operand 0']
  #allocation8 [shape = 's32[]', space=sflag, size = 0x4, offset = 0, fixed_abs, tag = 'sflag constant byte address 0x0 - dummy sync flag']
  #allocation9 [shape = 's32[]', space=sflag, size = 0x4, offset = 0, fixed_abs, tag = 'sflag constant byte address 0x0 - dummy sync flag']
  #allocation10 [shape = 'u32[]', space=smem, size = 0x4, offset = 0x44, fixed_abs, tag = 'smem constant byte address 0x44 - assertion arg 0']
  #allocation11 [shape = 'u32[]', space=smem, size = 0x4, offset = 0x48, fixed_abs, tag = 'smem constant byte address 0x48 - assertion arg 1']
  #allocation12 [shape = 's32[]', space=sflag, size = 0x4, offset = 0, fixed_abs, tag = 'sflag constant byte address 0x0 - dummy sync flag']
  #allocation13 [shape = 's32[]', space=sflag, size = 0x4, offset = 0, fixed_abs, tag = 'sflag constant byte address 0x0 - dummy sync flag']
  #allocation14 [shape = 's32[]', space=sflag, size = 0x4, offset = 0, fixed_abs, tag = 'sflag constant byte address 0x0 - dummy sync flag']
  #allocation15 [shape = 's32[]', space=sflag, size = 0x4, offset = 0, fixed_abs, tag = 'sflag constant byte address 0x0 - dummy sync flag']
  #allocation16 [shape = 's32[]', space=sflag, size = 0x4, offset = 0, fixed_abs, tag = 'sflag constant byte address 0x0 - dummy sync flag']
  #allocation17 [shape = 's32[]', space=sflag, size = 0x4, offset = 0, fixed_abs, tag = 'sflag constant byte address 0x0 - dummy sync flag']
  #allocation18 [shape = 's32[]', space=sflag, size = 0x4, offset = 0, fixed_abs, tag = 'sflag constant byte address 0x0 - dummy sync flag']
  #allocation19 [shape = 's32[]', space=sflag, size = 0x4, offset = 0, fixed_abs, tag = 'sflag constant byte address 0x0 - dummy sync flag']
  #allocation20 [shape = 's32[]', space=sflag, size = 0x4, offset = 0, fixed_abs, tag = 'sflag constant byte address 0x0 - dummy sync flag']
  #allocation21 [shape = 's32[]', space=sflag, size = 0x4, offset = 0, fixed_abs, tag = 'sflag constant byte address 0x0 - dummy sync flag']
  #allocation22 [shape = 's32[]', space=sflag, size = 0x4, offset = 0, fixed_abs, tag = 'sflag constant byte address 0x0 - dummy sync flag']
  #allocation23 [shape = 's32[]', space=sflag, size = 0x4, offset = 0, fixed_abs, tag = 'sflag constant byte address 0x0 - dummy sync flag']
  #allocation24 [shape = 's32[]', space=sflag, size = 0x4, offset = 0, fixed_abs, tag = 'sflag constant byte address 0x0 - dummy sync flag']
  #allocation25 [shape = 's32[]', space=sflag, size = 0x4, offset = 0, fixed_abs, tag = 'sflag constant byte address 0x0 - dummy sync flag']
  #allocation26 [shape = 's32[]', space=sflag, size = 0x4, offset = 0, fixed_abs, tag = 'sflag constant byte address 0x0 - dummy sync flag']
  #allocation27 [shape = 's32[]', space=sflag, size = 0x4, offset = 0, fixed_abs, tag = 'sflag constant byte address 0x0 - dummy sync flag']
  #allocation28 [shape = 's32[]', space=sflag, size = 0x4, offset = 0, fixed_abs, tag = 'sflag constant byte address 0x0 - dummy sync flag']
  #allocation29 [shape = 's32[]', space=sflag, size = 0x4, offset = 0, fixed_abs, tag = 'sflag constant byte address 0x0 - dummy sync flag']
  #allocation30 [shape = 's32[]', space=sflag, size = 0x4, offset = 0, fixed_abs, tag = 'sflag constant byte address 0x0 - dummy sync flag']
  #allocation31 [shape = 's32[]', space=sflag, size = 0x4, offset = 0, fixed_abs, tag = 'sflag constant byte address 0x0 - dummy sync flag']
  #allocation32 [shape = 's32[]', space=sflag, size = 0x4, offset = 0, fixed_abs, tag = 'sflag constant byte address 0x0 - dummy sync flag']
  #allocation33 [shape = 's32[]', space=sflag, size = 0x4, offset = 0, fixed_abs, tag = 'sflag constant byte address 0x0 - dummy sync flag']
  #allocation34 [shape = 's32[]', space=sflag, size = 0x4, offset = 0, fixed_abs, tag = 'sflag constant byte address 0x0 - dummy sync flag']
  #allocation35 [shape = 's32[]', space=sflag, size = 0x4, offset = 0, fixed_abs, tag = 'sflag constant byte address 0x0 - dummy sync flag']
  #allocation36 [shape = 's32[]', space=sflag, size = 0x4, offset = 0, fixed_abs, tag = 'sflag constant byte address 0x0 - dummy sync flag']
  #allocation37 [shape = 's32[]', space=sflag, size = 0x4, offset = 0, fixed_abs, tag = 'sflag constant byte address 0x0 - dummy sync flag']
  #allocation38 [shape = 's32[]', space=sflag, size = 0x4, offset = 0, fixed_abs, tag = 'sflag constant byte address 0x0 - dummy sync flag']
  #allocation39 [shape = 's32[]', space=sflag, size = 0x4, offset = 0, fixed_abs, tag = 'sflag constant byte address 0x0 - dummy sync flag']
  #allocation40 [shape = 's32[]', space=sflag, size = 0x4, offset = 0, fixed_abs, tag = 'sflag constant byte address 0x0 - dummy sync flag']
  #allocation41 [shape = 's32[]', space=sflag, size = 0x4, offset = 0, fixed_abs, tag = 'sflag constant byte address 0x0 - dummy sync flag']
  #allocation42 [shape = 's32[]', space=sflag, size = 0x4, offset = 0, fixed_abs, tag = 'sflag constant byte address 0x0 - dummy sync flag']
  #allocation43 [shape = 's32[]', space=sflag, size = 0x4, offset = 0, fixed_abs, tag = 'sflag constant byte address 0x0 - dummy sync flag']
  #allocation44 [shape = 's32[]', space=sflag, size = 0x4, offset = 0, fixed_abs, tag = 'sflag constant byte address 0x0 - dummy sync flag']
  #allocation45 [shape = 's32[]', space=sflag, size = 0x4, offset = 0, fixed_abs, tag = 'sflag constant byte address 0x0 - dummy sync flag']
  #allocation46 [shape = 's32[]', space=sflag, size = 0x4, offset = 0, fixed_abs, tag = 'sflag constant byte address 0x0 - dummy sync flag']
  #allocation47 [shape = 's32[]', space=sflag, size = 0x4, offset = 0, fixed_abs, tag = 'sflag constant byte address 0x0 - dummy sync flag']
  #allocation48 [shape = 's32[]', space=sflag, size = 0x4, offset = 0, fixed_abs, tag = 'sflag constant byte address 0x0 - dummy sync flag']
  #allocation49 [shape = 's32[]', space=sflag, size = 0x4, offset = 0, fixed_abs, tag = 'sflag constant byte address 0x0 - dummy sync flag']
  #allocation50 [shape = 's32[]', space=sflag, size = 0x4, offset = 0, fixed_abs, tag = 'sflag constant byte address 0x0 - dummy sync flag']
  #allocation51 [shape = 's32[]', space=sflag, size = 0x4, offset = 0, fixed_abs, tag = 'sflag constant byte address 0x0 - dummy sync flag']
  #allocation52 [shape = 's32[]', space=sflag, size = 0x4, offset = 0, fixed_abs, tag = 'sflag constant byte address 0x0 - dummy sync flag']
  #allocation53 [shape = 's32[]', space=sflag, size = 0x4, offset = 0, fixed_abs, tag = 'sflag constant byte address 0x0 - dummy sync flag']
  #allocation54 [shape = 's32[]', space=sflag, size = 0x4, offset = 0, fixed_abs, tag = 'sflag constant byte address 0x0 - dummy sync flag']
  #allocation55 [shape = 's32[]', space=sflag, size = 0x4, offset = 0, fixed_abs, tag = 'sflag constant byte address 0x0 - dummy sync flag']
  #allocation56 [shape = 's32[]', space=sflag, size = 0x4, offset = 0, fixed_abs, tag = 'sflag constant byte address 0x0 - dummy sync flag']
  #allocation57 [shape = 's32[]', space=sflag, size = 0x4, offset = 0, fixed_abs, tag = 'sflag constant byte address 0x0 - dummy sync flag']
  #allocation58 [shape = 's32[]', space=sflag, size = 0x4, offset = 0, fixed_abs, tag = 'sflag constant byte address 0x0 - dummy sync flag']
  #allocation59 [shape = 's32[]', space=sflag, size = 0x4, offset = 0, fixed_abs, tag = 'sflag constant byte address 0x0 - dummy sync flag']
  #allocation60 [shape = 's32[]', space=sflag, size = 0x4, offset = 0, fixed_abs, tag = 'sflag constant byte address 0x0 - dummy sync flag']
  #allocation61 [shape = 's32[]', space=sflag, size = 0x4, offset = 0, fixed_abs, tag = 'sflag constant byte address 0x0 - dummy sync flag']
  #allocation62 [shape = 's32[]', space=sflag, size = 0x4, offset = 0, fixed_abs, tag = 'sflag constant byte address 0x0 - dummy sync flag']
  #allocation63 [shape = 's32[]', space=sflag, size = 0x4, offset = 0, fixed_abs, tag = 'sflag constant byte address 0x0 - dummy sync flag']
  #allocation64 [shape = 's32[]', space=sflag, size = 0x4, offset = 0, fixed_abs, tag = 'sflag constant byte address 0x0 - dummy sync flag']
  #allocation65 [shape = 's32[]', space=sflag, size = 0x4, offset = 0, fixed_abs, tag = 'sflag constant byte address 0x0 - dummy sync flag']
  #allocation66 [shape = 's32[]', space=sflag, size = 0x4, offset = 0, fixed_abs, tag = 'sflag constant byte address 0x0 - dummy sync flag']
  #allocation67 [shape = 's32[]', space=sflag, size = 0x4, offset = 0, fixed_abs, tag = 'sflag constant byte address 0x0 - dummy sync flag']
  #allocation68 [shape = 's32[]', space=sflag, size = 0x4, offset = 0, fixed_abs, tag = 'sflag constant byte address 0x0 - dummy sync flag']
  #allocation69 [shape = 's32[]', space=sflag, size = 0x4, offset = 0, fixed_abs, tag = 'sflag constant byte address 0x0 - dummy sync flag']
  #allocation70 [shape = 's32[]', space=sflag, size = 0x4, offset = 0, fixed_abs, tag = 'sflag constant byte address 0x0 - dummy sync flag']
  #allocation71 [shape = 's32[]', space=sflag, size = 0x4, offset = 0, fixed_abs, tag = 'sflag constant byte address 0x0 - dummy sync flag']
  #allocation72 [shape = 's32[]', space=sflag, size = 0x4, offset = 0, fixed_abs, tag = 'sflag constant byte address 0x0 - dummy sync flag']
  #allocation73 [shape = 's32[]', space=sflag, size = 0x4, offset = 0, fixed_abs, tag = 'sflag constant byte address 0x0 - dummy sync flag']
  #allocation74 [shape = 's32[]', space=sflag, size = 0x4, offset = 0, fixed_abs, tag = 'sflag constant byte address 0x0 - dummy sync flag']
  #allocation75 [shape = 's32[]', space=sflag, size = 0x4, offset = 0, fixed_abs, tag = 'sflag constant byte address 0x0 - dummy sync flag']
  #allocation76 [shape = 's32[]', space=sflag, size = 0x4, offset = 0, fixed_abs, tag = 'sflag constant byte address 0x0 - dummy sync flag']
  #allocation77 [shape = 's32[]', space=sflag, size = 0x4, offset = 0, fixed_abs, tag = 'sflag constant byte address 0x0 - dummy sync flag']
  #allocation78 [shape = 's32[]', space=sflag, size = 0x4, offset = 0, fixed_abs, tag = 'sflag constant byte address 0x0 - dummy sync flag']
  #allocation79 [shape = 's32[]', space=sflag, size = 0x4, offset = 0, fixed_abs, tag = 'sflag constant byte address 0x0 - dummy sync flag']
  #allocation80 [shape = 's32[]', space=sflag, size = 0x4, offset = 0, fixed_abs, tag = 'sflag constant byte address 0x0 - dummy sync flag']
  #allocation81 [shape = 's32[]', space=sflag, size = 0x4, offset = 0, fixed_abs, tag = 'sflag constant byte address 0x0 - dummy sync flag']
  #allocation82 [shape = 's32[]', space=sflag, size = 0x4, offset = 0, fixed_abs, tag = 'sflag constant byte address 0x0 - dummy sync flag']
  #allocation83 [shape = 's32[]', space=sflag, size = 0x4, offset = 0, fixed_abs, tag = 'sflag constant byte address 0x0 - dummy sync flag']
  #allocation84 [shape = 's32[]', space=sflag, size = 0x4, offset = 0, fixed_abs, tag = 'sflag constant byte address 0x0 - dummy sync flag']
  #allocation85 [shape = 's32[]', space=sflag, size = 0x4, offset = 0, fixed_abs, tag = 'sflag constant byte address 0x0 - dummy sync flag']
  #allocation86 [shape = 's32[]', space=sflag, size = 0x4, offset = 0, fixed_abs, tag = 'sflag constant byte address 0x0 - dummy sync flag']
  #allocation87 [shape = 's32[]', space=sflag, size = 0x4, offset = 0, fixed_abs, tag = 'sflag constant byte address 0x0 - dummy sync flag']
  #allocation88 [shape = 's32[]', space=sflag, size = 0x4, offset = 0, fixed_abs, tag = 'sflag constant byte address 0x0 - dummy sync flag']
  #allocation89 [shape = 's32[]', space=sflag, size = 0x4, offset = 0, fixed_abs, tag = 'sflag constant byte address 0x0 - dummy sync flag']
  #allocation90 [shape = 's32[]', space=sflag, size = 0x4, offset = 0, fixed_abs, tag = 'sflag constant byte address 0x0 - dummy sync flag']
  #allocation91 [shape = 's32[]', space=sflag, size = 0x4, offset = 0, fixed_abs, tag = 'sflag constant byte address 0x0 - dummy sync flag']
  #allocation92 [shape = 's32[]', space=sflag, size = 0x4, offset = 0, fixed_abs, tag = 'sflag constant byte address 0x0 - dummy sync flag']
  #allocation93 [shape = 's32[]', space=sflag, size = 0x4, offset = 0, fixed_abs, tag = 'sflag constant byte address 0x0 - dummy sync flag']
  #allocation94 [shape = 's32[]', space=sflag, size = 0x4, offset = 0, fixed_abs, tag = 'sflag constant byte address 0x0 - dummy sync flag']
  #allocation95 [shape = 's32[]', space=sflag, size = 0x4, offset = 0, fixed_abs, tag = 'sflag constant byte address 0x0 - dummy sync flag']
  #allocation96 [shape = 's32[]', space=sflag, size = 0x4, offset = 0, fixed_abs, tag = 'sflag constant byte address 0x0 - dummy sync flag']
  #allocation97 [shape = 's32[]', space=sflag, size = 0x4, offset = 0, fixed_abs, tag = 'sflag constant byte address 0x0 - dummy sync flag']
  #allocation98 [shape = 's32[]', space=sflag, size = 0x4, offset = 0, fixed_abs, tag = 'sflag constant byte address 0x0 - dummy sync flag']
  #allocation99 [shape = 's32[]', space=sflag, size = 0x4, offset = 0, fixed_abs, tag = 'sflag constant byte address 0x0 - dummy sync flag']
  #allocation100 [shape = 's32[]', space=sflag, size = 0x4, offset = 0, fixed_abs, tag = 'sflag constant byte address 0x0 - dummy sync flag']
  #allocation101 [shape = 's32[]', space=sflag, size = 0x4, offset = 0, fixed_abs, tag = 'sflag constant byte address 0x0 - dummy sync flag']
  #allocation102 [shape = 's32[]', space=sflag, size = 0x4, offset = 0, fixed_abs, tag = 'sflag constant byte address 0x0 - dummy sync flag']
  #allocation103 [shape = 's32[]', space=sflag, size = 0x4, offset = 0, fixed_abs, tag = 'sflag constant byte address 0x0 - dummy sync flag']
  #allocation104 [shape = 's32[]', space=sflag, size = 0x4, offset = 0, fixed_abs, tag = 'sflag constant byte address 0x0 - dummy sync flag']
  #allocation105 [shape = 's32[]', space=sflag, size = 0x4, offset = 0, fixed_abs, tag = 'sflag constant byte address 0x0 - dummy sync flag']
  #allocation106 [shape = 's32[]', space=sflag, size = 0x4, offset = 0, fixed_abs, tag = 'sflag constant byte address 0x0 - dummy sync flag']
  #allocation107 [shape = 's32[]', space=sflag, size = 0x4, offset = 0, fixed_abs, tag = 'sflag constant byte address 0x0 - dummy sync flag']
  #allocation108 [shape = 's32[]', space=sflag, size = 0x4, offset = 0, fixed_abs, tag = 'sflag constant byte address 0x0 - dummy sync flag']
  #allocation109 [shape = 's32[]', space=sflag, size = 0x4, offset = 0, fixed_abs, tag = 'sflag constant byte address 0x0 - dummy sync flag']
  #allocation110 [shape = 's32[]', space=sflag, size = 0x4, offset = 0, fixed_abs, tag = 'sflag constant byte address 0x0 - dummy sync flag']
  #allocation111 [shape = 's32[]', space=sflag, size = 0x4, offset = 0, fixed_abs, tag = 'sflag constant byte address 0x0 - dummy sync flag']
  #allocation112 [shape = 's32[]', space=sflag, size = 0x4, offset = 0, fixed_abs, tag = 'sflag constant byte address 0x0 - dummy sync flag']
  #allocation113 [shape = 's32[]', space=sflag, size = 0x4, offset = 0, fixed_abs, tag = 'sflag constant byte address 0x0 - dummy sync flag']
  #allocation114 [shape = 's32[]', space=sflag, size = 0x4, offset = 0, fixed_abs, tag = 'sflag constant byte address 0x0 - dummy sync flag']
  #allocation115 [shape = 's32[]', space=sflag, size = 0x4, offset = 0, fixed_abs, tag = 'sflag constant byte address 0x0 - dummy sync flag']
  #allocation116 [shape = 's32[]', space=sflag, size = 0x4, offset = 0, fixed_abs, tag = 'sflag constant byte address 0x0 - dummy sync flag']
  #allocation117 [shape = 's32[]', space=sflag, size = 0x4, offset = 0, fixed_abs, tag = 'sflag constant byte address 0x0 - dummy sync flag']
  #allocation118 [shape = 's32[]', space=sflag, size = 0x4, offset = 0, fixed_abs, tag = 'sflag constant byte address 0x0 - dummy sync flag']
  #allocation119 [shape = 's32[]', space=sflag, size = 0x4, offset = 0, fixed_abs, tag = 'sflag constant byte address 0x0 - dummy sync flag']
  #allocation120 [shape = 's32[]', space=sflag, size = 0x4, offset = 0, fixed_abs, tag = 'sflag constant byte address 0x0 - dummy sync flag']
  #allocation121 [shape = 's32[]', space=sflag, size = 0x4, offset = 0, fixed_abs, tag = 'sflag constant byte address 0x0 - dummy sync flag']
  #allocation122 [shape = 's32[]', space=sflag, size = 0x4, offset = 0, fixed_abs, tag = 'sflag constant byte address 0x0 - dummy sync flag']
  #allocation123 [shape = 's32[]', space=sflag, size = 0x4, offset = 0, fixed_abs, tag = 'sflag constant byte address 0x0 - dummy sync flag']
  #allocation124 [shape = 's32[]', space=sflag, size = 0x4, offset = 0, fixed_abs, tag = 'sflag constant byte address 0x0 - dummy sync flag']
  #allocation125 [shape = 's32[]', space=sflag, size = 0x4, offset = 0, fixed_abs, tag = 'sflag constant byte address 0x0 - dummy sync flag']
  #allocation126 [shape = 's32[]', space=sflag, size = 0x4, offset = 0, fixed_abs, tag = 'sflag constant byte address 0x0 - dummy sync flag']
  #allocation127 [shape = 's32[]', space=sflag, size = 0x4, offset = 0, fixed_abs, tag = 'sflag constant byte address 0x0 - dummy sync flag']
  #allocation128 [shape = 's32[]', space=sflag, size = 0x4, offset = 0, fixed_abs, tag = 'sflag constant byte address 0x0 - dummy sync flag']
  #allocation129 [shape = 's32[]', space=sflag, size = 0x4, offset = 0, fixed_abs, tag = 'sflag constant byte address 0x0 - dummy sync flag']
  #allocation130 [shape = 's32[]', space=sflag, size = 0x4, offset = 0, fixed_abs, tag = 'sflag constant byte address 0x0 - dummy sync flag']
  #allocation131 [shape = 's32[]', space=sflag, size = 0x4, offset = 0, fixed_abs, tag = 'sflag constant byte address 0x0 - dummy sync flag']
  #allocation132 [shape = 's32[]', space=sflag, size = 0x4, offset = 0, fixed_abs, tag = 'sflag constant byte address 0x0 - dummy sync flag']
  #allocation133 [shape = 's32[]', space=sflag, size = 0x4, offset = 0, fixed_abs, tag = 'sflag constant byte address 0x0 - dummy sync flag']
  #allocation134 [shape = 's32[]', space=sflag, size = 0x4, offset = 0, fixed_abs, tag = 'sflag constant byte address 0x0 - dummy sync flag']
  #allocation135 [shape = 's32[]', space=sflag, size = 0x4, offset = 0, fixed_abs, tag = 'sflag constant byte address 0x0 - dummy sync flag']
  #allocation136 [shape = 's32[]', space=sflag, size = 0x4, offset = 0, fixed_abs, tag = 'sflag constant byte address 0x0 - dummy sync flag']
  #allocation137 [shape = 's32[]', space=sflag, size = 0x4, offset = 0, fixed_abs, tag = 'sflag constant byte address 0x0 - dummy sync flag']
  %s0 = inlined_call_operand.hbm [shape: s32[32], index: 0, kind: input, shape index: {}]
  %s1 = inlined_call_operand.hbm [shape: f32[64,128], index: 1, kind: input, shape index: {}]
  %s2 = inlined_call_operand.hbm [shape: f32[32,128], index: 2, kind: output, shape index: {}]
  %s3 = sld [smem:[#allocation0]]
  $region274: #{tpu_custom_call.1} parent=0
    _
  %s5 = ssub.s32 1, %s3
  %s6 = scalar_select 0, %s5, %s3
  %8 = dma.hbm_to_smem %s0, 16, [#allocation5], [#allocation4]
  %9 = dma.done [#allocation4], 16
  %10 = sfence
  $region1: #{tpu_custom_call.1} parent=0
    #allocation6 [shape = 'u8[16384]{0}', space=vmem, size = 0x4000, scoped, tag = 'output window, operand 0, single buffered']
    #allocation7 [shape = 's32[1]{0}', space=sflag, size = 0x4, scoped, tag = 'scoped memory for tpu_custom_call.1']
    %11 = vsyncpa [#allocation7], 0
    %s12 = sand.u32 0, 1
    %p13 = scmp.eq.s32.totalorder 0, 0
    // Predicated region
    $region2: #{tpu_custom_call.1} parent=1 // pred_check
      %p14 = pneg %p13
    $region3: #{tpu_custom_call.1} parent=1 // pred_check_branch
      %16 = sbr.rel (%p14) target = $region5
    $region4: #{tpu_custom_call.1} parent=1 // pred_region
      %s17 = sld [smem:[#allocation5]]
      %s18 = smul.addr %s17, 16
      %s19 = scalar_lea.hbm %s1, %s18
      // Predicated region
      $region6: #{tpu_custom_call.1} parent=4 // pred_check
        _
      $region7: #{tpu_custom_call.1} parent=4 // pred_check_branch
        %21 = sbr.rel target = $region9
      $region8: #{tpu_custom_call.1} parent=4 // pred_region
        %22 = sst [smem:[#allocation10]] [#allocation9]
        %23 = sst [smem:[#allocation11]] [#allocation8]
      $region9: #{tpu_custom_call.1} parent=4 // pred_fallthru
        _
      %25 = shalt.err (0)
      %s27 = sshll.u32 [#allocation2], 4
      %s28 = int_to_ptr.vmem [resolvable:$true] %s27
      %30 = dma.hbm_to_vmem [thread:$0]  %s19, 16, %s28, [#allocation3]
      %s31 = sld [smem:[#allocation5 + $0x1]]
      %s32 = smul.addr %s31, 16
      %s33 = scalar_lea.hbm %s1, %s32
      %s34 = scalar_lea.vmem [#allocation2], 1
      // Predicated region
      $region10: #{tpu_custom_call.1} parent=4 // pred_check
        _
      $region11: #{tpu_custom_call.1} parent=4 // pred_check_branch
        %36 = sbr.rel target = $region13
      $region12: #{tpu_custom_call.1} parent=4 // pred_region
        %37 = sst [smem:[#allocation10]] [#allocation13]
        %38 = sst [smem:[#allocation11]] [#allocation12]
      $region13: #{tpu_custom_call.1} parent=4 // pred_fallthru
        _
      %40 = shalt.err (0)
      %s42 = sshll.u32 %s34, 4
      %s43 = int_to_ptr.vmem [resolvable:$true] %s42
      %45 = dma.hbm_to_vmem [thread:$0]  %s33, 16, %s43, [#allocation3]
      %s46 = sld [smem:[#allocation5 + $0x2]]
      %s47 = smul.addr %s46, 16
      %s48 = scalar_lea.hbm %s1, %s47
      %s49 = scalar_lea.vmem [#allocation2], 2
      // Predicated region
      $region14: #{tpu_custom_call.1} parent=4 // pred_check
        _
      $region15: #{tpu_custom_call.1} parent=4 // pred_check_branch
        %51 = sbr.rel target = $region17
      $region16: #{tpu_custom_call.1} parent=4 // pred_region
        %52 = sst [smem:[#allocation10]] [#allocation15]
        %53 = sst [smem:[#allocation11]] [#allocation14]
      $region17: #{tpu_custom_call.1} parent=4 // pred_fallthru
        _
      %55 = shalt.err (0)
      %s57 = sshll.u32 %s49, 4
      %s58 = int_to_ptr.vmem [resolvable:$true] %s57
      %60 = dma.hbm_to_vmem [thread:$0]  %s48, 16, %s58, [#allocation3]
      %s61 = sld [smem:[#allocation5 + $0x3]]
      %s62 = smul.addr %s61, 16
      %s63 = scalar_lea.hbm %s1, %s62
      %s64 = scalar_lea.vmem [#allocation2], 3
      // Predicated region
      $region18: #{tpu_custom_call.1} parent=4 // pred_check
        _
      $region19: #{tpu_custom_call.1} parent=4 // pred_check_branch
        %66 = sbr.rel target = $region21
      $region20: #{tpu_custom_call.1} parent=4 // pred_region
        %67 = sst [smem:[#allocation10]] [#allocation17]
        %68 = sst [smem:[#allocation11]] [#allocation16]
      $region21: #{tpu_custom_call.1} parent=4 // pred_fallthru
        _
      %70 = shalt.err (0)
      %s72 = sshll.u32 %s64, 4
      %s73 = int_to_ptr.vmem [resolvable:$true] %s72
      %75 = dma.hbm_to_vmem [thread:$0]  %s63, 16, %s73, [#allocation3]
      %s76 = sld [smem:[#allocation5 + $0x4]]
      %s77 = smul.addr %s76, 16
      %s78 = scalar_lea.hbm %s1, %s77
      %s79 = scalar_lea.vmem [#allocation2], 4
      // Predicated region
      $region22: #{tpu_custom_call.1} parent=4 // pred_check
        _
      $region23: #{tpu_custom_call.1} parent=4 // pred_check_branch
        %81 = sbr.rel target = $region25
      $region24: #{tpu_custom_call.1} parent=4 // pred_region
        %82 = sst [smem:[#allocation10]] [#allocation19]
        %83 = sst [smem:[#allocation11]] [#allocation18]
      $region25: #{tpu_custom_call.1} parent=4 // pred_fallthru
        _
      %85 = shalt.err (0)
      %s87 = sshll.u32 %s79, 4
      %s88 = int_to_ptr.vmem [resolvable:$true] %s87
      %90 = dma.hbm_to_vmem [thread:$0]  %s78, 16, %s88, [#allocation3]
      %s91 = sld [smem:[#allocation5 + $0x5]]
      %s92 = smul.addr %s91, 16
      %s93 = scalar_lea.hbm %s1, %s92
      %s94 = scalar_lea.vmem [#allocation2], 5
      // Predicated region
      $region26: #{tpu_custom_call.1} parent=4 // pred_check
        _
      $region27: #{tpu_custom_call.1} parent=4 // pred_check_branch
        %96 = sbr.rel target = $region29
      $region28: #{tpu_custom_call.1} parent=4 // pred_region
        %97 = sst [smem:[#allocation10]] [#allocation21]
        %98 = sst [smem:[#allocation11]] [#allocation20]
      $region29: #{tpu_custom_call.1} parent=4 // pred_fallthru
        _
      %100 = shalt.err (0)
      %s102 = sshll.u32 %s94, 4
      %s103 = int_to_ptr.vmem [resolvable:$true] %s102
      %105 = dma.hbm_to_vmem [thread:$0]  %s93, 16, %s103, [#allocation3]
      %s106 = sld [smem:[#allocation5 + $0x6]]
      %s107 = smul.addr %s106, 16
      %s108 = scalar_lea.hbm %s1, %s107
      %s109 = scalar_lea.vmem [#allocation2], 6
      // Predicated region
      $region30: #{tpu_custom_call.1} parent=4 // pred_check
        _
      $region31: #{tpu_custom_call.1} parent=4 // pred_check_branch
        %111 = sbr.rel target = $region33
      $region32: #{tpu_custom_call.1} parent=4 // pred_region
        %112 = sst [smem:[#allocation10]] [#allocation23]
        %113 = sst [smem:[#allocation11]] [#allocation22]
      $region33: #{tpu_custom_call.1} parent=4 // pred_fallthru
        _
      %115 = shalt.err (0)
      %s117 = sshll.u32 %s109, 4
      %s118 = int_to_ptr.vmem [resolvable:$true] %s117
      %120 = dma.hbm_to_vmem [thread:$0]  %s108, 16, %s118, [#allocation3]
      %s121 = sld [smem:[#allocation5 + $0x7]]
      %s122 = smul.addr %s121, 16
      %s123 = scalar_lea.hbm %s1, %s122
      %s124 = scalar_lea.vmem [#allocation2], 7
      // Predicated region
      $region34: #{tpu_custom_call.1} parent=4 // pred_check
        _
      $region35: #{tpu_custom_call.1} parent=4 // pred_check_branch
        %126 = sbr.rel target = $region37
      $region36: #{tpu_custom_call.1} parent=4 // pred_region
        %127 = sst [smem:[#allocation10]] [#allocation25]
        %128 = sst [smem:[#allocation11]] [#allocation24]
      $region37: #{tpu_custom_call.1} parent=4 // pred_fallthru
        _
      %130 = shalt.err (0)
      %s132 = sshll.u32 %s124, 4
      %s133 = int_to_ptr.vmem [resolvable:$true] %s132
      %135 = dma.hbm_to_vmem [thread:$0]  %s123, 16, %s133, [#allocation3]
      %s136 = sld [smem:[#allocation5 + $0x8]]
      %s137 = smul.addr %s136, 16
      %s138 = scalar_lea.hbm %s1, %s137
      %s139 = scalar_lea.vmem [#allocation2], 8
      // Predicated region
      $region38: #{tpu_custom_call.1} parent=4 // pred_check
        _
      $region39: #{tpu_custom_call.1} parent=4 // pred_check_branch
        %141 = sbr.rel target = $region41
      $region40: #{tpu_custom_call.1} parent=4 // pred_region
        %142 = sst [smem:[#allocation10]] [#allocation27]
        %143 = sst [smem:[#allocation11]] [#allocation26]
      $region41: #{tpu_custom_call.1} parent=4 // pred_fallthru
        _
      %145 = shalt.err (0)
      %s147 = sshll.u32 %s139, 4
      %s148 = int_to_ptr.vmem [resolvable:$true] %s147
      %150 = dma.hbm_to_vmem [thread:$0]  %s138, 16, %s148, [#allocation3]
      %s151 = sld [smem:[#allocation5 + $0x9]]
      %s152 = smul.addr %s151, 16
      %s153 = scalar_lea.hbm %s1, %s152
      %s154 = scalar_lea.vmem [#allocation2], 9
      // Predicated region
      $region42: #{tpu_custom_call.1} parent=4 // pred_check
        _
      $region43: #{tpu_custom_call.1} parent=4 // pred_check_branch
        %156 = sbr.rel target = $region45
      $region44: #{tpu_custom_call.1} parent=4 // pred_region
        %157 = sst [smem:[#allocation10]] [#allocation29]
        %158 = sst [smem:[#allocation11]] [#allocation28]
      $region45: #{tpu_custom_call.1} parent=4 // pred_fallthru
        _
      %160 = shalt.err (0)
      %s162 = sshll.u32 %s154, 4
      %s163 = int_to_ptr.vmem [resolvable:$true] %s162
      %165 = dma.hbm_to_vmem [thread:$0]  %s153, 16, %s163, [#allocation3]
      %s166 = sld [smem:[#allocation5 + $0xa]]
      %s167 = smul.addr %s166, 16
      %s168 = scalar_lea.hbm %s1, %s167
      %s169 = scalar_lea.vmem [#allocation2], 10
      // Predicated region
      $region46: #{tpu_custom_call.1} parent=4 // pred_check
        _
      $region47: #{tpu_custom_call.1} parent=4 // pred_check_branch
        %171 = sbr.rel target = $region49
      $region48: #{tpu_custom_call.1} parent=4 // pred_region
        %172 = sst [smem:[#allocation10]] [#allocation31]
        %173 = sst [smem:[#allocation11]] [#allocation30]
      $region49: #{tpu_custom_call.1} parent=4 // pred_fallthru
        _
      %175 = shalt.err (0)
      %s177 = sshll.u32 %s169, 4
      %s178 = int_to_ptr.vmem [resolvable:$true] %s177
      %180 = dma.hbm_to_vmem [thread:$0]  %s168, 16, %s178, [#allocation3]
      %s181 = sld [smem:[#allocation5 + $0xb]]
      %s182 = smul.addr %s181, 16
      %s183 = scalar_lea.hbm %s1, %s182
      %s184 = scalar_lea.vmem [#allocation2], 11
      // Predicated region
      $region50: #{tpu_custom_call.1} parent=4 // pred_check
        _
      $region51: #{tpu_custom_call.1} parent=4 // pred_check_branch
        %186 = sbr.rel target = $region53
      $region52: #{tpu_custom_call.1} parent=4 // pred_region
        %187 = sst [smem:[#allocation10]] [#allocation33]
        %188 = sst [smem:[#allocation11]] [#allocation32]
      $region53: #{tpu_custom_call.1} parent=4 // pred_fallthru
        _
      %190 = shalt.err (0)
      %s192 = sshll.u32 %s184, 4
      %s193 = int_to_ptr.vmem [resolvable:$true] %s192
      %195 = dma.hbm_to_vmem [thread:$0]  %s183, 16, %s193, [#allocation3]
      %s196 = sld [smem:[#allocation5 + $0xc]]
      %s197 = smul.addr %s196, 16
      %s198 = scalar_lea.hbm %s1, %s197
      %s199 = scalar_lea.vmem [#allocation2], 12
      // Predicated region
      $region54: #{tpu_custom_call.1} parent=4 // pred_check
        _
      $region55: #{tpu_custom_call.1} parent=4 // pred_check_branch
        %201 = sbr.rel target = $region57
      $region56: #{tpu_custom_call.1} parent=4 // pred_region
        %202 = sst [smem:[#allocation10]] [#allocation35]
        %203 = sst [smem:[#allocation11]] [#allocation34]
      $region57: #{tpu_custom_call.1} parent=4 // pred_fallthru
        _
      %205 = shalt.err (0)
      %s207 = sshll.u32 %s199, 4
      %s208 = int_to_ptr.vmem [resolvable:$true] %s207
      %210 = dma.hbm_to_vmem [thread:$0]  %s198, 16, %s208, [#allocation3]
      %s211 = sld [smem:[#allocation5 + $0xd]]
      %s212 = smul.addr %s211, 16
      %s213 = scalar_lea.hbm %s1, %s212
      %s214 = scalar_lea.vmem [#allocation2], 13
      // Predicated region
      $region58: #{tpu_custom_call.1} parent=4 // pred_check
        _
      $region59: #{tpu_custom_call.1} parent=4 // pred_check_branch
        %216 = sbr.rel target = $region61
      $region60: #{tpu_custom_call.1} parent=4 // pred_region
        %217 = sst [smem:[#allocation10]] [#allocation37]
        %218 = sst [smem:[#allocation11]] [#allocation36]
      $region61: #{tpu_custom_call.1} parent=4 // pred_fallthru
        _
      %220 = shalt.err (0)
      %s222 = sshll.u32 %s214, 4
      %s223 = int_to_ptr.vmem [resolvable:$true] %s222
      %225 = dma.hbm_to_vmem [thread:$0]  %s213, 16, %s223, [#allocation3]
      %s226 = sld [smem:[#allocation5 + $0xe]]
      %s227 = smul.addr %s226, 16
      %s228 = scalar_lea.hbm %s1, %s227
      %s229 = scalar_lea.vmem [#allocation2], 14
      // Predicated region
      $region62: #{tpu_custom_call.1} parent=4 // pred_check
        _
      $region63: #{tpu_custom_call.1} parent=4 // pred_check_branch
        %231 = sbr.rel target = $region65
      $region64: #{tpu_custom_call.1} parent=4 // pred_region
        %232 = sst [smem:[#allocation10]] [#allocation39]
        %233 = sst [smem:[#allocation11]] [#allocation38]
      $region65: #{tpu_custom_call.1} parent=4 // pred_fallthru
        _
      %235 = shalt.err (0)
      %s237 = sshll.u32 %s229, 4
      %s238 = int_to_ptr.vmem [resolvable:$true] %s237
      %240 = dma.hbm_to_vmem [thread:$0]  %s228, 16, %s238, [#allocation3]
      %s241 = sld [smem:[#allocation5 + $0xf]]
      %s242 = smul.addr %s241, 16
      %s243 = scalar_lea.hbm %s1, %s242
      %s244 = scalar_lea.vmem [#allocation2], 15
      // Predicated region
      $region66: #{tpu_custom_call.1} parent=4 // pred_check
        _
      $region67: #{tpu_custom_call.1} parent=4 // pred_check_branch
        %246 = sbr.rel target = $region69
      $region68: #{tpu_custom_call.1} parent=4 // pred_region
        %247 = sst [smem:[#allocation10]] [#allocation41]
        %248 = sst [smem:[#allocation11]] [#allocation40]
      $region69: #{tpu_custom_call.1} parent=4 // pred_fallthru
        _
      %250 = shalt.err (0)
      %s252 = sshll.u32 %s244, 4
      %s253 = int_to_ptr.vmem [resolvable:$true] %s252
      %255 = dma.hbm_to_vmem [thread:$0]  %s243, 16, %s253, [#allocation3]
      %s256 = sld [smem:[#allocation5 + $0x10]]
      %s257 = smul.addr %s256, 16
      %s258 = scalar_lea.hbm %s1, %s257
      %s259 = scalar_lea.vmem [#allocation2], 16
      // Predicated region
      $region70: #{tpu_custom_call.1} parent=4 // pred_check
        _
      $region71: #{tpu_custom_call.1} parent=4 // pred_check_branch
        %261 = sbr.rel target = $region73
      $region72: #{tpu_custom_call.1} parent=4 // pred_region
        %262 = sst [smem:[#allocation10]] [#allocation43]
        %263 = sst [smem:[#allocation11]] [#allocation42]
      $region73: #{tpu_custom_call.1} parent=4 // pred_fallthru
        _
      %265 = shalt.err (0)
      %s267 = sshll.u32 %s259, 4
      %s268 = int_to_ptr.vmem [resolvable:$true] %s267
      %270 = dma.hbm_to_vmem [thread:$0]  %s258, 16, %s268, [#allocation3]
      %s271 = sld [smem:[#allocation5 + $0x11]]
      %s272 = smul.addr %s271, 16
      %s273 = scalar_lea.hbm %s1, %s272
      %s274 = scalar_lea.vmem [#allocation2], 17
      // Predicated region
      $region74: #{tpu_custom_call.1} parent=4 // pred_check
        _
      $region75: #{tpu_custom_call.1} parent=4 // pred_check_branch
        %276 = sbr.rel target = $region77
      $region76: #{tpu_custom_call.1} parent=4 // pred_region
        %277 = sst [smem:[#allocation10]] [#allocation45]
        %278 = sst [smem:[#allocation11]] [#allocation44]
      $region77: #{tpu_custom_call.1} parent=4 // pred_fallthru
        _
      %280 = shalt.err (0)
      %s282 = sshll.u32 %s274, 4
      %s283 = int_to_ptr.vmem [resolvable:$true] %s282
      %285 = dma.hbm_to_vmem [thread:$0]  %s273, 16, %s283, [#allocation3]
      %s286 = sld [smem:[#allocation5 + $0x12]]
      %s287 = smul.addr %s286, 16
      %s288 = scalar_lea.hbm %s1, %s287
      %s289 = scalar_lea.vmem [#allocation2], 18
      // Predicated region
      $region78: #{tpu_custom_call.1} parent=4 // pred_check
        _
      $region79: #{tpu_custom_call.1} parent=4 // pred_check_branch
        %291 = sbr.rel target = $region81
      $region80: #{tpu_custom_call.1} parent=4 // pred_region
        %292 = sst [smem:[#allocation10]] [#allocation47]
        %293 = sst [smem:[#allocation11]] [#allocation46]
      $region81: #{tpu_custom_call.1} parent=4 // pred_fallthru
        _
      %295 = shalt.err (0)
      %s297 = sshll.u32 %s289, 4
      %s298 = int_to_ptr.vmem [resolvable:$true] %s297
      %300 = dma.hbm_to_vmem [thread:$0]  %s288, 16, %s298, [#allocation3]
      %s301 = sld [smem:[#allocation5 + $0x13]]
      %s302 = smul.addr %s301, 16
      %s303 = scalar_lea.hbm %s1, %s302
      %s304 = scalar_lea.vmem [#allocation2], 19
      // Predicated region
      $region82: #{tpu_custom_call.1} parent=4 // pred_check
        _
      $region83: #{tpu_custom_call.1} parent=4 // pred_check_branch
        %306 = sbr.rel target = $region85
      $region84: #{tpu_custom_call.1} parent=4 // pred_region
        %307 = sst [smem:[#allocation10]] [#allocation49]
        %308 = sst [smem:[#allocation11]] [#allocation48]
      $region85: #{tpu_custom_call.1} parent=4 // pred_fallthru
        _
      %310 = shalt.err (0)
      %s312 = sshll.u32 %s304, 4
      %s313 = int_to_ptr.vmem [resolvable:$true] %s312
      %315 = dma.hbm_to_vmem [thread:$0]  %s303, 16, %s313, [#allocation3]
      %s316 = sld [smem:[#allocation5 + $0x14]]
      %s317 = smul.addr %s316, 16
      %s318 = scalar_lea.hbm %s1, %s317
      %s319 = scalar_lea.vmem [#allocation2], 20
      // Predicated region
      $region86: #{tpu_custom_call.1} parent=4 // pred_check
        _
      $region87: #{tpu_custom_call.1} parent=4 // pred_check_branch
        %321 = sbr.rel target = $region89
      $region88: #{tpu_custom_call.1} parent=4 // pred_region
        %322 = sst [smem:[#allocation10]] [#allocation51]
        %323 = sst [smem:[#allocation11]] [#allocation50]
      $region89: #{tpu_custom_call.1} parent=4 // pred_fallthru
        _
      %325 = shalt.err (0)
      %s327 = sshll.u32 %s319, 4
      %s328 = int_to_ptr.vmem [resolvable:$true] %s327
      %330 = dma.hbm_to_vmem [thread:$0]  %s318, 16, %s328, [#allocation3]
      %s331 = sld [smem:[#allocation5 + $0x15]]
      %s332 = smul.addr %s331, 16
      %s333 = scalar_lea.hbm %s1, %s332
      %s334 = scalar_lea.vmem [#allocation2], 21
      // Predicated region
      $region90: #{tpu_custom_call.1} parent=4 // pred_check
        _
      $region91: #{tpu_custom_call.1} parent=4 // pred_check_branch
        %336 = sbr.rel target = $region93
      $region92: #{tpu_custom_call.1} parent=4 // pred_region
        %337 = sst [smem:[#allocation10]] [#allocation53]
        %338 = sst [smem:[#allocation11]] [#allocation52]
      $region93: #{tpu_custom_call.1} parent=4 // pred_fallthru
        _
      %340 = shalt.err (0)
      %s342 = sshll.u32 %s334, 4
      %s343 = int_to_ptr.vmem [resolvable:$true] %s342
      %345 = dma.hbm_to_vmem [thread:$0]  %s333, 16, %s343, [#allocation3]
      %s346 = sld [smem:[#allocation5 + $0x16]]
      %s347 = smul.addr %s346, 16
      %s348 = scalar_lea.hbm %s1, %s347
      %s349 = scalar_lea.vmem [#allocation2], 22
      // Predicated region
      $region94: #{tpu_custom_call.1} parent=4 // pred_check
        _
      $region95: #{tpu_custom_call.1} parent=4 // pred_check_branch
        %351 = sbr.rel target = $region97
      $region96: #{tpu_custom_call.1} parent=4 // pred_region
        %352 = sst [smem:[#allocation10]] [#allocation55]
        %353 = sst [smem:[#allocation11]] [#allocation54]
      $region97: #{tpu_custom_call.1} parent=4 // pred_fallthru
        _
      %355 = shalt.err (0)
      %s357 = sshll.u32 %s349, 4
      %s358 = int_to_ptr.vmem [resolvable:$true] %s357
      %360 = dma.hbm_to_vmem [thread:$0]  %s348, 16, %s358, [#allocation3]
      %s361 = sld [smem:[#allocation5 + $0x17]]
      %s362 = smul.addr %s361, 16
      %s363 = scalar_lea.hbm %s1, %s362
      %s364 = scalar_lea.vmem [#allocation2], 23
      // Predicated region
      $region98: #{tpu_custom_call.1} parent=4 // pred_check
        _
      $region99: #{tpu_custom_call.1} parent=4 // pred_check_branch
        %366 = sbr.rel target = $region101
      $region100: #{tpu_custom_call.1} parent=4 // pred_region
        %367 = sst [smem:[#allocation10]] [#allocation57]
        %368 = sst [smem:[#allocation11]] [#allocation56]
      $region101: #{tpu_custom_call.1} parent=4 // pred_fallthru
        _
      %370 = shalt.err (0)
      %s372 = sshll.u32 %s364, 4
      %s373 = int_to_ptr.vmem [resolvable:$true] %s372
      %375 = dma.hbm_to_vmem [thread:$0]  %s363, 16, %s373, [#allocation3]
      %s376 = sld [smem:[#allocation5 + $0x18]]
      %s377 = smul.addr %s376, 16
      %s378 = scalar_lea.hbm %s1, %s377
      %s379 = scalar_lea.vmem [#allocation2], 24
      // Predicated region
      $region102: #{tpu_custom_call.1} parent=4 // pred_check
        _
      $region103: #{tpu_custom_call.1} parent=4 // pred_check_branch
        %381 = sbr.rel target = $region105
      $region104: #{tpu_custom_call.1} parent=4 // pred_region
        %382 = sst [smem:[#allocation10]] [#allocation59]
        %383 = sst [smem:[#allocation11]] [#allocation58]
      $region105: #{tpu_custom_call.1} parent=4 // pred_fallthru
        _
      %385 = shalt.err (0)
      %s387 = sshll.u32 %s379, 4
      %s388 = int_to_ptr.vmem [resolvable:$true] %s387
      %390 = dma.hbm_to_vmem [thread:$0]  %s378, 16, %s388, [#allocation3]
      %s391 = sld [smem:[#allocation5 + $0x19]]
      %s392 = smul.addr %s391, 16
      %s393 = scalar_lea.hbm %s1, %s392
      %s394 = scalar_lea.vmem [#allocation2], 25
      // Predicated region
      $region106: #{tpu_custom_call.1} parent=4 // pred_check
        _
      $region107: #{tpu_custom_call.1} parent=4 // pred_check_branch
        %396 = sbr.rel target = $region109
      $region108: #{tpu_custom_call.1} parent=4 // pred_region
        %397 = sst [smem:[#allocation10]] [#allocation61]
        %398 = sst [smem:[#allocation11]] [#allocation60]
      $region109: #{tpu_custom_call.1} parent=4 // pred_fallthru
        _
      %400 = shalt.err (0)
      %s402 = sshll.u32 %s394, 4
      %s403 = int_to_ptr.vmem [resolvable:$true] %s402
      %405 = dma.hbm_to_vmem [thread:$0]  %s393, 16, %s403, [#allocation3]
      %s406 = sld [smem:[#allocation5 + $0x1a]]
      %s407 = smul.addr %s406, 16
      %s408 = scalar_lea.hbm %s1, %s407
      %s409 = scalar_lea.vmem [#allocation2], 26
      // Predicated region
      $region110: #{tpu_custom_call.1} parent=4 // pred_check
        _
      $region111: #{tpu_custom_call.1} parent=4 // pred_check_branch
        %411 = sbr.rel target = $region113
      $region112: #{tpu_custom_call.1} parent=4 // pred_region
        %412 = sst [smem:[#allocation10]] [#allocation63]
        %413 = sst [smem:[#allocation11]] [#allocation62]
      $region113: #{tpu_custom_call.1} parent=4 // pred_fallthru
        _
      %415 = shalt.err (0)
      %s417 = sshll.u32 %s409, 4
      %s418 = int_to_ptr.vmem [resolvable:$true] %s417
      %420 = dma.hbm_to_vmem [thread:$0]  %s408, 16, %s418, [#allocation3]
      %s421 = sld [smem:[#allocation5 + $0x1b]]
      %s422 = smul.addr %s421, 16
      %s423 = scalar_lea.hbm %s1, %s422
      %s424 = scalar_lea.vmem [#allocation2], 27
      // Predicated region
      $region114: #{tpu_custom_call.1} parent=4 // pred_check
        _
      $region115: #{tpu_custom_call.1} parent=4 // pred_check_branch
        %426 = sbr.rel target = $region117
      $region116: #{tpu_custom_call.1} parent=4 // pred_region
        %427 = sst [smem:[#allocation10]] [#allocation65]
        %428 = sst [smem:[#allocation11]] [#allocation64]
      $region117: #{tpu_custom_call.1} parent=4 // pred_fallthru
        _
      %430 = shalt.err (0)
      %s432 = sshll.u32 %s424, 4
      %s433 = int_to_ptr.vmem [resolvable:$true] %s432
      %435 = dma.hbm_to_vmem [thread:$0]  %s423, 16, %s433, [#allocation3]
      %s436 = sld [smem:[#allocation5 + $0x1c]]
      %s437 = smul.addr %s436, 16
      %s438 = scalar_lea.hbm %s1, %s437
      %s439 = scalar_lea.vmem [#allocation2], 28
      // Predicated region
      $region118: #{tpu_custom_call.1} parent=4 // pred_check
        _
      $region119: #{tpu_custom_call.1} parent=4 // pred_check_branch
        %441 = sbr.rel target = $region121
      $region120: #{tpu_custom_call.1} parent=4 // pred_region
        %442 = sst [smem:[#allocation10]] [#allocation67]
        %443 = sst [smem:[#allocation11]] [#allocation66]
      $region121: #{tpu_custom_call.1} parent=4 // pred_fallthru
        _
      %445 = shalt.err (0)
      %s447 = sshll.u32 %s439, 4
      %s448 = int_to_ptr.vmem [resolvable:$true] %s447
      %450 = dma.hbm_to_vmem [thread:$0]  %s438, 16, %s448, [#allocation3]
      %s451 = sld [smem:[#allocation5 + $0x1d]]
      %s452 = smul.addr %s451, 16
      %s453 = scalar_lea.hbm %s1, %s452
      %s454 = scalar_lea.vmem [#allocation2], 29
      // Predicated region
      $region122: #{tpu_custom_call.1} parent=4 // pred_check
        _
      $region123: #{tpu_custom_call.1} parent=4 // pred_check_branch
        %456 = sbr.rel target = $region125
      $region124: #{tpu_custom_call.1} parent=4 // pred_region
        %457 = sst [smem:[#allocation10]] [#allocation69]
        %458 = sst [smem:[#allocation11]] [#allocation68]
      $region125: #{tpu_custom_call.1} parent=4 // pred_fallthru
        _
      %460 = shalt.err (0)
      %s462 = sshll.u32 %s454, 4
      %s463 = int_to_ptr.vmem [resolvable:$true] %s462
      %465 = dma.hbm_to_vmem [thread:$0]  %s453, 16, %s463, [#allocation3]
      %s466 = sld [smem:[#allocation5 + $0x1e]]
      %s467 = smul.addr %s466, 16
      %s468 = scalar_lea.hbm %s1, %s467
      %s469 = scalar_lea.vmem [#allocation2], 30
      // Predicated region
      $region126: #{tpu_custom_call.1} parent=4 // pred_check
        _
      $region127: #{tpu_custom_call.1} parent=4 // pred_check_branch
        %471 = sbr.rel target = $region129
      $region128: #{tpu_custom_call.1} parent=4 // pred_region
        %472 = sst [smem:[#allocation10]] [#allocation71]
        %473 = sst [smem:[#allocation11]] [#allocation70]
      $region129: #{tpu_custom_call.1} parent=4 // pred_fallthru
        _
      %475 = shalt.err (0)
      %s477 = sshll.u32 %s469, 4
      %s478 = int_to_ptr.vmem [resolvable:$true] %s477
      %480 = dma.hbm_to_vmem [thread:$0]  %s468, 16, %s478, [#allocation3]
      %s481 = sld [smem:[#allocation5 + $0x1f]]
      %s482 = smul.addr %s481, 16
      %s483 = scalar_lea.hbm %s1, %s482
      %s484 = scalar_lea.vmem [#allocation2], 31
      // Predicated region
      $region130: #{tpu_custom_call.1} parent=4 // pred_check
        _
      $region131: #{tpu_custom_call.1} parent=4 // pred_check_branch
        %486 = sbr.rel target = $region133
      $region132: #{tpu_custom_call.1} parent=4 // pred_region
        %487 = sst [smem:[#allocation10]] [#allocation73]
        %488 = sst [smem:[#allocation11]] [#allocation72]
      $region133: #{tpu_custom_call.1} parent=4 // pred_fallthru
        _
      %490 = shalt.err (0)
      %s492 = sshll.u32 %s484, 4
      %s493 = int_to_ptr.vmem [resolvable:$true] %s492
      %495 = dma.hbm_to_vmem [thread:$0]  %s483, 16, %s493, [#allocation3]
    $region5: #{tpu_custom_call.1} parent=1 // pred_fallthru
      _
    %s496 = sadd.s32 0, 1
    %p497 = scmp.lt.s32.totalorder %s496, 1
    // Predicated region
    $region134: #{tpu_custom_call.1} parent=1 // pred_check
      %p498 = pneg %p497
    $region135: #{tpu_custom_call.1} parent=1 // pred_check_branch
      %500 = sbr.rel (%p498) target = $region137
    $region136: #{tpu_custom_call.1} parent=1 // pred_region
      %s501 = ssub.s32 1, %s12
      %s502 = smul.u32 %s496, 32
      %s503 = sld [smem:[#allocation5 + %s502]]
      %s504 = smul.addr %s503, 16
      %s505 = scalar_lea.hbm %s1, %s504
      %s506 = smul.u32 %s501, 32
      %s507 = scalar_lea.vmem [#allocation2], %s506
      %s508 = scalar_lea.sflag [#allocation3], %s501
      // Predicated region
      $region138: #{tpu_custom_call.1} parent=136 // pred_check
        _
      $region139: #{tpu_custom_call.1} parent=136 // pred_check_branch
        %510 = sbr.rel target = $region141
      $region140: #{tpu_custom_call.1} parent=136 // pred_region
        %511 = sst [smem:[#allocation10]] [#allocation75]
        %512 = sst [smem:[#allocation11]] [#allocation74]
      $region141: #{tpu_custom_call.1} parent=136 // pred_fallthru
        _
      %514 = shalt.err (0)
      %s516 = sshll.u32 %s507, 4
      %s517 = int_to_ptr.vmem [resolvable:$true] %s516
      %519 = dma.hbm_to_vmem [thread:$0]  %s505, 16, %s517, %s508
      %s520 = sadd.s32 %s502, 1
      %s521 = sld [smem:[#allocation5 + %s520]]
      %s522 = smul.addr %s521, 16
      %s523 = scalar_lea.hbm %s1, %s522
      %s524 = sadd.s32 1, %s506
      %s525 = scalar_lea.vmem [#allocation2], %s524
      // Predicated region
      $region142: #{tpu_custom_call.1} parent=136 // pred_check
        _
      $region143: #{tpu_custom_call.1} parent=136 // pred_check_branch
        %527 = sbr.rel target = $region145
      $region144: #{tpu_custom_call.1} parent=136 // pred_region
        %528 = sst [smem:[#allocation10]] [#allocation77]
        %529 = sst [smem:[#allocation11]] [#allocation76]
      $region145: #{tpu_custom_call.1} parent=136 // pred_fallthru
        _
      %531 = shalt.err (0)
      %s533 = sshll.u32 %s525, 4
      %s534 = int_to_ptr.vmem [resolvable:$true] %s533
      %536 = dma.hbm_to_vmem [thread:$0]  %s523, 16, %s534, %s508
      %s537 = sadd.s32 %s502, 2
      %s538 = sld [smem:[#allocation5 + %s537]]
      %s539 = smul.addr %s538, 16
      %s540 = scalar_lea.hbm %s1, %s539
      %s541 = sadd.s32 2, %s506
      %s542 = scalar_lea.vmem [#allocation2], %s541
      // Predicated region
      $region146: #{tpu_custom_call.1} parent=136 // pred_check
        _
      $region147: #{tpu_custom_call.1} parent=136 // pred_check_branch
        %544 = sbr.rel target = $region149
      $region148: #{tpu_custom_call.1} parent=136 // pred_region
        %545 = sst [smem:[#allocation10]] [#allocation79]
        %546 = sst [smem:[#allocation11]] [#allocation78]
      $region149: #{tpu_custom_call.1} parent=136 // pred_fallthru
        _
      %548 = shalt.err (0)
      %s550 = sshll.u32 %s542, 4
      %s551 = int_to_ptr.vmem [resolvable:$true] %s550
      %553 = dma.hbm_to_vmem [thread:$0]  %s540, 16, %s551, %s508
      %s554 = sadd.s32 %s502, 3
      %s555 = sld [smem:[#allocation5 + %s554]]
      %s556 = smul.addr %s555, 16
      %s557 = scalar_lea.hbm %s1, %s556
      %s558 = sadd.s32 3, %s506
      %s559 = scalar_lea.vmem [#allocation2], %s558
      // Predicated region
      $region150: #{tpu_custom_call.1} parent=136 // pred_check
        _
      $region151: #{tpu_custom_call.1} parent=136 // pred_check_branch
        %561 = sbr.rel target = $region153
      $region152: #{tpu_custom_call.1} parent=136 // pred_region
        %562 = sst [smem:[#allocation10]] [#allocation81]
        %563 = sst [smem:[#allocation11]] [#allocation80]
      $region153: #{tpu_custom_call.1} parent=136 // pred_fallthru
        _
      %565 = shalt.err (0)
      %s567 = sshll.u32 %s559, 4
      %s568 = int_to_ptr.vmem [resolvable:$true] %s567
      %570 = dma.hbm_to_vmem [thread:$0]  %s557, 16, %s568, %s508
      %s571 = sadd.s32 %s502, 4
      %s572 = sld [smem:[#allocation5 + %s571]]
      %s573 = smul.addr %s572, 16
      %s574 = scalar_lea.hbm %s1, %s573
      %s575 = sadd.s32 4, %s506
      %s576 = scalar_lea.vmem [#allocation2], %s575
      // Predicated region
      $region154: #{tpu_custom_call.1} parent=136 // pred_check
        _
      $region155: #{tpu_custom_call.1} parent=136 // pred_check_branch
        %578 = sbr.rel target = $region157
      $region156: #{tpu_custom_call.1} parent=136 // pred_region
        %579 = sst [smem:[#allocation10]] [#allocation83]
        %580 = sst [smem:[#allocation11]] [#allocation82]
      $region157: #{tpu_custom_call.1} parent=136 // pred_fallthru
        _
      %582 = shalt.err (0)
      %s584 = sshll.u32 %s576, 4
      %s585 = int_to_ptr.vmem [resolvable:$true] %s584
      %587 = dma.hbm_to_vmem [thread:$0]  %s574, 16, %s585, %s508
      %s588 = sadd.s32 %s502, 5
      %s589 = sld [smem:[#allocation5 + %s588]]
      %s590 = smul.addr %s589, 16
      %s591 = scalar_lea.hbm %s1, %s590
      %s592 = sadd.s32 5, %s506
      %s593 = scalar_lea.vmem [#allocation2], %s592
      // Predicated region
      $region158: #{tpu_custom_call.1} parent=136 // pred_check
        _
      $region159: #{tpu_custom_call.1} parent=136 // pred_check_branch
        %595 = sbr.rel target = $region161
      $region160: #{tpu_custom_call.1} parent=136 // pred_region
        %596 = sst [smem:[#allocation10]] [#allocation85]
        %597 = sst [smem:[#allocation11]] [#allocation84]
      $region161: #{tpu_custom_call.1} parent=136 // pred_fallthru
        _
      %599 = shalt.err (0)
      %s601 = sshll.u32 %s593, 4
      %s602 = int_to_ptr.vmem [resolvable:$true] %s601
      %604 = dma.hbm_to_vmem [thread:$0]  %s591, 16, %s602, %s508
      %s605 = sadd.s32 %s502, 6
      %s606 = sld [smem:[#allocation5 + %s605]]
      %s607 = smul.addr %s606, 16
      %s608 = scalar_lea.hbm %s1, %s607
      %s609 = sadd.s32 6, %s506
      %s610 = scalar_lea.vmem [#allocation2], %s609
      // Predicated region
      $region162: #{tpu_custom_call.1} parent=136 // pred_check
        _
      $region163: #{tpu_custom_call.1} parent=136 // pred_check_branch
        %612 = sbr.rel target = $region165
      $region164: #{tpu_custom_call.1} parent=136 // pred_region
        %613 = sst [smem:[#allocation10]] [#allocation87]
        %614 = sst [smem:[#allocation11]] [#allocation86]
      $region165: #{tpu_custom_call.1} parent=136 // pred_fallthru
        _
      %616 = shalt.err (0)
      %s618 = sshll.u32 %s610, 4
      %s619 = int_to_ptr.vmem [resolvable:$true] %s618
      %621 = dma.hbm_to_vmem [thread:$0]  %s608, 16, %s619, %s508
      %s622 = sadd.s32 %s502, 7
      %s623 = sld [smem:[#allocation5 + %s622]]
      %s624 = smul.addr %s623, 16
      %s625 = scalar_lea.hbm %s1, %s624
      %s626 = sadd.s32 7, %s506
      %s627 = scalar_lea.vmem [#allocation2], %s626
      // Predicated region
      $region166: #{tpu_custom_call.1} parent=136 // pred_check
        _
      $region167: #{tpu_custom_call.1} parent=136 // pred_check_branch
        %629 = sbr.rel target = $region169
      $region168: #{tpu_custom_call.1} parent=136 // pred_region
        %630 = sst [smem:[#allocation10]] [#allocation89]
        %631 = sst [smem:[#allocation11]] [#allocation88]
      $region169: #{tpu_custom_call.1} parent=136 // pred_fallthru
        _
      %633 = shalt.err (0)
      %s635 = sshll.u32 %s627, 4
      %s636 = int_to_ptr.vmem [resolvable:$true] %s635
      %638 = dma.hbm_to_vmem [thread:$0]  %s625, 16, %s636, %s508
      %s639 = sadd.s32 %s502, 8
      %s640 = sld [smem:[#allocation5 + %s639]]
      %s641 = smul.addr %s640, 16
      %s642 = scalar_lea.hbm %s1, %s641
      %s643 = sadd.s32 8, %s506
      %s644 = scalar_lea.vmem [#allocation2], %s643
      // Predicated region
      $region170: #{tpu_custom_call.1} parent=136 // pred_check
        _
      $region171: #{tpu_custom_call.1} parent=136 // pred_check_branch
        %646 = sbr.rel target = $region173
      $region172: #{tpu_custom_call.1} parent=136 // pred_region
        %647 = sst [smem:[#allocation10]] [#allocation91]
        %648 = sst [smem:[#allocation11]] [#allocation90]
      $region173: #{tpu_custom_call.1} parent=136 // pred_fallthru
        _
      %650 = shalt.err (0)
      %s652 = sshll.u32 %s644, 4
      %s653 = int_to_ptr.vmem [resolvable:$true] %s652
      %655 = dma.hbm_to_vmem [thread:$0]  %s642, 16, %s653, %s508
      %s656 = sadd.s32 %s502, 9
      %s657 = sld [smem:[#allocation5 + %s656]]
      %s658 = smul.addr %s657, 16
      %s659 = scalar_lea.hbm %s1, %s658
      %s660 = sadd.s32 9, %s506
      %s661 = scalar_lea.vmem [#allocation2], %s660
      // Predicated region
      $region174: #{tpu_custom_call.1} parent=136 // pred_check
        _
      $region175: #{tpu_custom_call.1} parent=136 // pred_check_branch
        %663 = sbr.rel target = $region177
      $region176: #{tpu_custom_call.1} parent=136 // pred_region
        %664 = sst [smem:[#allocation10]] [#allocation93]
        %665 = sst [smem:[#allocation11]] [#allocation92]
      $region177: #{tpu_custom_call.1} parent=136 // pred_fallthru
        _
      %667 = shalt.err (0)
      %s669 = sshll.u32 %s661, 4
      %s670 = int_to_ptr.vmem [resolvable:$true] %s669
      %672 = dma.hbm_to_vmem [thread:$0]  %s659, 16, %s670, %s508
      %s673 = sadd.s32 %s502, 10
      %s674 = sld [smem:[#allocation5 + %s673]]
      %s675 = smul.addr %s674, 16
      %s676 = scalar_lea.hbm %s1, %s675
      %s677 = sadd.s32 10, %s506
      %s678 = scalar_lea.vmem [#allocation2], %s677
      // Predicated region
      $region178: #{tpu_custom_call.1} parent=136 // pred_check
        _
      $region179: #{tpu_custom_call.1} parent=136 // pred_check_branch
        %680 = sbr.rel target = $region181
      $region180: #{tpu_custom_call.1} parent=136 // pred_region
        %681 = sst [smem:[#allocation10]] [#allocation95]
        %682 = sst [smem:[#allocation11]] [#allocation94]
      $region181: #{tpu_custom_call.1} parent=136 // pred_fallthru
        _
      %684 = shalt.err (0)
      %s686 = sshll.u32 %s678, 4
      %s687 = int_to_ptr.vmem [resolvable:$true] %s686
      %689 = dma.hbm_to_vmem [thread:$0]  %s676, 16, %s687, %s508
      %s690 = sadd.s32 %s502, 11
      %s691 = sld [smem:[#allocation5 + %s690]]
      %s692 = smul.addr %s691, 16
      %s693 = scalar_lea.hbm %s1, %s692
      %s694 = sadd.s32 11, %s506
      %s695 = scalar_lea.vmem [#allocation2], %s694
      // Predicated region
      $region182: #{tpu_custom_call.1} parent=136 // pred_check
        _
      $region183: #{tpu_custom_call.1} parent=136 // pred_check_branch
        %697 = sbr.rel target = $region185
      $region184: #{tpu_custom_call.1} parent=136 // pred_region
        %698 = sst [smem:[#allocation10]] [#allocation97]
        %699 = sst [smem:[#allocation11]] [#allocation96]
      $region185: #{tpu_custom_call.1} parent=136 // pred_fallthru
        _
      %701 = shalt.err (0)
      %s703 = sshll.u32 %s695, 4
      %s704 = int_to_ptr.vmem [resolvable:$true] %s703
      %706 = dma.hbm_to_vmem [thread:$0]  %s693, 16, %s704, %s508
      %s707 = sadd.s32 %s502, 12
      %s708 = sld [smem:[#allocation5 + %s707]]
      %s709 = smul.addr %s708, 16
      %s710 = scalar_lea.hbm %s1, %s709
      %s711 = sadd.s32 12, %s506
      %s712 = scalar_lea.vmem [#allocation2], %s711
      // Predicated region
      $region186: #{tpu_custom_call.1} parent=136 // pred_check
        _
      $region187: #{tpu_custom_call.1} parent=136 // pred_check_branch
        %714 = sbr.rel target = $region189
      $region188: #{tpu_custom_call.1} parent=136 // pred_region
        %715 = sst [smem:[#allocation10]] [#allocation99]
        %716 = sst [smem:[#allocation11]] [#allocation98]
      $region189: #{tpu_custom_call.1} parent=136 // pred_fallthru
        _
      %718 = shalt.err (0)
      %s720 = sshll.u32 %s712, 4
      %s721 = int_to_ptr.vmem [resolvable:$true] %s720
      %723 = dma.hbm_to_vmem [thread:$0]  %s710, 16, %s721, %s508
      %s724 = sadd.s32 %s502, 13
      %s725 = sld [smem:[#allocation5 + %s724]]
      %s726 = smul.addr %s725, 16
      %s727 = scalar_lea.hbm %s1, %s726
      %s728 = sadd.s32 13, %s506
      %s729 = scalar_lea.vmem [#allocation2], %s728
      // Predicated region
      $region190: #{tpu_custom_call.1} parent=136 // pred_check
        _
      $region191: #{tpu_custom_call.1} parent=136 // pred_check_branch
        %731 = sbr.rel target = $region193
      $region192: #{tpu_custom_call.1} parent=136 // pred_region
        %732 = sst [smem:[#allocation10]] [#allocation101]
        %733 = sst [smem:[#allocation11]] [#allocation100]
      $region193: #{tpu_custom_call.1} parent=136 // pred_fallthru
        _
      %735 = shalt.err (0)
      %s737 = sshll.u32 %s729, 4
      %s738 = int_to_ptr.vmem [resolvable:$true] %s737
      %740 = dma.hbm_to_vmem [thread:$0]  %s727, 16, %s738, %s508
      %s741 = sadd.s32 %s502, 14
      %s742 = sld [smem:[#allocation5 + %s741]]
      %s743 = smul.addr %s742, 16
      %s744 = scalar_lea.hbm %s1, %s743
      %s745 = sadd.s32 14, %s506
      %s746 = scalar_lea.vmem [#allocation2], %s745
      // Predicated region
      $region194: #{tpu_custom_call.1} parent=136 // pred_check
        _
      $region195: #{tpu_custom_call.1} parent=136 // pred_check_branch
        %748 = sbr.rel target = $region197
      $region196: #{tpu_custom_call.1} parent=136 // pred_region
        %749 = sst [smem:[#allocation10]] [#allocation103]
        %750 = sst [smem:[#allocation11]] [#allocation102]
      $region197: #{tpu_custom_call.1} parent=136 // pred_fallthru
        _
      %752 = shalt.err (0)
      %s754 = sshll.u32 %s746, 4
      %s755 = int_to_ptr.vmem [resolvable:$true] %s754
      %757 = dma.hbm_to_vmem [thread:$0]  %s744, 16, %s755, %s508
      %s758 = sadd.s32 %s502, 15
      %s759 = sld [smem:[#allocation5 + %s758]]
      %s760 = smul.addr %s759, 16
      %s761 = scalar_lea.hbm %s1, %s760
      %s762 = sadd.s32 15, %s506
      %s763 = scalar_lea.vmem [#allocation2], %s762
      // Predicated region
      $region198: #{tpu_custom_call.1} parent=136 // pred_check
        _
      $region199: #{tpu_custom_call.1} parent=136 // pred_check_branch
        %765 = sbr.rel target = $region201
      $region200: #{tpu_custom_call.1} parent=136 // pred_region
        %766 = sst [smem:[#allocation10]] [#allocation105]
        %767 = sst [smem:[#allocation11]] [#allocation104]
      $region201: #{tpu_custom_call.1} parent=136 // pred_fallthru
        _
      %769 = shalt.err (0)
      %s771 = sshll.u32 %s763, 4
      %s772 = int_to_ptr.vmem [resolvable:$true] %s771
      %774 = dma.hbm_to_vmem [thread:$0]  %s761, 16, %s772, %s508
      %s775 = sadd.s32 %s502, 16
      %s776 = sld [smem:[#allocation5 + %s775]]
      %s777 = smul.addr %s776, 16
      %s778 = scalar_lea.hbm %s1, %s777
      %s779 = sadd.s32 16, %s506
      %s780 = scalar_lea.vmem [#allocation2], %s779
      // Predicated region
      $region202: #{tpu_custom_call.1} parent=136 // pred_check
        _
      $region203: #{tpu_custom_call.1} parent=136 // pred_check_branch
        %782 = sbr.rel target = $region205
      $region204: #{tpu_custom_call.1} parent=136 // pred_region
        %783 = sst [smem:[#allocation10]] [#allocation107]
        %784 = sst [smem:[#allocation11]] [#allocation106]
      $region205: #{tpu_custom_call.1} parent=136 // pred_fallthru
        _
      %786 = shalt.err (0)
      %s788 = sshll.u32 %s780, 4
      %s789 = int_to_ptr.vmem [resolvable:$true] %s788
      %791 = dma.hbm_to_vmem [thread:$0]  %s778, 16, %s789, %s508
      %s792 = sadd.s32 %s502, 17
      %s793 = sld [smem:[#allocation5 + %s792]]
      %s794 = smul.addr %s793, 16
      %s795 = scalar_lea.hbm %s1, %s794
      %s796 = sadd.s32 17, %s506
      %s797 = scalar_lea.vmem [#allocation2], %s796
      // Predicated region
      $region206: #{tpu_custom_call.1} parent=136 // pred_check
        _
      $region207: #{tpu_custom_call.1} parent=136 // pred_check_branch
        %799 = sbr.rel target = $region209
      $region208: #{tpu_custom_call.1} parent=136 // pred_region
        %800 = sst [smem:[#allocation10]] [#allocation109]
        %801 = sst [smem:[#allocation11]] [#allocation108]
      $region209: #{tpu_custom_call.1} parent=136 // pred_fallthru
        _
      %803 = shalt.err (0)
      %s805 = sshll.u32 %s797, 4
      %s806 = int_to_ptr.vmem [resolvable:$true] %s805
      %808 = dma.hbm_to_vmem [thread:$0]  %s795, 16, %s806, %s508
      %s809 = sadd.s32 %s502, 18
      %s810 = sld [smem:[#allocation5 + %s809]]
      %s811 = smul.addr %s810, 16
      %s812 = scalar_lea.hbm %s1, %s811
      %s813 = sadd.s32 18, %s506
      %s814 = scalar_lea.vmem [#allocation2], %s813
      // Predicated region
      $region210: #{tpu_custom_call.1} parent=136 // pred_check
        _
      $region211: #{tpu_custom_call.1} parent=136 // pred_check_branch
        %816 = sbr.rel target = $region213
      $region212: #{tpu_custom_call.1} parent=136 // pred_region
        %817 = sst [smem:[#allocation10]] [#allocation111]
        %818 = sst [smem:[#allocation11]] [#allocation110]
      $region213: #{tpu_custom_call.1} parent=136 // pred_fallthru
        _
      %820 = shalt.err (0)
      %s822 = sshll.u32 %s814, 4
      %s823 = int_to_ptr.vmem [resolvable:$true] %s822
      %825 = dma.hbm_to_vmem [thread:$0]  %s812, 16, %s823, %s508
      %s826 = sadd.s32 %s502, 19
      %s827 = sld [smem:[#allocation5 + %s826]]
      %s828 = smul.addr %s827, 16
      %s829 = scalar_lea.hbm %s1, %s828
      %s830 = sadd.s32 19, %s506
      %s831 = scalar_lea.vmem [#allocation2], %s830
      // Predicated region
      $region214: #{tpu_custom_call.1} parent=136 // pred_check
        _
      $region215: #{tpu_custom_call.1} parent=136 // pred_check_branch
        %833 = sbr.rel target = $region217
      $region216: #{tpu_custom_call.1} parent=136 // pred_region
        %834 = sst [smem:[#allocation10]] [#allocation113]
        %835 = sst [smem:[#allocation11]] [#allocation112]
      $region217: #{tpu_custom_call.1} parent=136 // pred_fallthru
        _
      %837 = shalt.err (0)
      %s839 = sshll.u32 %s831, 4
      %s840 = int_to_ptr.vmem [resolvable:$true] %s839
      %842 = dma.hbm_to_vmem [thread:$0]  %s829, 16, %s840, %s508
      %s843 = sadd.s32 %s502, 20
      %s844 = sld [smem:[#allocation5 + %s843]]
      %s845 = smul.addr %s844, 16
      %s846 = scalar_lea.hbm %s1, %s845
      %s847 = sadd.s32 20, %s506
      %s848 = scalar_lea.vmem [#allocation2], %s847
      // Predicated region
      $region218: #{tpu_custom_call.1} parent=136 // pred_check
        _
      $region219: #{tpu_custom_call.1} parent=136 // pred_check_branch
        %850 = sbr.rel target = $region221
      $region220: #{tpu_custom_call.1} parent=136 // pred_region
        %851 = sst [smem:[#allocation10]] [#allocation115]
        %852 = sst [smem:[#allocation11]] [#allocation114]
      $region221: #{tpu_custom_call.1} parent=136 // pred_fallthru
        _
      %854 = shalt.err (0)
      %s856 = sshll.u32 %s848, 4
      %s857 = int_to_ptr.vmem [resolvable:$true] %s856
      %859 = dma.hbm_to_vmem [thread:$0]  %s846, 16, %s857, %s508
      %s860 = sadd.s32 %s502, 21
      %s861 = sld [smem:[#allocation5 + %s860]]
      %s862 = smul.addr %s861, 16
      %s863 = scalar_lea.hbm %s1, %s862
      %s864 = sadd.s32 21, %s506
      %s865 = scalar_lea.vmem [#allocation2], %s864
      // Predicated region
      $region222: #{tpu_custom_call.1} parent=136 // pred_check
        _
      $region223: #{tpu_custom_call.1} parent=136 // pred_check_branch
        %867 = sbr.rel target = $region225
      $region224: #{tpu_custom_call.1} parent=136 // pred_region
        %868 = sst [smem:[#allocation10]] [#allocation117]
        %869 = sst [smem:[#allocation11]] [#allocation116]
      $region225: #{tpu_custom_call.1} parent=136 // pred_fallthru
        _
      %871 = shalt.err (0)
      %s873 = sshll.u32 %s865, 4
      %s874 = int_to_ptr.vmem [resolvable:$true] %s873
      %876 = dma.hbm_to_vmem [thread:$0]  %s863, 16, %s874, %s508
      %s877 = sadd.s32 %s502, 22
      %s878 = sld [smem:[#allocation5 + %s877]]
      %s879 = smul.addr %s878, 16
      %s880 = scalar_lea.hbm %s1, %s879
      %s881 = sadd.s32 22, %s506
      %s882 = scalar_lea.vmem [#allocation2], %s881
      // Predicated region
      $region226: #{tpu_custom_call.1} parent=136 // pred_check
        _
      $region227: #{tpu_custom_call.1} parent=136 // pred_check_branch
        %884 = sbr.rel target = $region229
      $region228: #{tpu_custom_call.1} parent=136 // pred_region
        %885 = sst [smem:[#allocation10]] [#allocation119]
        %886 = sst [smem:[#allocation11]] [#allocation118]
      $region229: #{tpu_custom_call.1} parent=136 // pred_fallthru
        _
      %888 = shalt.err (0)
      %s890 = sshll.u32 %s882, 4
      %s891 = int_to_ptr.vmem [resolvable:$true] %s890
      %893 = dma.hbm_to_vmem [thread:$0]  %s880, 16, %s891, %s508
      %s894 = sadd.s32 %s502, 23
      %s895 = sld [smem:[#allocation5 + %s894]]
      %s896 = smul.addr %s895, 16
      %s897 = scalar_lea.hbm %s1, %s896
      %s898 = sadd.s32 23, %s506
      %s899 = scalar_lea.vmem [#allocation2], %s898
      // Predicated region
      $region230: #{tpu_custom_call.1} parent=136 // pred_check
        _
      $region231: #{tpu_custom_call.1} parent=136 // pred_check_branch
        %901 = sbr.rel target = $region233
      $region232: #{tpu_custom_call.1} parent=136 // pred_region
        %902 = sst [smem:[#allocation10]] [#allocation121]
        %903 = sst [smem:[#allocation11]] [#allocation120]
      $region233: #{tpu_custom_call.1} parent=136 // pred_fallthru
        _
      %905 = shalt.err (0)
      %s907 = sshll.u32 %s899, 4
      %s908 = int_to_ptr.vmem [resolvable:$true] %s907
      %910 = dma.hbm_to_vmem [thread:$0]  %s897, 16, %s908, %s508
      %s911 = sadd.s32 %s502, 24
      %s912 = sld [smem:[#allocation5 + %s911]]
      %s913 = smul.addr %s912, 16
      %s914 = scalar_lea.hbm %s1, %s913
      %s915 = sadd.s32 24, %s506
      %s916 = scalar_lea.vmem [#allocation2], %s915
      // Predicated region
      $region234: #{tpu_custom_call.1} parent=136 // pred_check
        _
      $region235: #{tpu_custom_call.1} parent=136 // pred_check_branch
        %918 = sbr.rel target = $region237
      $region236: #{tpu_custom_call.1} parent=136 // pred_region
        %919 = sst [smem:[#allocation10]] [#allocation123]
        %920 = sst [smem:[#allocation11]] [#allocation122]
      $region237: #{tpu_custom_call.1} parent=136 // pred_fallthru
        _
      %922 = shalt.err (0)
      %s924 = sshll.u32 %s916, 4
      %s925 = int_to_ptr.vmem [resolvable:$true] %s924
      %927 = dma.hbm_to_vmem [thread:$0]  %s914, 16, %s925, %s508
      %s928 = sadd.s32 %s502, 25
      %s929 = sld [smem:[#allocation5 + %s928]]
      %s930 = smul.addr %s929, 16
      %s931 = scalar_lea.hbm %s1, %s930
      %s932 = sadd.s32 25, %s506
      %s933 = scalar_lea.vmem [#allocation2], %s932
      // Predicated region
      $region238: #{tpu_custom_call.1} parent=136 // pred_check
        _
      $region239: #{tpu_custom_call.1} parent=136 // pred_check_branch
        %935 = sbr.rel target = $region241
      $region240: #{tpu_custom_call.1} parent=136 // pred_region
        %936 = sst [smem:[#allocation10]] [#allocation125]
        %937 = sst [smem:[#allocation11]] [#allocation124]
      $region241: #{tpu_custom_call.1} parent=136 // pred_fallthru
        _
      %939 = shalt.err (0)
      %s941 = sshll.u32 %s933, 4
      %s942 = int_to_ptr.vmem [resolvable:$true] %s941
      %944 = dma.hbm_to_vmem [thread:$0]  %s931, 16, %s942, %s508
      %s945 = sadd.s32 %s502, 26
      %s946 = sld [smem:[#allocation5 + %s945]]
      %s947 = smul.addr %s946, 16
      %s948 = scalar_lea.hbm %s1, %s947
      %s949 = sadd.s32 26, %s506
      %s950 = scalar_lea.vmem [#allocation2], %s949
      // Predicated region
      $region242: #{tpu_custom_call.1} parent=136 // pred_check
        _
      $region243: #{tpu_custom_call.1} parent=136 // pred_check_branch
        %952 = sbr.rel target = $region245
      $region244: #{tpu_custom_call.1} parent=136 // pred_region
        %953 = sst [smem:[#allocation10]] [#allocation127]
        %954 = sst [smem:[#allocation11]] [#allocation126]
      $region245: #{tpu_custom_call.1} parent=136 // pred_fallthru
        _
      %956 = shalt.err (0)
      %s958 = sshll.u32 %s950, 4
      %s959 = int_to_ptr.vmem [resolvable:$true] %s958
      %961 = dma.hbm_to_vmem [thread:$0]  %s948, 16, %s959, %s508
      %s962 = sadd.s32 %s502, 27
      %s963 = sld [smem:[#allocation5 + %s962]]
      %s964 = smul.addr %s963, 16
      %s965 = scalar_lea.hbm %s1, %s964
      %s966 = sadd.s32 27, %s506
      %s967 = scalar_lea.vmem [#allocation2], %s966
      // Predicated region
      $region246: #{tpu_custom_call.1} parent=136 // pred_check
        _
      $region247: #{tpu_custom_call.1} parent=136 // pred_check_branch
        %969 = sbr.rel target = $region249
      $region248: #{tpu_custom_call.1} parent=136 // pred_region
        %970 = sst [smem:[#allocation10]] [#allocation129]
        %971 = sst [smem:[#allocation11]] [#allocation128]
      $region249: #{tpu_custom_call.1} parent=136 // pred_fallthru
        _
      %973 = shalt.err (0)
      %s975 = sshll.u32 %s967, 4
      %s976 = int_to_ptr.vmem [resolvable:$true] %s975
      %978 = dma.hbm_to_vmem [thread:$0]  %s965, 16, %s976, %s508
      %s979 = sadd.s32 %s502, 28
      %s980 = sld [smem:[#allocation5 + %s979]]
      %s981 = smul.addr %s980, 16
      %s982 = scalar_lea.hbm %s1, %s981
      %s983 = sadd.s32 28, %s506
      %s984 = scalar_lea.vmem [#allocation2], %s983
      // Predicated region
      $region250: #{tpu_custom_call.1} parent=136 // pred_check
        _
      $region251: #{tpu_custom_call.1} parent=136 // pred_check_branch
        %986 = sbr.rel target = $region253
      $region252: #{tpu_custom_call.1} parent=136 // pred_region
        %987 = sst [smem:[#allocation10]] [#allocation131]
        %988 = sst [smem:[#allocation11]] [#allocation130]
      $region253: #{tpu_custom_call.1} parent=136 // pred_fallthru
        _
      %990 = shalt.err (0)
      %s992 = sshll.u32 %s984, 4
      %s993 = int_to_ptr.vmem [resolvable:$true] %s992
      %995 = dma.hbm_to_vmem [thread:$0]  %s982, 16, %s993, %s508
      %s996 = sadd.s32 %s502, 29
      %s997 = sld [smem:[#allocation5 + %s996]]
      %s998 = smul.addr %s997, 16
      %s999 = scalar_lea.hbm %s1, %s998
      %s1000 = sadd.s32 29, %s506
      %s1001 = scalar_lea.vmem [#allocation2], %s1000
      // Predicated region
      $region254: #{tpu_custom_call.1} parent=136 // pred_check
        _
      $region255: #{tpu_custom_call.1} parent=136 // pred_check_branch
        %1003 = sbr.rel target = $region257
      $region256: #{tpu_custom_call.1} parent=136 // pred_region
        %1004 = sst [smem:[#allocation10]] [#allocation133]
        %1005 = sst [smem:[#allocation11]] [#allocation132]
      $region257: #{tpu_custom_call.1} parent=136 // pred_fallthru
        _
      %1007 = shalt.err (0)
      %s1009 = sshll.u32 %s1001, 4
      %s1010 = int_to_ptr.vmem [resolvable:$true] %s1009
      %1012 = dma.hbm_to_vmem [thread:$0]  %s999, 16, %s1010, %s508
      %s1013 = sadd.s32 %s502, 30
      %s1014 = sld [smem:[#allocation5 + %s1013]]
      %s1015 = smul.addr %s1014, 16
      %s1016 = scalar_lea.hbm %s1, %s1015
      %s1017 = sadd.s32 30, %s506
      %s1018 = scalar_lea.vmem [#allocation2], %s1017
      // Predicated region
      $region258: #{tpu_custom_call.1} parent=136 // pred_check
        _
      $region259: #{tpu_custom_call.1} parent=136 // pred_check_branch
        %1020 = sbr.rel target = $region261
      $region260: #{tpu_custom_call.1} parent=136 // pred_region
        %1021 = sst [smem:[#allocation10]] [#allocation135]
        %1022 = sst [smem:[#allocation11]] [#allocation134]
      $region261: #{tpu_custom_call.1} parent=136 // pred_fallthru
        _
      %1024 = shalt.err (0)
      %s1026 = sshll.u32 %s1018, 4
      %s1027 = int_to_ptr.vmem [resolvable:$true] %s1026
      %1029 = dma.hbm_to_vmem [thread:$0]  %s1016, 16, %s1027, %s508
      %s1030 = sadd.s32 %s502, 31
      %s1031 = sld [smem:[#allocation5 + %s1030]]
      %s1032 = smul.addr %s1031, 16
      %s1033 = scalar_lea.hbm %s1, %s1032
      %s1034 = sadd.s32 31, %s506
      %s1035 = scalar_lea.vmem [#allocation2], %s1034
      // Predicated region
      $region262: #{tpu_custom_call.1} parent=136 // pred_check
        _
      $region263: #{tpu_custom_call.1} parent=136 // pred_check_branch
        %1037 = sbr.rel target = $region265
      $region264: #{tpu_custom_call.1} parent=136 // pred_region
        %1038 = sst [smem:[#allocation10]] [#allocation137]
        %1039 = sst [smem:[#allocation11]] [#allocation136]
      $region265: #{tpu_custom_call.1} parent=136 // pred_fallthru
        _
      %1041 = shalt.err (0)
      %s1043 = sshll.u32 %s1035, 4
      %s1044 = int_to_ptr.vmem [resolvable:$true] %s1043
      %1046 = dma.hbm_to_vmem [thread:$0]  %s1033, 16, %s1044, %s508
    $region137: #{tpu_custom_call.1} parent=1 // pred_fallthru
      _
    %s1047 = scalar_lea.sflag [#allocation3], %s12
    %1049 = dma.done %s1047, 16
    %1051 = dma.done %s1047, 16
    %1053 = dma.done %s1047, 16
    %1055 = dma.done %s1047, 16
    %1057 = dma.done %s1047, 16
    %1059 = dma.done %s1047, 16
    %1061 = dma.done %s1047, 16
    %1063 = dma.done %s1047, 16
    %1065 = dma.done %s1047, 16
    %1067 = dma.done %s1047, 16
    %1069 = dma.done %s1047, 16
    %1071 = dma.done %s1047, 16
    %1073 = dma.done %s1047, 16
    %1075 = dma.done %s1047, 16
    %1077 = dma.done %s1047, 16
    %1079 = dma.done %s1047, 16
    %1081 = dma.done %s1047, 16
    %1083 = dma.done %s1047, 16
    %1085 = dma.done %s1047, 16
    %1087 = dma.done %s1047, 16
    %1089 = dma.done %s1047, 16
    %1091 = dma.done %s1047, 16
    %1093 = dma.done %s1047, 16
    %1095 = dma.done %s1047, 16
    %1097 = dma.done %s1047, 16
    %1099 = dma.done %s1047, 16
    %1101 = dma.done %s1047, 16
    %1103 = dma.done %s1047, 16
    %1105 = dma.done %s1047, 16
    %1107 = dma.done %s1047, 16
    %1109 = dma.done %s1047, 16
    %1111 = dma.done %s1047, 16
    %s1112 = smul.u32 %s12, 32
    %s1113 = scalar_lea.vmem [#allocation2], %s1112
    %v1114 = vld [vmem:[%s1113] sm:$0xff]
    %v1115 = vld [vmem:[%s1113 + $0x8] sm:$0xff]
    %v1116 = vld [vmem:[%s1113 + $0x10] sm:$0xff]
    %v1117 = vld [vmem:[%s1113 + $0x18] sm:$0xff]
    %1118 = vst [vmem:[#allocation6] sm:$0xff] %v1114
    %1119 = vst [vmem:[#allocation6 + $0x8] sm:$0xff] %v1115
    %1120 = vst [vmem:[#allocation6 + $0x10] sm:$0xff] %v1116
    %1121 = vst [vmem:[#allocation6 + $0x18] sm:$0xff] %v1117
    // Predicated region
    $region266: #{tpu_custom_call.1} parent=1 // pred_check
      _
    $region267: #{tpu_custom_call.1} parent=1 // pred_check_branch
      %1123 = sbr.rel (0) target = $region269
    $region268: #{tpu_custom_call.1} parent=1 // pred_region
      %s1125 = ssub.s32 512, 512
      %1126 = vsyncadd [#allocation7], %s1125
      %s1127 = sshll.u32 [#allocation6], 4
      %s1128 = int_to_ptr.vmem [resolvable:$true] %s1127
      %1133 = dma.vmem_to_hbm [thread:$0]  %s1128, 512, %s2, [#allocation7], 128, 128, 8
    $region269: #{tpu_custom_call.1} parent=1 // pred_fallthru
      _
    // Predicated region
    $region270: #{tpu_custom_call.1} parent=1 // pred_check
      _
    $region271: #{tpu_custom_call.1} parent=1 // pred_check_branch
      %1135 = sbr.rel (0) target = $region273
    $region272: #{tpu_custom_call.1} parent=1 // pred_region
      %1136 = dma.done [#allocation7], 512
    $region273: #{tpu_custom_call.1} parent=1 // pred_fallthru
      _
    %1137 = vsyncpa [#allocation7], 1
  %1138 = vsyncmov [#allocation3]
  %s1139 = vpop.sfrf %1138
  %p1140 = scmp.eq.s32.totalorder %s1139, 0
  %p1141 = pneg %p1140
  %1143 = shalt.err (%p1141)
  %s1144 = scalar_lea.sflag [#allocation3], 1
  %1145 = vsyncmov %s1144
  %s1146 = vpop.sfrf %1145
  %p1147 = scmp.eq.s32.totalorder %s1146, 0
  %p1148 = pneg %p1147
  %1150 = shalt.err (%p1148)

</llo_original>
